<compile_context>
chip_gen: v5e
topology: v5e:2x2
jax: 0.10.0
libtpu: 0.0.40
codegen_flags: <defaults>
</compile_context>

<pallas_src>
import math
from functools import partial

import jax
import jax.numpy as jnp
from jax import lax
from jax.experimental import pallas as pl
from jax.experimental.pallas import tpu as pltpu

KSIZE = 21
PAD = 10
LANE = 128


def _block_kernel(x_ref, w_ref, b_ref, g_ref, o_ref, acc_ref, *, H, W, scale):
    # x_ref  : (1, H+2P, W+2P, Cin)  f32   padded input image (halo included)
    # w_ref  : (21, 21*Cin, Cpad)    bf16  conv weight, (kw, cin) flattened, Cout zero-padded
    # b_ref  : (1, Cpad)             f32   conv bias   (zero-padded)
    # g_ref  : (1, Cpad)             f32   RMSNorm gain (zero-padded)
    # o_ref  : (1, H*W, Cpad)        f32   fused output (lane-dense)
    # acc_ref: (H*W, Cpad)           f32   VMEM accumulator
    Cin = x_ref.shape[-1]
    acc_ref[...] = jnp.zeros_like(acc_ref)

    def kh_body(kh, carry):
        # 21 kw-shifted windows of the kh-th row band, concatenated along the
        # channel axis -> an im2col slab that never touches HBM.
        cols = [x_ref[0, pl.ds(kh, H), kw:kw + W, :] for kw in range(KSIZE)]
        patch = jnp.concatenate(cols, axis=-1)                 # (H, W, 21*Cin)
        patch = patch.reshape(H * W, KSIZE * Cin)
        acc_ref[...] += jnp.dot(patch.astype(jnp.bfloat16), w_ref[kh],
                                preferred_element_type=jnp.float32)
        return carry

    lax.fori_loop(0, KSIZE, kh_body, 0)

    # Epilogue: bias -> RMSNorm(channel) -> SiLU.  Dropout(p=0) == identity.
    y = acc_ref[...] + b_ref[...]
    ss = jnp.sum(y * y, axis=-1, keepdims=True)                # padded lanes are 0
    y = y * lax.rsqrt(jnp.maximum(ss, 1e-24))                  # == x / max(||x||, 1e-12)
    y = y * (g_ref[...] * scale)
    y = y * jax.nn.sigmoid(y)                                  # SiLU
    o_ref[0] = y.astype(o_ref.dtype)


@jax.jit
def block_forward(x_nchw, w_hwio, bias, gain):
    """Forward pass of Block. x_nchw: (N, Cin, H, W) -> (N, Cout, H, W)."""
    N, Cin, H, W = x_nchw.shape
    Kh, Kw, _, Cout = w_hwio.shape
    assert (Kh, Kw) == (KSIZE, KSIZE)
    Hp, Wp = H + 2 * PAD, W + 2 * PAD
    HW = H * W
    CPAD = ((Cout + LANE - 1) // LANE) * LANE                  # lane-dense N dim (128)
    scale = float(math.sqrt(Cout))

    # --- cheap host glue (no 441x patch materialization) ---
    x = jnp.transpose(x_nchw, (0, 2, 3, 1))                    # NHWC (one small pass)
    xp = jnp.pad(x, ((0, 0), (PAD, PAD), (PAD, PAD), (0, 0)))  # (N, Hp, Wp, Cin) f32
    w = jnp.pad(w_hwio, ((0, 0), (0, 0), (0, 0), (0, CPAD - Cout)))
    w = w.reshape(KSIZE, KSIZE * Cin, CPAD).astype(jnp.bfloat16)
    b = jnp.pad(bias, (0, CPAD - Cout)).reshape(1, CPAD).astype(jnp.float32)
    g = jnp.pad(gain, (0, CPAD - Cout)).reshape(1, CPAD).astype(jnp.float32)

    # TODO(synk): for images too large for VMEM, tile H into row bands with
    # manual halo DMA (pltpu.make_async_copy) instead of one image per step.
    out = pl.pallas_call(
        partial(_block_kernel, H=H, W=W, scale=scale),
        out_shape=jax.ShapeDtypeStruct((N, HW, CPAD), jnp.float32),
        grid_spec=pltpu.PrefetchScalarGridSpec(
            num_scalar_prefetch=0,
            grid=(N,),
            in_specs=[
                pl.BlockSpec((1, Hp, Wp, Cin), lambda n: (n, 0, 0, 0)),
                pl.BlockSpec((KSIZE, KSIZE * Cin, CPAD), lambda n: (0, 0, 0)),
                pl.BlockSpec((1, CPAD), lambda n: (0, 0)),
                pl.BlockSpec((1, CPAD), lambda n: (0, 0)),
            ],
            out_specs=pl.BlockSpec((1, HW, CPAD), lambda n: (n, 0, 0)),
            scratch_shapes=[pltpu.VMEM((HW, CPAD), jnp.float32)],
        ),
        compiler_params=pltpu.CompilerParams(
            dimension_semantics=("parallel",),
            vmem_limit_bytes=32 * 1024 * 1024,
        ),
    )(xp, w, b, g)

    out = out[:, :, :Cout].reshape(N, H, W, Cout)
    return jnp.transpose(out, (0, 3, 1, 2))                    # back to NCHW


def _reference(x_nchw, w_hwio, bias, gain):
    """Pure-JAX reference of the Block forward with the conv evaluated in the
    same bf16 x bf16 -> f32 precision the kernel feeds the MXU."""
    Cout = w_hwio.shape[-1]
    y = lax.conv_general_dilated(
        x_nchw.astype(jnp.bfloat16),
        jnp.transpose(w_hwio, (3, 2, 0, 1)).astype(jnp.bfloat16),  # OIHW
        window_strides=(1, 1), padding=((PAD, PAD), (PAD, PAD)),
        dimension_numbers=("NCHW", "OIHW", "NCHW"),
        preferred_element_type=jnp.float32)
    y = y + bias.reshape(1, -1, 1, 1)
    norm = jnp.sqrt(jnp.sum(y * y, axis=1, keepdims=True))
    y = y / jnp.maximum(norm, 1e-12)
    y = y * gain.reshape(1, -1, 1, 1) * math.sqrt(Cout)
    return y * jax.nn.sigmoid(y)


if __name__ == "__main__":
    # Small shapes consistent with Block(dim=4, dim_out=8) on 16x16 images.
    N, dim, dim_out, H, W = 2, 4, 8, 16, 16

    key = jax.random.PRNGKey(0)
    kx, kw, kb = jax.random.split(key, 3)

    x = jax.random.normal(kx, (N, dim, H, W), dtype=jnp.float32)

    # Deterministic PyTorch-style Conv2d init (uniform(-k, k), k = 1/sqrt(fan_in)).
    fan_in = dim * KSIZE * KSIZE
    bound = 1.0 / math.sqrt(fan_in)
    w_hwio = jax.random.uniform(kw, (KSIZE, KSIZE, dim, dim_out),
                                minval=-bound, maxval=bound, dtype=jnp.float32)
    bias = jax.random.uniform(kb, (dim_out,), minval=-bound, maxval=bound,
                              dtype=jnp.float32)
    gain = jnp.ones((dim_out,), dtype=jnp.float32)   # RMSNorm.g init = ones

    y = jax.block_until_ready(block_forward(x, w_hwio, bias, gain))
    y_ref = jax.block_until_ready(_reference(x, w_hwio, bias, gain))

    assert y.shape == (N, dim_out, H, W)
    assert jnp.allclose(y, y_ref, atol=1e-3, rtol=1e-3), "mismatch vs reference"
    print("KERNEL_OK")
</pallas_src>

<mosaic_0001>
module attributes {stable_mosaic.version = 11 : i64} {
  func.func @_block_kernel(%arg0: i32, %arg1: memref<1x36x36x4xf32, #tpu.memory_space<vmem>>, %arg2: memref<21x84x128xbf16, #tpu.memory_space<vmem>>, %arg3: memref<1x128xf32, #tpu.memory_space<vmem>>, %arg4: memref<1x128xf32, #tpu.memory_space<vmem>>, %arg5: memref<1x256x128xf32, #tpu.memory_space<vmem>>, %arg6: memref<256x128xf32, #tpu.memory_space<vmem>>) attributes {dimension_semantics = [#tpu.dimension_semantics<parallel>], iteration_bounds = array<i64: 2>, scalar_prefetch = 0 : i64, scratch_operands = 1 : i64, tpu.core_type = #tpu.core_type<tc>, window_params = [{transform_indices = @transform_0, window_bounds = array<i64: 1, 36, 36, 4>}, {pipeline_mode = #tpu.pipeline_mode<synchronous>, transform_indices = @transform_1, window_bounds = array<i64: 21, 84, 128>}, {pipeline_mode = #tpu.pipeline_mode<synchronous>, transform_indices = @transform_2, window_bounds = array<i64: 1, 128>}, {pipeline_mode = #tpu.pipeline_mode<synchronous>, transform_indices = @transform_3, window_bounds = array<i64: 1, 128>}, {transform_indices = @transform_4, window_bounds = array<i64: 1, 256, 128>}]} {
    %cst = arith.constant 0.000000e+00 : f32
    %0 = vector.broadcast %cst : f32 to vector<256x128xf32>
    %c0 = arith.constant 0 : index
    %c0_0 = arith.constant 0 : index
    %1 = vector.load %arg6[%c0, %c0_0] : memref<256x128xf32, #tpu.memory_space<vmem>>, vector<256x128xf32>
    tpu.vector_store %arg6[%c0, %c0_0], %0 {strides = array<i32>} : memref<256x128xf32, #tpu.memory_space<vmem>>, vector<256x128xf32>,
    %c0_i32 = arith.constant 0 : i32
    %c21_i32 = arith.constant 21 : i32
    %2 = arith.addi %c0_i32, %c21_i32 : i32
    %c1_i32 = arith.constant 1 : i32
    scf.for %arg7 = %c0_i32 to %2 step %c1_i32  : i32 {
      %c0_15 = arith.constant 0 : index
      %29 = arith.index_cast %arg7 : i32 to index
      %c0_16 = arith.constant 0 : index
      %c0_17 = arith.constant 0 : index
      %30 = vector.load %arg1[%c0_15, %29, %c0_16, %c0_17] : memref<1x36x36x4xf32, #tpu.memory_space<vmem>>, vector<1x16x16x4xf32>
      %31 = vector.shape_cast %30 : vector<1x16x16x4xf32> to vector<16x16x4xf32>
      %c0_18 = arith.constant 0 : index
      %32 = arith.index_cast %arg7 : i32 to index
      %c1 = arith.constant 1 : index
      %c0_19 = arith.constant 0 : index
      %33 = vector.load %arg1[%c0_18, %32, %c1, %c0_19] : memref<1x36x36x4xf32, #tpu.memory_space<vmem>>, vector<1x16x16x4xf32>
      %34 = vector.shape_cast %33 : vector<1x16x16x4xf32> to vector<16x16x4xf32>
      %c0_20 = arith.constant 0 : index
      %35 = arith.index_cast %arg7 : i32 to index
      %c2 = arith.constant 2 : index
      %c0_21 = arith.constant 0 : index
      %36 = vector.load %arg1[%c0_20, %35, %c2, %c0_21] : memref<1x36x36x4xf32, #tpu.memory_space<vmem>>, vector<1x16x16x4xf32>
      %37 = vector.shape_cast %36 : vector<1x16x16x4xf32> to vector<16x16x4xf32>
      %c0_22 = arith.constant 0 : index
      %38 = arith.index_cast %arg7 : i32 to index
      %c3 = arith.constant 3 : index
      %c0_23 = arith.constant 0 : index
      %39 = vector.load %arg1[%c0_22, %38, %c3, %c0_23] : memref<1x36x36x4xf32, #tpu.memory_space<vmem>>, vector<1x16x16x4xf32>
      %40 = vector.shape_cast %39 : vector<1x16x16x4xf32> to vector<16x16x4xf32>
      %c0_24 = arith.constant 0 : index
      %41 = arith.index_cast %arg7 : i32 to index
      %c4 = arith.constant 4 : index
      %c0_25 = arith.constant 0 : index
      %42 = vector.load %arg1[%c0_24, %41, %c4, %c0_25] : memref<1x36x36x4xf32, #tpu.memory_space<vmem>>, vector<1x16x16x4xf32>
      %43 = vector.shape_cast %42 : vector<1x16x16x4xf32> to vector<16x16x4xf32>
      %c0_26 = arith.constant 0 : index
      %44 = arith.index_cast %arg7 : i32 to index
      %c5 = arith.constant 5 : index
      %c0_27 = arith.constant 0 : index
      %45 = vector.load %arg1[%c0_26, %44, %c5, %c0_27] : memref<1x36x36x4xf32, #tpu.memory_space<vmem>>, vector<1x16x16x4xf32>
      %46 = vector.shape_cast %45 : vector<1x16x16x4xf32> to vector<16x16x4xf32>
      %c0_28 = arith.constant 0 : index
      %47 = arith.index_cast %arg7 : i32 to index
      %c6 = arith.constant 6 : index
      %c0_29 = arith.constant 0 : index
      %48 = vector.load %arg1[%c0_28, %47, %c6, %c0_29] : memref<1x36x36x4xf32, #tpu.memory_space<vmem>>, vector<1x16x16x4xf32>
      %49 = vector.shape_cast %48 : vector<1x16x16x4xf32> to vector<16x16x4xf32>
      %c0_30 = arith.constant 0 : index
      %50 = arith.index_cast %arg7 : i32 to index
      %c7 = arith.constant 7 : index
      %c0_31 = arith.constant 0 : index
      %51 = vector.load %arg1[%c0_30, %50, %c7, %c0_31] : memref<1x36x36x4xf32, #tpu.memory_space<vmem>>, vector<1x16x16x4xf32>
      %52 = vector.shape_cast %51 : vector<1x16x16x4xf32> to vector<16x16x4xf32>
      %c0_32 = arith.constant 0 : index
      %53 = arith.index_cast %arg7 : i32 to index
      %c8 = arith.constant 8 : index
      %c0_33 = arith.constant 0 : index
      %54 = vector.load %arg1[%c0_32, %53, %c8, %c0_33] : memref<1x36x36x4xf32, #tpu.memory_space<vmem>>, vector<1x16x16x4xf32>
      %55 = vector.shape_cast %54 : vector<1x16x16x4xf32> to vector<16x16x4xf32>
      %c0_34 = arith.constant 0 : index
      %56 = arith.index_cast %arg7 : i32 to index
      %c9 = arith.constant 9 : index
      %c0_35 = arith.constant 0 : index
      %57 = vector.load %arg1[%c0_34, %56, %c9, %c0_35] : memref<1x36x36x4xf32, #tpu.memory_space<vmem>>, vector<1x16x16x4xf32>
      %58 = vector.shape_cast %57 : vector<1x16x16x4xf32> to vector<16x16x4xf32>
      %c0_36 = arith.constant 0 : index
      %59 = arith.index_cast %arg7 : i32 to index
      %c10 = arith.constant 10 : index
      %c0_37 = arith.constant 0 : index
      %60 = vector.load %arg1[%c0_36, %59, %c10, %c0_37] : memref<1x36x36x4xf32, #tpu.memory_space<vmem>>, vector<1x16x16x4xf32>
      %61 = vector.shape_cast %60 : vector<1x16x16x4xf32> to vector<16x16x4xf32>
      %c0_38 = arith.constant 0 : index
      %62 = arith.index_cast %arg7 : i32 to index
      %c11 = arith.constant 11 : index
      %c0_39 = arith.constant 0 : index
      %63 = vector.load %arg1[%c0_38, %62, %c11, %c0_39] : memref<1x36x36x4xf32, #tpu.memory_space<vmem>>, vector<1x16x16x4xf32>
      %64 = vector.shape_cast %63 : vector<1x16x16x4xf32> to vector<16x16x4xf32>
      %c0_40 = arith.constant 0 : index
      %65 = arith.index_cast %arg7 : i32 to index
      %c12 = arith.constant 12 : index
      %c0_41 = arith.constant 0 : index
      %66 = vector.load %arg1[%c0_40, %65, %c12, %c0_41] : memref<1x36x36x4xf32, #tpu.memory_space<vmem>>, vector<1x16x16x4xf32>
      %67 = vector.shape_cast %66 : vector<1x16x16x4xf32> to vector<16x16x4xf32>
      %c0_42 = arith.constant 0 : index
      %68 = arith.index_cast %arg7 : i32 to index
      %c13 = arith.constant 13 : index
      %c0_43 = arith.constant 0 : index
      %69 = vector.load %arg1[%c0_42, %68, %c13, %c0_43] : memref<1x36x36x4xf32, #tpu.memory_space<vmem>>, vector<1x16x16x4xf32>
      %70 = vector.shape_cast %69 : vector<1x16x16x4xf32> to vector<16x16x4xf32>
      %c0_44 = arith.constant 0 : index
      %71 = arith.index_cast %arg7 : i32 to index
      %c14 = arith.constant 14 : index
      %c0_45 = arith.constant 0 : index
      %72 = vector.load %arg1[%c0_44, %71, %c14, %c0_45] : memref<1x36x36x4xf32, #tpu.memory_space<vmem>>, vector<1x16x16x4xf32>
      %73 = vector.shape_cast %72 : vector<1x16x16x4xf32> to vector<16x16x4xf32>
      %c0_46 = arith.constant 0 : index
      %74 = arith.index_cast %arg7 : i32 to index
      %c15 = arith.constant 15 : index
      %c0_47 = arith.constant 0 : index
      %75 = vector.load %arg1[%c0_46, %74, %c15, %c0_47] : memref<1x36x36x4xf32, #tpu.memory_space<vmem>>, vector<1x16x16x4xf32>
      %76 = vector.shape_cast %75 : vector<1x16x16x4xf32> to vector<16x16x4xf32>
      %c0_48 = arith.constant 0 : index
      %77 = arith.index_cast %arg7 : i32 to index
      %c16 = arith.constant 16 : index
      %c0_49 = arith.constant 0 : index
      %78 = vector.load %arg1[%c0_48, %77, %c16, %c0_49] : memref<1x36x36x4xf32, #tpu.memory_space<vmem>>, vector<1x16x16x4xf32>
      %79 = vector.shape_cast %78 : vector<1x16x16x4xf32> to vector<16x16x4xf32>
      %c0_50 = arith.constant 0 : index
      %80 = arith.index_cast %arg7 : i32 to index
      %c17 = arith.constant 17 : index
      %c0_51 = arith.constant 0 : index
      %81 = vector.load %arg1[%c0_50, %80, %c17, %c0_51] : memref<1x36x36x4xf32, #tpu.memory_space<vmem>>, vector<1x16x16x4xf32>
      %82 = vector.shape_cast %81 : vector<1x16x16x4xf32> to vector<16x16x4xf32>
      %c0_52 = arith.constant 0 : index
      %83 = arith.index_cast %arg7 : i32 to index
      %c18 = arith.constant 18 : index
      %c0_53 = arith.constant 0 : index
      %84 = vector.load %arg1[%c0_52, %83, %c18, %c0_53] : memref<1x36x36x4xf32, #tpu.memory_space<vmem>>, vector<1x16x16x4xf32>
      %85 = vector.shape_cast %84 : vector<1x16x16x4xf32> to vector<16x16x4xf32>
      %c0_54 = arith.constant 0 : index
      %86 = arith.index_cast %arg7 : i32 to index
      %c19 = arith.constant 19 : index
      %c0_55 = arith.constant 0 : index
      %87 = vector.load %arg1[%c0_54, %86, %c19, %c0_55] : memref<1x36x36x4xf32, #tpu.memory_space<vmem>>, vector<1x16x16x4xf32>
      %88 = vector.shape_cast %87 : vector<1x16x16x4xf32> to vector<16x16x4xf32>
      %c0_56 = arith.constant 0 : index
      %89 = arith.index_cast %arg7 : i32 to index
      %c20 = arith.constant 20 : index
      %c0_57 = arith.constant 0 : index
      %90 = vector.load %arg1[%c0_56, %89, %c20, %c0_57] : memref<1x36x36x4xf32, #tpu.memory_space<vmem>>, vector<1x16x16x4xf32>
      %91 = vector.shape_cast %90 : vector<1x16x16x4xf32> to vector<16x16x4xf32>
      %92 = tpu.concatenate %31, %34, %37, %40, %43, %46, %49, %52, %55, %58, %61, %64, %67, %70, %73, %76 in 2 : vector<16x16x4xf32>, vector<16x16x4xf32>, vector<16x16x4xf32>, vector<16x16x4xf32>, vector<16x16x4xf32>, vector<16x16x4xf32>, vector<16x16x4xf32>, vector<16x16x4xf32>, vector<16x16x4xf32>, vector<16x16x4xf32>, vector<16x16x4xf32>, vector<16x16x4xf32>, vector<16x16x4xf32>, vector<16x16x4xf32>, vector<16x16x4xf32>, vector<16x16x4xf32> -> vector<16x16x64xf32>
      %93 = tpu.concatenate %79, %82, %85, %88, %91 in 2 : vector<16x16x4xf32>, vector<16x16x4xf32>, vector<16x16x4xf32>, vector<16x16x4xf32>, vector<16x16x4xf32> -> vector<16x16x20xf32>
      %94 = tpu.concatenate %92, %93 in 2 : vector<16x16x64xf32>, vector<16x16x20xf32> -> vector<16x16x84xf32>
      %95 = vector.shape_cast %94 : vector<16x16x84xf32> to vector<256x84xf32>
      %c0_58 = arith.constant 0 : index
      %c0_59 = arith.constant 0 : index
      %96 = vector.load %arg6[%c0_58, %c0_59] : memref<256x128xf32, #tpu.memory_space<vmem>>, vector<256x128xf32>
      %97 = arith.truncf %95 : vector<256x84xf32> to vector<256x84xbf16>
      %98 = arith.index_cast %arg7 : i32 to index
      %c0_60 = arith.constant 0 : index
      %c0_61 = arith.constant 0 : index
      %99 = vector.load %arg2[%98, %c0_60, %c0_61] : memref<21x84x128xbf16, #tpu.memory_space<vmem>>, vector<1x84x128xbf16>
      %100 = vector.shape_cast %99 : vector<1x84x128xbf16> to vector<84x128xbf16>
      %cst_62 = arith.constant dense<0.000000e+00> : vector<256x128xf32>
      %101 = tpu.matmul %97, %100, %cst_62 {dimension_numbers = #tpu.dot_dimension_numbers<[1], [0], [0], [1], [0, 0, 1, 1], [], []>} : vector<256x84xbf16>, vector<84x128xbf16>, vector<256x128xf32> -> vector<256x128xf32>
      %102 = arith.addf %96, %101 : vector<256x128xf32>
      %c0_63 = arith.constant 0 : index
      %c0_64 = arith.constant 0 : index
      %103 = vector.load %arg6[%c0_63, %c0_64] : memref<256x128xf32, #tpu.memory_space<vmem>>, vector<256x128xf32>
      tpu.vector_store %arg6[%c0_63, %c0_64], %102 {strides = array<i32>} : memref<256x128xf32, #tpu.memory_space<vmem>>, vector<256x128xf32>,
    }
    %c21_i32_1 = arith.constant 21 : i32
    %c0_2 = arith.constant 0 : index
    %c0_3 = arith.constant 0 : index
    %3 = vector.load %arg6[%c0_2, %c0_3] : memref<256x128xf32, #tpu.memory_space<vmem>>, vector<256x128xf32>
    %c0_4 = arith.constant 0 : index
    %c0_5 = arith.constant 0 : index
    %4 = vector.load %arg3[%c0_4, %c0_5] : memref<1x128xf32, #tpu.memory_space<vmem>>, vector<1x128xf32>
    %5 = vector.broadcast %4 : vector<1x128xf32> to vector<256x128xf32>
    %6 = arith.addf %3, %5 : vector<256x128xf32>
    %7 = arith.mulf %6, %6 : vector<256x128xf32>
    %cst_6 = arith.constant dense<0.000000e+00> : vector<256xf32>
    %8 = vector.multi_reduction <add>, %7, %cst_6 [1] : vector<256x128xf32> to vector<256xf32>
    %9 = vector.shape_cast %8 : vector<256xf32> to vector<256x1xf32>
    %cst_7 = arith.constant 1.000000e-24 : f32
    %10 = vector.broadcast %cst_7 : f32 to vector<256x1xf32>
    %11 = arith.maximumf %9, %10 : vector<256x1xf32>
    %12 = math.rsqrt %11 : vector<256x1xf32>
    %13 = vector.broadcast %12 : vector<256x1xf32> to vector<256x128xf32>
    %14 = arith.mulf %6, %13 : vector<256x128xf32>
    %c0_8 = arith.constant 0 : index
    %c0_9 = arith.constant 0 : index
    %15 = vector.load %arg4[%c0_8, %c0_9] : memref<1x128xf32, #tpu.memory_space<vmem>>, vector<1x128xf32>
    %cst_10 = arith.constant 2.82842708 : f32
    %16 = vector.broadcast %cst_10 : f32 to vector<1x128xf32>
    %17 = arith.mulf %15, %16 : vector<1x128xf32>
    %18 = vector.broadcast %17 : vector<1x128xf32> to vector<256x128xf32>
    %19 = arith.mulf %14, %18 : vector<256x128xf32>
    %20 = arith.negf %19 : vector<256x128xf32>
    %21 = math.exp %20 : vector<256x128xf32>
    %cst_11 = arith.constant 1.000000e+00 : f32
    %22 = vector.broadcast %cst_11 : f32 to vector<256x128xf32>
    %23 = arith.addf %22, %21 : vector<256x128xf32>
    %24 = arith.divf %22, %23 : vector<256x128xf32>
    %25 = arith.mulf %19, %24 : vector<256x128xf32>
    %c0_12 = arith.constant 0 : index
    %c0_13 = arith.constant 0 : index
    %c0_14 = arith.constant 0 : index
    %26 = vector.load %arg5[%c0_12, %c0_13, %c0_14] : memref<1x256x128xf32, #tpu.memory_space<vmem>>, vector<1x256x128xf32>
    %27 = vector.shape_cast %26 : vector<1x256x128xf32> to vector<256x128xf32>
    %28 = vector.shape_cast %25 : vector<256x128xf32> to vector<1x256x128xf32>
    tpu.vector_store %arg5[%c0_12, %c0_13, %c0_14], %28 {strides = array<i32>} : memref<1x256x128xf32, #tpu.memory_space<vmem>>, vector<1x256x128xf32>,
    return
  }
  func.func @transform_0(%arg0: i32) -> (i32, i32, i32, i32) {
    %c0_i32 = arith.constant 0 : i32
    %c0_i32_0 = arith.constant 0 : i32
    %c0_i32_1 = arith.constant 0 : i32
    %c0_i32_2 = arith.constant 0 : i32
    return %arg0, %c0_i32, %c0_i32_0, %c0_i32_1 : i32, i32, i32, i32
  }
  func.func @transform_1(%arg0: i32) -> (i32, i32, i32) {
    %c0_i32 = arith.constant 0 : i32
    %c0_i32_0 = arith.constant 0 : i32
    %c0_i32_1 = arith.constant 0 : i32
    %c0_i32_2 = arith.constant 0 : i32
    return %c0_i32, %c0_i32_0, %c0_i32_1 : i32, i32, i32
  }
  func.func @transform_2(%arg0: i32) -> (i32, i32) {
    %c0_i32 = arith.constant 0 : i32
    %c0_i32_0 = arith.constant 0 : i32
    %c0_i32_1 = arith.constant 0 : i32
    return %c0_i32, %c0_i32_0 : i32, i32
  }
  func.func @transform_3(%arg0: i32) -> (i32, i32) {
    %c0_i32 = arith.constant 0 : i32
    %c0_i32_0 = arith.constant 0 : i32
    %c0_i32_1 = arith.constant 0 : i32
    return %c0_i32, %c0_i32_0 : i32, i32
  }
  func.func @transform_4(%arg0: i32) -> (i32, i32, i32) {
    %c0_i32 = arith.constant 0 : i32
    %c0_i32_0 = arith.constant 0 : i32
    %c0_i32_1 = arith.constant 0 : i32
    return %arg0, %c0_i32, %c0_i32_0 : i32, i32, i32
  }
}

</mosaic_0001>

<llo_original>
// kernel: block_forward.1
$region0: #{block_forward.1}
  #allocation0 [shape = 'u32[]', space=smem, size = 0x4, offset = 0x4, fixed_abs, tag = 'smem constant byte address 0x4 - core index']
  #allocation1 [shape = 'u32[72,128]{1,0:T(1,128)}', space=vmem, size = 0x9000, scoped, tag = 'internal scratch']
  #allocation2 [shape = 'f32[256,128]{1,0:T(8,128)}', space=vmem, size = 0x20000, scoped, tag = 'scratch operand']
  %s0 = inlined_call_operand.vmem [shape: f32[2,36,36,4], index: 0, kind: input, shape index: {}]
  %s1 = inlined_call_operand.vmem [shape: bf16[21,84,128], index: 1, kind: input, shape index: {}]
  %s2 = inlined_call_operand.vmem [shape: f32[1,128], index: 2, kind: input, shape index: {}]
  %s3 = inlined_call_operand.vmem [shape: f32[1,128], index: 3, kind: input, shape index: {}]
  %s4 = inlined_call_operand.vmem [shape: f32[2,256,128], index: 4, kind: output, shape index: {}]
  %s5 = sld [smem:[#allocation0]]
  $region56: #{block_forward.1} parent=0
    _
  %s7 = ssub.s32 1, %s5
  %s8 = scalar_select 0, %s7, %s5
  loop: start=0, step=1, limit=4
  $region2: #{block_forward.1} parent=0 // loop_pre_header
    _
  $region3: #{block_forward.1} parent=0 // loop_header
    %s10 = sphi 0, %s14
    %p11 = scmp.ge.s32.totalorder %s10, 4
    %s20 = sphi 0, %s22
    %s23 = sphi 0, %s20
    %s24 = sphi 0, %s23
    %s40 = sphi 0, %s24
    %s44 = sphi 0, %s44
    %s46 = sphi 0, %s44
    %s47 = sphi 0, %s46
    %s61 = sphi 0, %s47
    %s65 = sphi 0, %s65
    %s67 = sphi 0, %s65
    %s68 = sphi 0, %s67
    %s82 = sphi 0, %s68
    %s86 = sphi 0, %s86
    %s88 = sphi 0, %s86
    %s89 = sphi 0, %s88
    %s103 = sphi 0, %s89
    %s109 = sphi 0, %s111
    %s112 = sphi 0, %s109
    %s113 = sphi 0, %s112
    %s129 = sphi 0, %s113
  $region4: #{block_forward.1} parent=0 // loop_header_branch
    %13 = sbr.rel (%p11) target = $region8
  $region5: #{block_forward.1} parent=0 // loop_body
    %s15 = ssub.s32 %s10, 1
    %s16 = ssub.s32 %s10, 2
    %s17 = sadd.s32 %s10, 1
    %s18 = ssub.s32 %s10, %s17
    %p19 = scmp.eq.s32.totalorder %s18, 0
    %s21 = sadd.s32 %s20, 1
    %s22 = scalar_select %p19, %s20, %s21
    %p25 = pneg %p19
    %p26 = scmp.eq.s32.totalorder %s10, 1
    %p27 = por %p25, %p26
    %p28 = scmp.ne.s32.totalorder %s20, %s23
    %p29 = scmp.eq.s32.totalorder %s10, 0
    %p30 = por %p28, %p29
    %p31 = scmp.ne.s32.totalorder %s20, %s23
    %p32 = scmp.eq.s32.totalorder %s15, 1
    %p33 = por %p31, %p32
    %p34 = scmp.ne.s32.totalorder %s23, %s24
    %p35 = scmp.eq.s32.totalorder %s15, 0
    %p36 = por %p34, %p35
    %p37 = scmp.ne.s32.totalorder %s23, %s24
    %p38 = scmp.eq.s32.totalorder %s16, 1
    %p39 = por %p37, %p38
    %p41 = scmp.ne.s32.totalorder %s24, %s40
    %p42 = scmp.eq.s32.totalorder %s16, 0
    %p43 = por %p41, %p42
    %s45 = sadd.s32 %s44, 1
    %p48 = scmp.eq.s32.totalorder %s10, 1
    %p49 = scmp.ne.s32.totalorder %s44, %s46
    %p50 = scmp.eq.s32.totalorder %s10, 0
    %p51 = por %p49, %p50
    %p52 = scmp.ne.s32.totalorder %s44, %s46
    %p53 = scmp.eq.s32.totalorder %s15, 1
    %p54 = por %p52, %p53
    %p55 = scmp.ne.s32.totalorder %s46, %s47
    %p56 = scmp.eq.s32.totalorder %s15, 0
    %p57 = por %p55, %p56
    %p58 = scmp.ne.s32.totalorder %s46, %s47
    %p59 = scmp.eq.s32.totalorder %s16, 1
    %p60 = por %p58, %p59
    %p62 = scmp.ne.s32.totalorder %s47, %s61
    %p63 = scmp.eq.s32.totalorder %s16, 0
    %p64 = por %p62, %p63
    %s66 = sadd.s32 %s65, 1
    %p69 = scmp.eq.s32.totalorder %s10, 1
    %p70 = scmp.ne.s32.totalorder %s65, %s67
    %p71 = scmp.eq.s32.totalorder %s10, 0
    %p72 = por %p70, %p71
    %p73 = scmp.ne.s32.totalorder %s65, %s67
    %p74 = scmp.eq.s32.totalorder %s15, 1
    %p75 = por %p73, %p74
    %p76 = scmp.ne.s32.totalorder %s67, %s68
    %p77 = scmp.eq.s32.totalorder %s15, 0
    %p78 = por %p76, %p77
    %p79 = scmp.ne.s32.totalorder %s67, %s68
    %p80 = scmp.eq.s32.totalorder %s16, 1
    %p81 = por %p79, %p80
    %p83 = scmp.ne.s32.totalorder %s68, %s82
    %p84 = scmp.eq.s32.totalorder %s16, 0
    %p85 = por %p83, %p84
    %s87 = sadd.s32 %s86, 1
    %p90 = scmp.eq.s32.totalorder %s10, 1
    %p91 = scmp.ne.s32.totalorder %s86, %s88
    %p92 = scmp.eq.s32.totalorder %s10, 0
    %p93 = por %p91, %p92
    %p94 = scmp.ne.s32.totalorder %s86, %s88
    %p95 = scmp.eq.s32.totalorder %s15, 1
    %p96 = por %p94, %p95
    %p97 = scmp.ne.s32.totalorder %s88, %s89
    %p98 = scmp.eq.s32.totalorder %s15, 0
    %p99 = por %p97, %p98
    %p100 = scmp.ne.s32.totalorder %s88, %s89
    %p101 = scmp.eq.s32.totalorder %s16, 1
    %p102 = por %p100, %p101
    %p104 = scmp.ne.s32.totalorder %s89, %s103
    %p105 = scmp.eq.s32.totalorder %s16, 0
    %p106 = por %p104, %p105
    %s107 = ssub.s32 %s10, %s17
    %p108 = scmp.eq.s32.totalorder %s107, 0
    %s110 = sadd.s32 %s109, 1
    %s111 = scalar_select %p108, %s109, %s110
    %p114 = pneg %p108
    %p115 = scmp.eq.s32.totalorder %s10, 1
    %p116 = por %p114, %p115
    %p117 = scmp.ne.s32.totalorder %s109, %s112
    %p118 = scmp.eq.s32.totalorder %s10, 0
    %p119 = por %p117, %p118
    %p120 = scmp.ne.s32.totalorder %s109, %s112
    %p121 = scmp.eq.s32.totalorder %s15, 1
    %p122 = por %p120, %p121
    %p123 = scmp.ne.s32.totalorder %s112, %s113
    %p124 = scmp.eq.s32.totalorder %s15, 0
    %p125 = por %p123, %p124
    %p126 = scmp.ne.s32.totalorder %s112, %s113
    %p127 = scmp.eq.s32.totalorder %s16, 1
    %p128 = por %p126, %p127
    %p130 = scmp.ne.s32.totalorder %s113, %s129
    %p131 = scmp.eq.s32.totalorder %s16, 0
    %p132 = por %p130, %p131
    %p133 = scmp.le.s32.totalorder 1, %s10
    %p134 = scmp.lt.s32.totalorder %s10, 3
    %p135 = pnand %p133, %p134
    %p136 = pneg %p135
    // Predicated region
    $region9: #{block_forward.1} parent=5 // pred_check
      _
    $region10: #{block_forward.1} parent=5 // pred_check_branch
      %138 = sbr.rel (%p135) target = $region12
    $region11: #{block_forward.1} parent=5 // pred_region
      %s139 = ssub.s32 %s10, 1
      // Predicated region
      $region13: #{block_forward.1} parent=11 // pred_check
        %p140 = pneg %p57
      $region14: #{block_forward.1} parent=11 // pred_check_branch
        %142 = sbr.rel (%p140) target = $region16
      $region15: #{block_forward.1} parent=11 // pred_region
        _
      $region16: #{block_forward.1} parent=11 // pred_fallthru
        _
      // Predicated region
      $region17: #{block_forward.1} parent=11 // pred_check
        %p143 = pneg %p78
      $region18: #{block_forward.1} parent=11 // pred_check_branch
        %145 = sbr.rel (%p143) target = $region20
      $region19: #{block_forward.1} parent=11 // pred_region
        _
      $region20: #{block_forward.1} parent=11 // pred_fallthru
        _
      // Predicated region
      $region21: #{block_forward.1} parent=11 // pred_check
        %p146 = pneg %p99
      $region22: #{block_forward.1} parent=11 // pred_check_branch
        %148 = sbr.rel (%p146) target = $region24
      $region23: #{block_forward.1} parent=11 // pred_region
        _
      $region24: #{block_forward.1} parent=11 // pred_fallthru
        _
    $region12: #{block_forward.1} parent=5 // pred_fallthru
      _
    %p149 = scmp.lt.s32.totalorder %s10, 2
    // Predicated region
    $region25: #{block_forward.1} parent=5 // pred_check
      %p150 = pneg %p149
    $region26: #{block_forward.1} parent=5 // pred_check_branch
      %152 = sbr.rel (%p150) target = $region28
    $region27: #{block_forward.1} parent=5 // pred_region
      // Predicated region
      $region29: #{block_forward.1} parent=27 // pred_check
        %p153 = pneg %p30
      $region30: #{block_forward.1} parent=27 // pred_check_branch
        %155 = sbr.rel (%p153) target = $region32
      $region31: #{block_forward.1} parent=27 // pred_region
        %p156 = scmp.lt.s32.totalorder %s10, 1
        %s157 = scalar_select %p156, %s10, 1
        %s158 = smul.addr %s157, 180
        %s159 = smul.addr %s158, 8
        %s160 = scalar_lea.vmem %s0, %s159
      $region32: #{block_forward.1} parent=27 // pred_fallthru
        _
    $region28: #{block_forward.1} parent=5 // pred_fallthru
      _
    %p161 = scmp.le.s32.totalorder 1, %s10
    %p162 = scmp.lt.s32.totalorder %s10, 3
    %p163 = pnand %p161, %p162
    %p164 = pneg %p163
    // Predicated region
    $region33: #{block_forward.1} parent=5 // pred_check
      _
    $region34: #{block_forward.1} parent=5 // pred_check_branch
      %166 = sbr.rel (%p163) target = $region36
    $region35: #{block_forward.1} parent=5 // pred_region
      %s167 = ssub.s32 %s10, 1
      %p168 = scmp.lt.s32.totalorder %s15, 1
      %s169 = scalar_select %p168, %s15, 1
      %s170 = smul.addr %s169, 180
      %s171 = smul.addr %s170, 8
      %s172 = scalar_lea.vmem %s0, %s171
      %p173 = pneg %p36
      %p174 = pneg %p33
      %p175 = pneg %p57
      %p176 = pneg %p54
      %p177 = pneg %p78
      %p178 = pneg %p75
      %p179 = pneg %p99
      %p180 = pneg %p96
      %p181 = pneg %p125
      %p182 = pneg %p122
      %p183 = scmp.lt.s32.totalorder %s15, 1
      %s184 = scalar_select %p183, %s15, 1
      %s185 = smul.addr %s184, 32
      %s186 = smul.addr %s185, 8
      %s187 = scalar_lea.vmem %s4, %s186
      %p188 = scmp.lt.s32.totalorder %s15, 1
      %s189 = scalar_select %p188, %s15, 1
      %s190 = smul.addr %s189, 180
      %s191 = smul.addr %s190, 8
      %s192 = scalar_lea.vmem %s0, %s191
      %p193 = scmp.lt.s32.totalorder %s15, 1
      %s194 = scalar_select %p193, %s15, 1
      %s195 = smul.addr %s194, 32
      %s196 = smul.addr %s195, 8
      %s197 = scalar_lea.vmem %s4, %s196
      %199 = vst [vmem:[#allocation2] sm:$0xff] 0.0
      %200 = vst [vmem:[#allocation2 + $0x8] sm:$0xff] 0.0
      %201 = vst [vmem:[#allocation2 + $0x10] sm:$0xff] 0.0
      %202 = vst [vmem:[#allocation2 + $0x18] sm:$0xff] 0.0
      %203 = vst [vmem:[#allocation2 + $0x20] sm:$0xff] 0.0
      %204 = vst [vmem:[#allocation2 + $0x28] sm:$0xff] 0.0
      %205 = vst [vmem:[#allocation2 + $0x30] sm:$0xff] 0.0
      %206 = vst [vmem:[#allocation2 + $0x38] sm:$0xff] 0.0
      %207 = vst [vmem:[#allocation2 + $0x40] sm:$0xff] 0.0
      %208 = vst [vmem:[#allocation2 + $0x48] sm:$0xff] 0.0
      %209 = vst [vmem:[#allocation2 + $0x50] sm:$0xff] 0.0
      %210 = vst [vmem:[#allocation2 + $0x58] sm:$0xff] 0.0
      %211 = vst [vmem:[#allocation2 + $0x60] sm:$0xff] 0.0
      %212 = vst [vmem:[#allocation2 + $0x68] sm:$0xff] 0.0
      %213 = vst [vmem:[#allocation2 + $0x70] sm:$0xff] 0.0
      %214 = vst [vmem:[#allocation2 + $0x78] sm:$0xff] 0.0
      %215 = vst [vmem:[#allocation2 + $0x80] sm:$0xff] 0.0
      %216 = vst [vmem:[#allocation2 + $0x88] sm:$0xff] 0.0
      %217 = vst [vmem:[#allocation2 + $0x90] sm:$0xff] 0.0
      %218 = vst [vmem:[#allocation2 + $0x98] sm:$0xff] 0.0
      %219 = vst [vmem:[#allocation2 + $0xa0] sm:$0xff] 0.0
      %220 = vst [vmem:[#allocation2 + $0xa8] sm:$0xff] 0.0
      %221 = vst [vmem:[#allocation2 + $0xb0] sm:$0xff] 0.0
      %222 = vst [vmem:[#allocation2 + $0xb8] sm:$0xff] 0.0
      %223 = vst [vmem:[#allocation2 + $0xc0] sm:$0xff] 0.0
      %224 = vst [vmem:[#allocation2 + $0xc8] sm:$0xff] 0.0
      %225 = vst [vmem:[#allocation2 + $0xd0] sm:$0xff] 0.0
      %226 = vst [vmem:[#allocation2 + $0xd8] sm:$0xff] 0.0
      %227 = vst [vmem:[#allocation2 + $0xe0] sm:$0xff] 0.0
      %228 = vst [vmem:[#allocation2 + $0xe8] sm:$0xff] 0.0
      %229 = vst [vmem:[#allocation2 + $0xf0] sm:$0xff] 0.0
      %230 = vst [vmem:[#allocation2 + $0xf8] sm:$0xff] 0.0
      loop: start=0, step=1, limit=21
      $region37: #{block_forward.1} parent=35 // loop_pre_header
        _
      $region38: #{block_forward.1} parent=35 // loop_header
        %s232 = sphi 0, %s236
        %p233 = scmp.ge.s32.totalorder %s232, 21
      $region39: #{block_forward.1} parent=35 // loop_header_branch
        %235 = sbr.rel (%p233) target = $region43
      $region40: #{block_forward.1} parent=35 // loop_body
        %s237 = smul.u32 %s232, 40
        %s238 = scalar_lea.vmem %s192, %s237
        %v239 = vld [vmem:[%s238] sm:$0xff]
        %v240 = vld [vmem:[%s238 + $0x8] sm:$0xff]
        %v241 = vld [vmem:[%s238 + $0x28] sm:$0xff]
        %v242 = vld [vmem:[%s238 + $0x30] sm:$0xff]
        %v243 = vld [vmem:[%s238 + $0x50] sm:$0xff]
        %v244 = vld [vmem:[%s238 + $0x58] sm:$0xff]
        %v245 = vld [vmem:[%s238 + $0x78] sm:$0xff]
        %v246 = vld [vmem:[%s238 + $0x80] sm:$0xff]
        %v247 = vld [vmem:[%s238 + $0xa0] sm:$0xff]
        %v248 = vld [vmem:[%s238 + $0xa8] sm:$0xff]
        %v249 = vld [vmem:[%s238 + $0xc8] sm:$0xff]
        %v250 = vld [vmem:[%s238 + $0xd0] sm:$0xff]
        %v251 = vld [vmem:[%s238 + $0xf0] sm:$0xff]
        %v252 = vld [vmem:[%s238 + $0xf8] sm:$0xff]
        %v253 = vld [vmem:[%s238 + $0x118] sm:$0xff]
        %v254 = vld [vmem:[%s238 + $0x120] sm:$0xff]
        %v255 = vld [vmem:[%s238 + $0x140] sm:$0xff]
        %v256 = vld [vmem:[%s238 + $0x148] sm:$0xff]
        %v257 = vld [vmem:[%s238 + $0x168] sm:$0xff]
        %v258 = vld [vmem:[%s238 + $0x170] sm:$0xff]
        %v259 = vld [vmem:[%s238 + $0x190] sm:$0xff]
        %v260 = vld [vmem:[%s238 + $0x198] sm:$0xff]
        %v261 = vld [vmem:[%s238 + $0x1b8] sm:$0xff]
        %v262 = vld [vmem:[%s238 + $0x1c0] sm:$0xff]
        %v263 = vld [vmem:[%s238 + $0x1e0] sm:$0xff]
        %v264 = vld [vmem:[%s238 + $0x1e8] sm:$0xff]
        %v265 = vld [vmem:[%s238 + $0x208] sm:$0xff]
        %v266 = vld [vmem:[%s238 + $0x210] sm:$0xff]
        %v267 = vld [vmem:[%s238 + $0x230] sm:$0xff]
        %v268 = vld [vmem:[%s238 + $0x238] sm:$0xff]
        %v269 = vld [vmem:[%s238 + $0x258] sm:$0xff]
        %v270 = vld [vmem:[%s238 + $0x260] sm:$0xff]
        %v271 = vld [vmem:[%s238 + $0x1] sm:$0xff]
        %v272 = vld [vmem:[%s238 + $0x9] sm:$0xff]
        %v273 = vld [vmem:[%s238 + $0x29] sm:$0xff]
        %v274 = vld [vmem:[%s238 + $0x31] sm:$0xff]
        %v275 = vld [vmem:[%s238 + $0x51] sm:$0xff]
        %v276 = vld [vmem:[%s238 + $0x59] sm:$0xff]
        %v277 = vld [vmem:[%s238 + $0x79] sm:$0xff]
        %v278 = vld [vmem:[%s238 + $0x81] sm:$0xff]
        %v279 = vld [vmem:[%s238 + $0xa1] sm:$0xff]
        %v280 = vld [vmem:[%s238 + $0xa9] sm:$0xff]
        %v281 = vld [vmem:[%s238 + $0xc9] sm:$0xff]
        %v282 = vld [vmem:[%s238 + $0xd1] sm:$0xff]
        %v283 = vld [vmem:[%s238 + $0xf1] sm:$0xff]
        %v284 = vld [vmem:[%s238 + $0xf9] sm:$0xff]
        %v285 = vld [vmem:[%s238 + $0x119] sm:$0xff]
        %v286 = vld [vmem:[%s238 + $0x121] sm:$0xff]
        %v287 = vld [vmem:[%s238 + $0x141] sm:$0xff]
        %v288 = vld [vmem:[%s238 + $0x149] sm:$0xff]
        %v289 = vld [vmem:[%s238 + $0x169] sm:$0xff]
        %v290 = vld [vmem:[%s238 + $0x171] sm:$0xff]
        %v291 = vld [vmem:[%s238 + $0x191] sm:$0xff]
        %v292 = vld [vmem:[%s238 + $0x199] sm:$0xff]
        %v293 = vld [vmem:[%s238 + $0x1b9] sm:$0xff]
        %v294 = vld [vmem:[%s238 + $0x1c1] sm:$0xff]
        %v295 = vld [vmem:[%s238 + $0x1e1] sm:$0xff]
        %v296 = vld [vmem:[%s238 + $0x1e9] sm:$0xff]
        %v297 = vld [vmem:[%s238 + $0x209] sm:$0xff]
        %v298 = vld [vmem:[%s238 + $0x211] sm:$0xff]
        %v299 = vld [vmem:[%s238 + $0x231] sm:$0xff]
        %v300 = vld [vmem:[%s238 + $0x239] sm:$0xff]
        %v301 = vld [vmem:[%s238 + $0x259] sm:$0xff]
        %v302 = vld [vmem:[%s238 + $0x261] sm:$0xff]
        %v303 = vld [vmem:[%s238 + $0x2] sm:$0xff]
        %v304 = vld [vmem:[%s238 + $0xa] sm:$0xff]
        %v305 = vld [vmem:[%s238 + $0x2a] sm:$0xff]
        %v306 = vld [vmem:[%s238 + $0x32] sm:$0xff]
        %v307 = vld [vmem:[%s238 + $0x52] sm:$0xff]
        %v308 = vld [vmem:[%s238 + $0x5a] sm:$0xff]
        %v309 = vld [vmem:[%s238 + $0x7a] sm:$0xff]
        %v310 = vld [vmem:[%s238 + $0x82] sm:$0xff]
        %v311 = vld [vmem:[%s238 + $0xa2] sm:$0xff]
        %v312 = vld [vmem:[%s238 + $0xaa] sm:$0xff]
        %v313 = vld [vmem:[%s238 + $0xca] sm:$0xff]
        %v314 = vld [vmem:[%s238 + $0xd2] sm:$0xff]
        %v315 = vld [vmem:[%s238 + $0xf2] sm:$0xff]
        %v316 = vld [vmem:[%s238 + $0xfa] sm:$0xff]
        %v317 = vld [vmem:[%s238 + $0x11a] sm:$0xff]
        %v318 = vld [vmem:[%s238 + $0x122] sm:$0xff]
        %v319 = vld [vmem:[%s238 + $0x142] sm:$0xff]
        %v320 = vld [vmem:[%s238 + $0x14a] sm:$0xff]
        %v321 = vld [vmem:[%s238 + $0x16a] sm:$0xff]
        %v322 = vld [vmem:[%s238 + $0x172] sm:$0xff]
        %v323 = vld [vmem:[%s238 + $0x192] sm:$0xff]
        %v324 = vld [vmem:[%s238 + $0x19a] sm:$0xff]
        %v325 = vld [vmem:[%s238 + $0x1ba] sm:$0xff]
        %v326 = vld [vmem:[%s238 + $0x1c2] sm:$0xff]
        %v327 = vld [vmem:[%s238 + $0x1e2] sm:$0xff]
        %v328 = vld [vmem:[%s238 + $0x1ea] sm:$0xff]
        %v329 = vld [vmem:[%s238 + $0x20a] sm:$0xff]
        %v330 = vld [vmem:[%s238 + $0x212] sm:$0xff]
        %v331 = vld [vmem:[%s238 + $0x232] sm:$0xff]
        %v332 = vld [vmem:[%s238 + $0x23a] sm:$0xff]
        %v333 = vld [vmem:[%s238 + $0x25a] sm:$0xff]
        %v334 = vld [vmem:[%s238 + $0x262] sm:$0xff]
        %v335 = vld [vmem:[%s238 + $0x3] sm:$0xff]
        %v336 = vld [vmem:[%s238 + $0xb] sm:$0xff]
        %v337 = vld [vmem:[%s238 + $0x2b] sm:$0xff]
        %v338 = vld [vmem:[%s238 + $0x33] sm:$0xff]
        %v339 = vld [vmem:[%s238 + $0x53] sm:$0xff]
        %v340 = vld [vmem:[%s238 + $0x5b] sm:$0xff]
        %v341 = vld [vmem:[%s238 + $0x7b] sm:$0xff]
        %v342 = vld [vmem:[%s238 + $0x83] sm:$0xff]
        %v343 = vld [vmem:[%s238 + $0xa3] sm:$0xff]
        %v344 = vld [vmem:[%s238 + $0xab] sm:$0xff]
        %v345 = vld [vmem:[%s238 + $0xcb] sm:$0xff]
        %v346 = vld [vmem:[%s238 + $0xd3] sm:$0xff]
        %v347 = vld [vmem:[%s238 + $0xf3] sm:$0xff]
        %v348 = vld [vmem:[%s238 + $0xfb] sm:$0xff]
        %v349 = vld [vmem:[%s238 + $0x11b] sm:$0xff]
        %v350 = vld [vmem:[%s238 + $0x123] sm:$0xff]
        %v351 = vld [vmem:[%s238 + $0x143] sm:$0xff]
        %v352 = vld [vmem:[%s238 + $0x14b] sm:$0xff]
        %v353 = vld [vmem:[%s238 + $0x16b] sm:$0xff]
        %v354 = vld [vmem:[%s238 + $0x173] sm:$0xff]
        %v355 = vld [vmem:[%s238 + $0x193] sm:$0xff]
        %v356 = vld [vmem:[%s238 + $0x19b] sm:$0xff]
        %v357 = vld [vmem:[%s238 + $0x1bb] sm:$0xff]
        %v358 = vld [vmem:[%s238 + $0x1c3] sm:$0xff]
        %v359 = vld [vmem:[%s238 + $0x1e3] sm:$0xff]
        %v360 = vld [vmem:[%s238 + $0x1eb] sm:$0xff]
        %v361 = vld [vmem:[%s238 + $0x20b] sm:$0xff]
        %v362 = vld [vmem:[%s238 + $0x213] sm:$0xff]
        %v363 = vld [vmem:[%s238 + $0x233] sm:$0xff]
        %v364 = vld [vmem:[%s238 + $0x23b] sm:$0xff]
        %v365 = vld [vmem:[%s238 + $0x25b] sm:$0xff]
        %v366 = vld [vmem:[%s238 + $0x263] sm:$0xff]
        %v367 = vld [vmem:[%s238 + $0x4] sm:$0xff]
        %v368 = vld [vmem:[%s238 + $0xc] sm:$0xff]
        %v369 = vld [vmem:[%s238 + $0x2c] sm:$0xff]
        %v370 = vld [vmem:[%s238 + $0x34] sm:$0xff]
        %v371 = vld [vmem:[%s238 + $0x54] sm:$0xff]
        %v372 = vld [vmem:[%s238 + $0x5c] sm:$0xff]
        %v373 = vld [vmem:[%s238 + $0x7c] sm:$0xff]
        %v374 = vld [vmem:[%s238 + $0x84] sm:$0xff]
        %v375 = vld [vmem:[%s238 + $0xa4] sm:$0xff]
        %v376 = vld [vmem:[%s238 + $0xac] sm:$0xff]
        %v377 = vld [vmem:[%s238 + $0xcc] sm:$0xff]
        %v378 = vld [vmem:[%s238 + $0xd4] sm:$0xff]
        %v379 = vld [vmem:[%s238 + $0xf4] sm:$0xff]
        %v380 = vld [vmem:[%s238 + $0xfc] sm:$0xff]
        %v381 = vld [vmem:[%s238 + $0x11c] sm:$0xff]
        %v382 = vld [vmem:[%s238 + $0x124] sm:$0xff]
        %v383 = vld [vmem:[%s238 + $0x144] sm:$0xff]
        %v384 = vld [vmem:[%s238 + $0x14c] sm:$0xff]
        %v385 = vld [vmem:[%s238 + $0x16c] sm:$0xff]
        %v386 = vld [vmem:[%s238 + $0x174] sm:$0xff]
        %v387 = vld [vmem:[%s238 + $0x194] sm:$0xff]
        %v388 = vld [vmem:[%s238 + $0x19c] sm:$0xff]
        %v389 = vld [vmem:[%s238 + $0x1bc] sm:$0xff]
        %v390 = vld [vmem:[%s238 + $0x1c4] sm:$0xff]
        %v391 = vld [vmem:[%s238 + $0x1e4] sm:$0xff]
        %v392 = vld [vmem:[%s238 + $0x1ec] sm:$0xff]
        %v393 = vld [vmem:[%s238 + $0x20c] sm:$0xff]
        %v394 = vld [vmem:[%s238 + $0x214] sm:$0xff]
        %v395 = vld [vmem:[%s238 + $0x234] sm:$0xff]
        %v396 = vld [vmem:[%s238 + $0x23c] sm:$0xff]
        %v397 = vld [vmem:[%s238 + $0x25c] sm:$0xff]
        %v398 = vld [vmem:[%s238 + $0x264] sm:$0xff]
        %v399 = vld [vmem:[%s238 + $0x5] sm:$0xff]
        %v400 = vld [vmem:[%s238 + $0xd] sm:$0xff]
        %v401 = vld [vmem:[%s238 + $0x2d] sm:$0xff]
        %v402 = vld [vmem:[%s238 + $0x35] sm:$0xff]
        %v403 = vld [vmem:[%s238 + $0x55] sm:$0xff]
        %v404 = vld [vmem:[%s238 + $0x5d] sm:$0xff]
        %v405 = vld [vmem:[%s238 + $0x7d] sm:$0xff]
        %v406 = vld [vmem:[%s238 + $0x85] sm:$0xff]
        %v407 = vld [vmem:[%s238 + $0xa5] sm:$0xff]
        %v408 = vld [vmem:[%s238 + $0xad] sm:$0xff]
        %v409 = vld [vmem:[%s238 + $0xcd] sm:$0xff]
        %v410 = vld [vmem:[%s238 + $0xd5] sm:$0xff]
        %v411 = vld [vmem:[%s238 + $0xf5] sm:$0xff]
        %v412 = vld [vmem:[%s238 + $0xfd] sm:$0xff]
        %v413 = vld [vmem:[%s238 + $0x11d] sm:$0xff]
        %v414 = vld [vmem:[%s238 + $0x125] sm:$0xff]
        %v415 = vld [vmem:[%s238 + $0x145] sm:$0xff]
        %v416 = vld [vmem:[%s238 + $0x14d] sm:$0xff]
        %v417 = vld [vmem:[%s238 + $0x16d] sm:$0xff]
        %v418 = vld [vmem:[%s238 + $0x175] sm:$0xff]
        %v419 = vld [vmem:[%s238 + $0x195] sm:$0xff]
        %v420 = vld [vmem:[%s238 + $0x19d] sm:$0xff]
        %v421 = vld [vmem:[%s238 + $0x1bd] sm:$0xff]
        %v422 = vld [vmem:[%s238 + $0x1c5] sm:$0xff]
        %v423 = vld [vmem:[%s238 + $0x1e5] sm:$0xff]
        %v424 = vld [vmem:[%s238 + $0x1ed] sm:$0xff]
        %v425 = vld [vmem:[%s238 + $0x20d] sm:$0xff]
        %v426 = vld [vmem:[%s238 + $0x215] sm:$0xff]
        %v427 = vld [vmem:[%s238 + $0x235] sm:$0xff]
        %v428 = vld [vmem:[%s238 + $0x23d] sm:$0xff]
        %v429 = vld [vmem:[%s238 + $0x25d] sm:$0xff]
        %v430 = vld [vmem:[%s238 + $0x265] sm:$0xff]
        %v431 = vld [vmem:[%s238 + $0x6] sm:$0xff]
        %v432 = vld [vmem:[%s238 + $0xe] sm:$0xff]
        %v433 = vld [vmem:[%s238 + $0x2e] sm:$0xff]
        %v434 = vld [vmem:[%s238 + $0x36] sm:$0xff]
        %v435 = vld [vmem:[%s238 + $0x56] sm:$0xff]
        %v436 = vld [vmem:[%s238 + $0x5e] sm:$0xff]
        %v437 = vld [vmem:[%s238 + $0x7e] sm:$0xff]
        %v438 = vld [vmem:[%s238 + $0x86] sm:$0xff]
        %v439 = vld [vmem:[%s238 + $0xa6] sm:$0xff]
        %v440 = vld [vmem:[%s238 + $0xae] sm:$0xff]
        %v441 = vld [vmem:[%s238 + $0xce] sm:$0xff]
        %v442 = vld [vmem:[%s238 + $0xd6] sm:$0xff]
        %v443 = vld [vmem:[%s238 + $0xf6] sm:$0xff]
        %v444 = vld [vmem:[%s238 + $0xfe] sm:$0xff]
        %v445 = vld [vmem:[%s238 + $0x11e] sm:$0xff]
        %v446 = vld [vmem:[%s238 + $0x126] sm:$0xff]
        %v447 = vld [vmem:[%s238 + $0x146] sm:$0xff]
        %v448 = vld [vmem:[%s238 + $0x14e] sm:$0xff]
        %v449 = vld [vmem:[%s238 + $0x16e] sm:$0xff]
        %v450 = vld [vmem:[%s238 + $0x176] sm:$0xff]
        %v451 = vld [vmem:[%s238 + $0x196] sm:$0xff]
        %v452 = vld [vmem:[%s238 + $0x19e] sm:$0xff]
        %v453 = vld [vmem:[%s238 + $0x1be] sm:$0xff]
        %v454 = vld [vmem:[%s238 + $0x1c6] sm:$0xff]
        %v455 = vld [vmem:[%s238 + $0x1e6] sm:$0xff]
        %v456 = vld [vmem:[%s238 + $0x1ee] sm:$0xff]
        %v457 = vld [vmem:[%s238 + $0x20e] sm:$0xff]
        %v458 = vld [vmem:[%s238 + $0x216] sm:$0xff]
        %v459 = vld [vmem:[%s238 + $0x236] sm:$0xff]
        %v460 = vld [vmem:[%s238 + $0x23e] sm:$0xff]
        %v461 = vld [vmem:[%s238 + $0x25e] sm:$0xff]
        %v462 = vld [vmem:[%s238 + $0x266] sm:$0xff]
        %v463 = vld [vmem:[%s238 + $0x7] sm:$0xff]
        %v464 = vld [vmem:[%s238 + $0xf] sm:$0xff]
        %v465 = vld [vmem:[%s238 + $0x2f] sm:$0xff]
        %v466 = vld [vmem:[%s238 + $0x37] sm:$0xff]
        %v467 = vld [vmem:[%s238 + $0x57] sm:$0xff]
        %v468 = vld [vmem:[%s238 + $0x5f] sm:$0xff]
        %v469 = vld [vmem:[%s238 + $0x7f] sm:$0xff]
        %v470 = vld [vmem:[%s238 + $0x87] sm:$0xff]
        %v471 = vld [vmem:[%s238 + $0xa7] sm:$0xff]
        %v472 = vld [vmem:[%s238 + $0xaf] sm:$0xff]
        %v473 = vld [vmem:[%s238 + $0xcf] sm:$0xff]
        %v474 = vld [vmem:[%s238 + $0xd7] sm:$0xff]
        %v475 = vld [vmem:[%s238 + $0xf7] sm:$0xff]
        %v476 = vld [vmem:[%s238 + $0xff] sm:$0xff]
        %v477 = vld [vmem:[%s238 + $0x11f] sm:$0xff]
        %v478 = vld [vmem:[%s238 + $0x127] sm:$0xff]
        %v479 = vld [vmem:[%s238 + $0x147] sm:$0xff]
        %v480 = vld [vmem:[%s238 + $0x14f] sm:$0xff]
        %v481 = vld [vmem:[%s238 + $0x16f] sm:$0xff]
        %v482 = vld [vmem:[%s238 + $0x177] sm:$0xff]
        %v483 = vld [vmem:[%s238 + $0x197] sm:$0xff]
        %v484 = vld [vmem:[%s238 + $0x19f] sm:$0xff]
        %v485 = vld [vmem:[%s238 + $0x1bf] sm:$0xff]
        %v486 = vld [vmem:[%s238 + $0x1c7] sm:$0xff]
        %v487 = vld [vmem:[%s238 + $0x1e7] sm:$0xff]
        %v488 = vld [vmem:[%s238 + $0x1ef] sm:$0xff]
        %v489 = vld [vmem:[%s238 + $0x20f] sm:$0xff]
        %v490 = vld [vmem:[%s238 + $0x217] sm:$0xff]
        %v491 = vld [vmem:[%s238 + $0x237] sm:$0xff]
        %v492 = vld [vmem:[%s238 + $0x23f] sm:$0xff]
        %v493 = vld [vmem:[%s238 + $0x25f] sm:$0xff]
        %v494 = vld [vmem:[%s238 + $0x267] sm:$0xff]
        %v495 = vld [vmem:[%s238 + $0x10] sm:$0xff]
        %v496 = vld [vmem:[%s238 + $0x38] sm:$0xff]
        %v497 = vld [vmem:[%s238 + $0x60] sm:$0xff]
        %v498 = vld [vmem:[%s238 + $0x88] sm:$0xff]
        %v499 = vld [vmem:[%s238 + $0xb0] sm:$0xff]
        %v500 = vld [vmem:[%s238 + $0xd8] sm:$0xff]
        %v501 = vld [vmem:[%s238 + $0x100] sm:$0xff]
        %v502 = vld [vmem:[%s238 + $0x128] sm:$0xff]
        %v503 = vld [vmem:[%s238 + $0x150] sm:$0xff]
        %v504 = vld [vmem:[%s238 + $0x178] sm:$0xff]
        %v505 = vld [vmem:[%s238 + $0x1a0] sm:$0xff]
        %v506 = vld [vmem:[%s238 + $0x1c8] sm:$0xff]
        %v507 = vld [vmem:[%s238 + $0x1f0] sm:$0xff]
        %v508 = vld [vmem:[%s238 + $0x218] sm:$0xff]
        %v509 = vld [vmem:[%s238 + $0x240] sm:$0xff]
        %v510 = vld [vmem:[%s238 + $0x268] sm:$0xff]
        %v511 = vld [vmem:[%s238 + $0x11] sm:$0xff]
        %v512 = vld [vmem:[%s238 + $0x39] sm:$0xff]
        %v513 = vld [vmem:[%s238 + $0x61] sm:$0xff]
        %v514 = vld [vmem:[%s238 + $0x89] sm:$0xff]
        %v515 = vld [vmem:[%s238 + $0xb1] sm:$0xff]
        %v516 = vld [vmem:[%s238 + $0xd9] sm:$0xff]
        %v517 = vld [vmem:[%s238 + $0x101] sm:$0xff]
        %v518 = vld [vmem:[%s238 + $0x129] sm:$0xff]
        %v519 = vld [vmem:[%s238 + $0x151] sm:$0xff]
        %v520 = vld [vmem:[%s238 + $0x179] sm:$0xff]
        %v521 = vld [vmem:[%s238 + $0x1a1] sm:$0xff]
        %v522 = vld [vmem:[%s238 + $0x1c9] sm:$0xff]
        %v523 = vld [vmem:[%s238 + $0x1f1] sm:$0xff]
        %v524 = vld [vmem:[%s238 + $0x219] sm:$0xff]
        %v525 = vld [vmem:[%s238 + $0x241] sm:$0xff]
        %v526 = vld [vmem:[%s238 + $0x269] sm:$0xff]
        %v527 = vld [vmem:[%s238 + $0x12] sm:$0xff]
        %v528 = vld [vmem:[%s238 + $0x3a] sm:$0xff]
        %v529 = vld [vmem:[%s238 + $0x62] sm:$0xff]
        %v530 = vld [vmem:[%s238 + $0x8a] sm:$0xff]
        %v531 = vld [vmem:[%s238 + $0xb2] sm:$0xff]
        %v532 = vld [vmem:[%s238 + $0xda] sm:$0xff]
        %v533 = vld [vmem:[%s238 + $0x102] sm:$0xff]
        %v534 = vld [vmem:[%s238 + $0x12a] sm:$0xff]
        %v535 = vld [vmem:[%s238 + $0x152] sm:$0xff]
        %v536 = vld [vmem:[%s238 + $0x17a] sm:$0xff]
        %v537 = vld [vmem:[%s238 + $0x1a2] sm:$0xff]
        %v538 = vld [vmem:[%s238 + $0x1ca] sm:$0xff]
        %v539 = vld [vmem:[%s238 + $0x1f2] sm:$0xff]
        %v540 = vld [vmem:[%s238 + $0x21a] sm:$0xff]
        %v541 = vld [vmem:[%s238 + $0x242] sm:$0xff]
        %v542 = vld [vmem:[%s238 + $0x26a] sm:$0xff]
        %v543 = vld [vmem:[%s238 + $0x13] sm:$0xff]
        %v544 = vld [vmem:[%s238 + $0x3b] sm:$0xff]
        %v545 = vld [vmem:[%s238 + $0x63] sm:$0xff]
        %v546 = vld [vmem:[%s238 + $0x8b] sm:$0xff]
        %v547 = vld [vmem:[%s238 + $0xb3] sm:$0xff]
        %v548 = vld [vmem:[%s238 + $0xdb] sm:$0xff]
        %v549 = vld [vmem:[%s238 + $0x103] sm:$0xff]
        %v550 = vld [vmem:[%s238 + $0x12b] sm:$0xff]
        %v551 = vld [vmem:[%s238 + $0x153] sm:$0xff]
        %v552 = vld [vmem:[%s238 + $0x17b] sm:$0xff]
        %v553 = vld [vmem:[%s238 + $0x1a3] sm:$0xff]
        %v554 = vld [vmem:[%s238 + $0x1cb] sm:$0xff]
        %v555 = vld [vmem:[%s238 + $0x1f3] sm:$0xff]
        %v556 = vld [vmem:[%s238 + $0x21b] sm:$0xff]
        %v557 = vld [vmem:[%s238 + $0x243] sm:$0xff]
        %v558 = vld [vmem:[%s238 + $0x26b] sm:$0xff]
        %v559 = vld [vmem:[%s238 + $0x14] sm:$0xff]
        %v560 = vld [vmem:[%s238 + $0x3c] sm:$0xff]
        %v561 = vld [vmem:[%s238 + $0x64] sm:$0xff]
        %v562 = vld [vmem:[%s238 + $0x8c] sm:$0xff]
        %v563 = vld [vmem:[%s238 + $0xb4] sm:$0xff]
        %v564 = vld [vmem:[%s238 + $0xdc] sm:$0xff]
        %v565 = vld [vmem:[%s238 + $0x104] sm:$0xff]
        %v566 = vld [vmem:[%s238 + $0x12c] sm:$0xff]
        %v567 = vld [vmem:[%s238 + $0x154] sm:$0xff]
        %v568 = vld [vmem:[%s238 + $0x17c] sm:$0xff]
        %v569 = vld [vmem:[%s238 + $0x1a4] sm:$0xff]
        %v570 = vld [vmem:[%s238 + $0x1cc] sm:$0xff]
        %v571 = vld [vmem:[%s238 + $0x1f4] sm:$0xff]
        %v572 = vld [vmem:[%s238 + $0x21c] sm:$0xff]
        %v573 = vld [vmem:[%s238 + $0x244] sm:$0xff]
        %v574 = vld [vmem:[%s238 + $0x26c] sm:$0xff]
        %v575 = vld [vmem:[%s238 + $0x15] sm:$0xff]
        %v576 = vld [vmem:[%s238 + $0x3d] sm:$0xff]
        %v577 = vld [vmem:[%s238 + $0x65] sm:$0xff]
        %v578 = vld [vmem:[%s238 + $0x8d] sm:$0xff]
        %v579 = vld [vmem:[%s238 + $0xb5] sm:$0xff]
        %v580 = vld [vmem:[%s238 + $0xdd] sm:$0xff]
        %v581 = vld [vmem:[%s238 + $0x105] sm:$0xff]
        %v582 = vld [vmem:[%s238 + $0x12d] sm:$0xff]
        %v583 = vld [vmem:[%s238 + $0x155] sm:$0xff]
        %v584 = vld [vmem:[%s238 + $0x17d] sm:$0xff]
        %v585 = vld [vmem:[%s238 + $0x1a5] sm:$0xff]
        %v586 = vld [vmem:[%s238 + $0x1cd] sm:$0xff]
        %v587 = vld [vmem:[%s238 + $0x1f5] sm:$0xff]
        %v588 = vld [vmem:[%s238 + $0x21d] sm:$0xff]
        %v589 = vld [vmem:[%s238 + $0x245] sm:$0xff]
        %v590 = vld [vmem:[%s238 + $0x26d] sm:$0xff]
        %v591 = vld [vmem:[%s238 + $0x16] sm:$0xff]
        %v592 = vld [vmem:[%s238 + $0x3e] sm:$0xff]
        %v593 = vld [vmem:[%s238 + $0x66] sm:$0xff]
        %v594 = vld [vmem:[%s238 + $0x8e] sm:$0xff]
        %v595 = vld [vmem:[%s238 + $0xb6] sm:$0xff]
        %v596 = vld [vmem:[%s238 + $0xde] sm:$0xff]
        %v597 = vld [vmem:[%s238 + $0x106] sm:$0xff]
        %v598 = vld [vmem:[%s238 + $0x12e] sm:$0xff]
        %v599 = vld [vmem:[%s238 + $0x156] sm:$0xff]
        %v600 = vld [vmem:[%s238 + $0x17e] sm:$0xff]
        %v601 = vld [vmem:[%s238 + $0x1a6] sm:$0xff]
        %v602 = vld [vmem:[%s238 + $0x1ce] sm:$0xff]
        %v603 = vld [vmem:[%s238 + $0x1f6] sm:$0xff]
        %v604 = vld [vmem:[%s238 + $0x21e] sm:$0xff]
        %v605 = vld [vmem:[%s238 + $0x246] sm:$0xff]
        %v606 = vld [vmem:[%s238 + $0x26e] sm:$0xff]
        %v607 = vld [vmem:[%s238 + $0x17] sm:$0xff]
        %v608 = vld [vmem:[%s238 + $0x3f] sm:$0xff]
        %v609 = vld [vmem:[%s238 + $0x67] sm:$0xff]
        %v610 = vld [vmem:[%s238 + $0x8f] sm:$0xff]
        %v611 = vld [vmem:[%s238 + $0xb7] sm:$0xff]
        %v612 = vld [vmem:[%s238 + $0xdf] sm:$0xff]
        %v613 = vld [vmem:[%s238 + $0x107] sm:$0xff]
        %v614 = vld [vmem:[%s238 + $0x12f] sm:$0xff]
        %v615 = vld [vmem:[%s238 + $0x157] sm:$0xff]
        %v616 = vld [vmem:[%s238 + $0x17f] sm:$0xff]
        %v617 = vld [vmem:[%s238 + $0x1a7] sm:$0xff]
        %v618 = vld [vmem:[%s238 + $0x1cf] sm:$0xff]
        %v619 = vld [vmem:[%s238 + $0x1f7] sm:$0xff]
        %v620 = vld [vmem:[%s238 + $0x21f] sm:$0xff]
        %v621 = vld [vmem:[%s238 + $0x247] sm:$0xff]
        %v622 = vld [vmem:[%s238 + $0x26f] sm:$0xff]
        %v623 = vld [vmem:[%s238 + $0x18] sm:$0xff]
        %v624 = vld [vmem:[%s238 + $0x40] sm:$0xff]
        %v625 = vld [vmem:[%s238 + $0x68] sm:$0xff]
        %v626 = vld [vmem:[%s238 + $0x90] sm:$0xff]
        %v627 = vld [vmem:[%s238 + $0xb8] sm:$0xff]
        %v628 = vld [vmem:[%s238 + $0xe0] sm:$0xff]
        %v629 = vld [vmem:[%s238 + $0x108] sm:$0xff]
        %v630 = vld [vmem:[%s238 + $0x130] sm:$0xff]
        %v631 = vld [vmem:[%s238 + $0x158] sm:$0xff]
        %v632 = vld [vmem:[%s238 + $0x180] sm:$0xff]
        %v633 = vld [vmem:[%s238 + $0x1a8] sm:$0xff]
        %v634 = vld [vmem:[%s238 + $0x1d0] sm:$0xff]
        %v635 = vld [vmem:[%s238 + $0x1f8] sm:$0xff]
        %v636 = vld [vmem:[%s238 + $0x220] sm:$0xff]
        %v637 = vld [vmem:[%s238 + $0x248] sm:$0xff]
        %v638 = vld [vmem:[%s238 + $0x270] sm:$0xff]
        %v639 = vld [vmem:[%s238 + $0x19] sm:$0xff]
        %v640 = vld [vmem:[%s238 + $0x41] sm:$0xff]
        %v641 = vld [vmem:[%s238 + $0x69] sm:$0xff]
        %v642 = vld [vmem:[%s238 + $0x91] sm:$0xff]
        %v643 = vld [vmem:[%s238 + $0xb9] sm:$0xff]
        %v644 = vld [vmem:[%s238 + $0xe1] sm:$0xff]
        %v645 = vld [vmem:[%s238 + $0x109] sm:$0xff]
        %v646 = vld [vmem:[%s238 + $0x131] sm:$0xff]
        %v647 = vld [vmem:[%s238 + $0x159] sm:$0xff]
        %v648 = vld [vmem:[%s238 + $0x181] sm:$0xff]
        %v649 = vld [vmem:[%s238 + $0x1a9] sm:$0xff]
        %v650 = vld [vmem:[%s238 + $0x1d1] sm:$0xff]
        %v651 = vld [vmem:[%s238 + $0x1f9] sm:$0xff]
        %v652 = vld [vmem:[%s238 + $0x221] sm:$0xff]
        %v653 = vld [vmem:[%s238 + $0x249] sm:$0xff]
        %v654 = vld [vmem:[%s238 + $0x271] sm:$0xff]
        %v655 = vld [vmem:[%s238 + $0x1a] sm:$0xff]
        %v656 = vld [vmem:[%s238 + $0x42] sm:$0xff]
        %v657 = vld [vmem:[%s238 + $0x6a] sm:$0xff]
        %v658 = vld [vmem:[%s238 + $0x92] sm:$0xff]
        %v659 = vld [vmem:[%s238 + $0xba] sm:$0xff]
        %v660 = vld [vmem:[%s238 + $0xe2] sm:$0xff]
        %v661 = vld [vmem:[%s238 + $0x10a] sm:$0xff]
        %v662 = vld [vmem:[%s238 + $0x132] sm:$0xff]
        %v663 = vld [vmem:[%s238 + $0x15a] sm:$0xff]
        %v664 = vld [vmem:[%s238 + $0x182] sm:$0xff]
        %v665 = vld [vmem:[%s238 + $0x1aa] sm:$0xff]
        %v666 = vld [vmem:[%s238 + $0x1d2] sm:$0xff]
        %v667 = vld [vmem:[%s238 + $0x1fa] sm:$0xff]
        %v668 = vld [vmem:[%s238 + $0x222] sm:$0xff]
        %v669 = vld [vmem:[%s238 + $0x24a] sm:$0xff]
        %v670 = vld [vmem:[%s238 + $0x272] sm:$0xff]
        %v671 = vld [vmem:[%s238 + $0x1b] sm:$0xff]
        %v672 = vld [vmem:[%s238 + $0x43] sm:$0xff]
        %v673 = vld [vmem:[%s238 + $0x6b] sm:$0xff]
        %v674 = vld [vmem:[%s238 + $0x93] sm:$0xff]
        %v675 = vld [vmem:[%s238 + $0xbb] sm:$0xff]
        %v676 = vld [vmem:[%s238 + $0xe3] sm:$0xff]
        %v677 = vld [vmem:[%s238 + $0x10b] sm:$0xff]
        %v678 = vld [vmem:[%s238 + $0x133] sm:$0xff]
        %v679 = vld [vmem:[%s238 + $0x15b] sm:$0xff]
        %v680 = vld [vmem:[%s238 + $0x183] sm:$0xff]
        %v681 = vld [vmem:[%s238 + $0x1ab] sm:$0xff]
        %v682 = vld [vmem:[%s238 + $0x1d3] sm:$0xff]
        %v683 = vld [vmem:[%s238 + $0x1fb] sm:$0xff]
        %v684 = vld [vmem:[%s238 + $0x223] sm:$0xff]
        %v685 = vld [vmem:[%s238 + $0x24b] sm:$0xff]
        %v686 = vld [vmem:[%s238 + $0x273] sm:$0xff]
        %v687 = vld [vmem:[%s238 + $0x1c] sm:$0xff]
        %v688 = vld [vmem:[%s238 + $0x44] sm:$0xff]
        %v689 = vld [vmem:[%s238 + $0x6c] sm:$0xff]
        %v690 = vld [vmem:[%s238 + $0x94] sm:$0xff]
        %v691 = vld [vmem:[%s238 + $0xbc] sm:$0xff]
        %v692 = vld [vmem:[%s238 + $0xe4] sm:$0xff]
        %v693 = vld [vmem:[%s238 + $0x10c] sm:$0xff]
        %v694 = vld [vmem:[%s238 + $0x134] sm:$0xff]
        %v695 = vld [vmem:[%s238 + $0x15c] sm:$0xff]
        %v696 = vld [vmem:[%s238 + $0x184] sm:$0xff]
        %v697 = vld [vmem:[%s238 + $0x1ac] sm:$0xff]
        %v698 = vld [vmem:[%s238 + $0x1d4] sm:$0xff]
        %v699 = vld [vmem:[%s238 + $0x1fc] sm:$0xff]
        %v700 = vld [vmem:[%s238 + $0x224] sm:$0xff]
        %v701 = vld [vmem:[%s238 + $0x24c] sm:$0xff]
        %v702 = vld [vmem:[%s238 + $0x274] sm:$0xff]
        %735 = vrot.lane.b32.xlu0 %v271, 4
        %v736 = vpop.permute.xlu0 %735
        %737 = vrot.lane.b32.xlu0 %v272, 4
        %v738 = vpop.permute.xlu0 %737
        %739 = vrot.lane.b32.xlu0 %v273, 4
        %v740 = vpop.permute.xlu0 %739
        %741 = vrot.lane.b32.xlu0 %v274, 4
        %v742 = vpop.permute.xlu0 %741
        %743 = vrot.lane.b32.xlu0 %v275, 4
        %v744 = vpop.permute.xlu0 %743
        %745 = vrot.lane.b32.xlu0 %v276, 4
        %v746 = vpop.permute.xlu0 %745
        %747 = vrot.lane.b32.xlu0 %v277, 4
        %v748 = vpop.permute.xlu0 %747
        %749 = vrot.lane.b32.xlu0 %v278, 4
        %v750 = vpop.permute.xlu0 %749
        %751 = vrot.lane.b32.xlu0 %v279, 4
        %v752 = vpop.permute.xlu0 %751
        %753 = vrot.lane.b32.xlu0 %v280, 4
        %v754 = vpop.permute.xlu0 %753
        %755 = vrot.lane.b32.xlu0 %v281, 4
        %v756 = vpop.permute.xlu0 %755
        %757 = vrot.lane.b32.xlu0 %v282, 4
        %v758 = vpop.permute.xlu0 %757
        %759 = vrot.lane.b32.xlu0 %v283, 4
        %v760 = vpop.permute.xlu0 %759
        %761 = vrot.lane.b32.xlu0 %v284, 4
        %v762 = vpop.permute.xlu0 %761
        %763 = vrot.lane.b32.xlu0 %v285, 4
        %v764 = vpop.permute.xlu0 %763
        %765 = vrot.lane.b32.xlu0 %v286, 4
        %v766 = vpop.permute.xlu0 %765
        %767 = vrot.lane.b32.xlu0 %v287, 4
        %v768 = vpop.permute.xlu0 %767
        %769 = vrot.lane.b32.xlu0 %v288, 4
        %v770 = vpop.permute.xlu0 %769
        %771 = vrot.lane.b32.xlu0 %v289, 4
        %v772 = vpop.permute.xlu0 %771
        %773 = vrot.lane.b32.xlu0 %v290, 4
        %v774 = vpop.permute.xlu0 %773
        %775 = vrot.lane.b32.xlu0 %v291, 4
        %v776 = vpop.permute.xlu0 %775
        %777 = vrot.lane.b32.xlu0 %v292, 4
        %v778 = vpop.permute.xlu0 %777
        %779 = vrot.lane.b32.xlu0 %v293, 4
        %v780 = vpop.permute.xlu0 %779
        %781 = vrot.lane.b32.xlu0 %v294, 4
        %v782 = vpop.permute.xlu0 %781
        %783 = vrot.lane.b32.xlu0 %v295, 4
        %v784 = vpop.permute.xlu0 %783
        %785 = vrot.lane.b32.xlu0 %v296, 4
        %v786 = vpop.permute.xlu0 %785
        %787 = vrot.lane.b32.xlu0 %v297, 4
        %v788 = vpop.permute.xlu0 %787
        %789 = vrot.lane.b32.xlu0 %v298, 4
        %v790 = vpop.permute.xlu0 %789
        %791 = vrot.lane.b32.xlu0 %v299, 4
        %v792 = vpop.permute.xlu0 %791
        %793 = vrot.lane.b32.xlu0 %v300, 4
        %v794 = vpop.permute.xlu0 %793
        %795 = vrot.lane.b32.xlu0 %v301, 4
        %v796 = vpop.permute.xlu0 %795
        %797 = vrot.lane.b32.xlu0 %v302, 4
        %v798 = vpop.permute.xlu0 %797
        %863 = vrot.lane.b32.xlu0 %v303, 8
        %v864 = vpop.permute.xlu0 %863
        %865 = vrot.lane.b32.xlu0 %v304, 8
        %v866 = vpop.permute.xlu0 %865
        %867 = vrot.lane.b32.xlu0 %v305, 8
        %v868 = vpop.permute.xlu0 %867
        %869 = vrot.lane.b32.xlu0 %v306, 8
        %v870 = vpop.permute.xlu0 %869
        %871 = vrot.lane.b32.xlu0 %v307, 8
        %v872 = vpop.permute.xlu0 %871
        %873 = vrot.lane.b32.xlu0 %v308, 8
        %v874 = vpop.permute.xlu0 %873
        %875 = vrot.lane.b32.xlu0 %v309, 8
        %v876 = vpop.permute.xlu0 %875
        %877 = vrot.lane.b32.xlu0 %v310, 8
        %v878 = vpop.permute.xlu0 %877
        %879 = vrot.lane.b32.xlu0 %v311, 8
        %v880 = vpop.permute.xlu0 %879
        %881 = vrot.lane.b32.xlu0 %v312, 8
        %v882 = vpop.permute.xlu0 %881
        %883 = vrot.lane.b32.xlu0 %v313, 8
        %v884 = vpop.permute.xlu0 %883
        %885 = vrot.lane.b32.xlu0 %v314, 8
        %v886 = vpop.permute.xlu0 %885
        %887 = vrot.lane.b32.xlu0 %v315, 8
        %v888 = vpop.permute.xlu0 %887
        %889 = vrot.lane.b32.xlu0 %v316, 8
        %v890 = vpop.permute.xlu0 %889
        %891 = vrot.lane.b32.xlu0 %v317, 8
        %v892 = vpop.permute.xlu0 %891
        %893 = vrot.lane.b32.xlu0 %v318, 8
        %v894 = vpop.permute.xlu0 %893
        %895 = vrot.lane.b32.xlu0 %v319, 8
        %v896 = vpop.permute.xlu0 %895
        %897 = vrot.lane.b32.xlu0 %v320, 8
        %v898 = vpop.permute.xlu0 %897
        %899 = vrot.lane.b32.xlu0 %v321, 8
        %v900 = vpop.permute.xlu0 %899
        %901 = vrot.lane.b32.xlu0 %v322, 8
        %v902 = vpop.permute.xlu0 %901
        %903 = vrot.lane.b32.xlu0 %v323, 8
        %v904 = vpop.permute.xlu0 %903
        %905 = vrot.lane.b32.xlu0 %v324, 8
        %v906 = vpop.permute.xlu0 %905
        %907 = vrot.lane.b32.xlu0 %v325, 8
        %v908 = vpop.permute.xlu0 %907
        %909 = vrot.lane.b32.xlu0 %v326, 8
        %v910 = vpop.permute.xlu0 %909
        %911 = vrot.lane.b32.xlu0 %v327, 8
        %v912 = vpop.permute.xlu0 %911
        %913 = vrot.lane.b32.xlu0 %v328, 8
        %v914 = vpop.permute.xlu0 %913
        %915 = vrot.lane.b32.xlu0 %v329, 8
        %v916 = vpop.permute.xlu0 %915
        %917 = vrot.lane.b32.xlu0 %v330, 8
        %v918 = vpop.permute.xlu0 %917
        %919 = vrot.lane.b32.xlu0 %v331, 8
        %v920 = vpop.permute.xlu0 %919
        %921 = vrot.lane.b32.xlu0 %v332, 8
        %v922 = vpop.permute.xlu0 %921
        %923 = vrot.lane.b32.xlu0 %v333, 8
        %v924 = vpop.permute.xlu0 %923
        %925 = vrot.lane.b32.xlu0 %v334, 8
        %v926 = vpop.permute.xlu0 %925
        %991 = vrot.lane.b32.xlu0 %v335, 12
        %v992 = vpop.permute.xlu0 %991
        %993 = vrot.lane.b32.xlu0 %v336, 12
        %v994 = vpop.permute.xlu0 %993
        %995 = vrot.lane.b32.xlu0 %v337, 12
        %v996 = vpop.permute.xlu0 %995
        %997 = vrot.lane.b32.xlu0 %v338, 12
        %v998 = vpop.permute.xlu0 %997
        %999 = vrot.lane.b32.xlu0 %v339, 12
        %v1000 = vpop.permute.xlu0 %999
        %1001 = vrot.lane.b32.xlu0 %v340, 12
        %v1002 = vpop.permute.xlu0 %1001
        %1003 = vrot.lane.b32.xlu0 %v341, 12
        %v1004 = vpop.permute.xlu0 %1003
        %1005 = vrot.lane.b32.xlu0 %v342, 12
        %v1006 = vpop.permute.xlu0 %1005
        %1007 = vrot.lane.b32.xlu0 %v343, 12
        %v1008 = vpop.permute.xlu0 %1007
        %1009 = vrot.lane.b32.xlu0 %v344, 12
        %v1010 = vpop.permute.xlu0 %1009
        %1011 = vrot.lane.b32.xlu0 %v345, 12
        %v1012 = vpop.permute.xlu0 %1011
        %1013 = vrot.lane.b32.xlu0 %v346, 12
        %v1014 = vpop.permute.xlu0 %1013
        %1015 = vrot.lane.b32.xlu0 %v347, 12
        %v1016 = vpop.permute.xlu0 %1015
        %1017 = vrot.lane.b32.xlu0 %v348, 12
        %v1018 = vpop.permute.xlu0 %1017
        %1019 = vrot.lane.b32.xlu0 %v349, 12
        %v1020 = vpop.permute.xlu0 %1019
        %1021 = vrot.lane.b32.xlu0 %v350, 12
        %v1022 = vpop.permute.xlu0 %1021
        %1023 = vrot.lane.b32.xlu0 %v351, 12
        %v1024 = vpop.permute.xlu0 %1023
        %1025 = vrot.lane.b32.xlu0 %v352, 12
        %v1026 = vpop.permute.xlu0 %1025
        %1027 = vrot.lane.b32.xlu0 %v353, 12
        %v1028 = vpop.permute.xlu0 %1027
        %1029 = vrot.lane.b32.xlu0 %v354, 12
        %v1030 = vpop.permute.xlu0 %1029
        %1031 = vrot.lane.b32.xlu0 %v355, 12
        %v1032 = vpop.permute.xlu0 %1031
        %1033 = vrot.lane.b32.xlu0 %v356, 12
        %v1034 = vpop.permute.xlu0 %1033
        %1035 = vrot.lane.b32.xlu0 %v357, 12
        %v1036 = vpop.permute.xlu0 %1035
        %1037 = vrot.lane.b32.xlu0 %v358, 12
        %v1038 = vpop.permute.xlu0 %1037
        %1039 = vrot.lane.b32.xlu0 %v359, 12
        %v1040 = vpop.permute.xlu0 %1039
        %1041 = vrot.lane.b32.xlu0 %v360, 12
        %v1042 = vpop.permute.xlu0 %1041
        %1043 = vrot.lane.b32.xlu0 %v361, 12
        %v1044 = vpop.permute.xlu0 %1043
        %1045 = vrot.lane.b32.xlu0 %v362, 12
        %v1046 = vpop.permute.xlu0 %1045
        %1047 = vrot.lane.b32.xlu0 %v363, 12
        %v1048 = vpop.permute.xlu0 %1047
        %1049 = vrot.lane.b32.xlu0 %v364, 12
        %v1050 = vpop.permute.xlu0 %1049
        %1051 = vrot.lane.b32.xlu0 %v365, 12
        %v1052 = vpop.permute.xlu0 %1051
        %1053 = vrot.lane.b32.xlu0 %v366, 12
        %v1054 = vpop.permute.xlu0 %1053
        %1119 = vrot.lane.b32.xlu0 %v367, 16
        %v1120 = vpop.permute.xlu0 %1119
        %1121 = vrot.lane.b32.xlu0 %v368, 16
        %v1122 = vpop.permute.xlu0 %1121
        %1123 = vrot.lane.b32.xlu0 %v369, 16
        %v1124 = vpop.permute.xlu0 %1123
        %1125 = vrot.lane.b32.xlu0 %v370, 16
        %v1126 = vpop.permute.xlu0 %1125
        %1127 = vrot.lane.b32.xlu0 %v371, 16
        %v1128 = vpop.permute.xlu0 %1127
        %1129 = vrot.lane.b32.xlu0 %v372, 16
        %v1130 = vpop.permute.xlu0 %1129
        %1131 = vrot.lane.b32.xlu0 %v373, 16
        %v1132 = vpop.permute.xlu0 %1131
        %1133 = vrot.lane.b32.xlu0 %v374, 16
        %v1134 = vpop.permute.xlu0 %1133
        %1135 = vrot.lane.b32.xlu0 %v375, 16
        %v1136 = vpop.permute.xlu0 %1135
        %1137 = vrot.lane.b32.xlu0 %v376, 16
        %v1138 = vpop.permute.xlu0 %1137
        %1139 = vrot.lane.b32.xlu0 %v377, 16
        %v1140 = vpop.permute.xlu0 %1139
        %1141 = vrot.lane.b32.xlu0 %v378, 16
        %v1142 = vpop.permute.xlu0 %1141
        %1143 = vrot.lane.b32.xlu0 %v379, 16
        %v1144 = vpop.permute.xlu0 %1143
        %1145 = vrot.lane.b32.xlu0 %v380, 16
        %v1146 = vpop.permute.xlu0 %1145
        %1147 = vrot.lane.b32.xlu0 %v381, 16
        %v1148 = vpop.permute.xlu0 %1147
        %1149 = vrot.lane.b32.xlu0 %v382, 16
        %v1150 = vpop.permute.xlu0 %1149
        %1151 = vrot.lane.b32.xlu0 %v383, 16
        %v1152 = vpop.permute.xlu0 %1151
        %1153 = vrot.lane.b32.xlu0 %v384, 16
        %v1154 = vpop.permute.xlu0 %1153
        %1155 = vrot.lane.b32.xlu0 %v385, 16
        %v1156 = vpop.permute.xlu0 %1155
        %1157 = vrot.lane.b32.xlu0 %v386, 16
        %v1158 = vpop.permute.xlu0 %1157
        %1159 = vrot.lane.b32.xlu0 %v387, 16
        %v1160 = vpop.permute.xlu0 %1159
        %1161 = vrot.lane.b32.xlu0 %v388, 16
        %v1162 = vpop.permute.xlu0 %1161
        %1163 = vrot.lane.b32.xlu0 %v389, 16
        %v1164 = vpop.permute.xlu0 %1163
        %1165 = vrot.lane.b32.xlu0 %v390, 16
        %v1166 = vpop.permute.xlu0 %1165
        %1167 = vrot.lane.b32.xlu0 %v391, 16
        %v1168 = vpop.permute.xlu0 %1167
        %1169 = vrot.lane.b32.xlu0 %v392, 16
        %v1170 = vpop.permute.xlu0 %1169
        %1171 = vrot.lane.b32.xlu0 %v393, 16
        %v1172 = vpop.permute.xlu0 %1171
        %1173 = vrot.lane.b32.xlu0 %v394, 16
        %v1174 = vpop.permute.xlu0 %1173
        %1175 = vrot.lane.b32.xlu0 %v395, 16
        %v1176 = vpop.permute.xlu0 %1175
        %1177 = vrot.lane.b32.xlu0 %v396, 16
        %v1178 = vpop.permute.xlu0 %1177
        %1179 = vrot.lane.b32.xlu0 %v397, 16
        %v1180 = vpop.permute.xlu0 %1179
        %1181 = vrot.lane.b32.xlu0 %v398, 16
        %v1182 = vpop.permute.xlu0 %1181
        %1247 = vrot.lane.b32.xlu0 %v399, 20
        %v1248 = vpop.permute.xlu0 %1247
        %1249 = vrot.lane.b32.xlu0 %v400, 20
        %v1250 = vpop.permute.xlu0 %1249
        %1251 = vrot.lane.b32.xlu0 %v401, 20
        %v1252 = vpop.permute.xlu0 %1251
        %1253 = vrot.lane.b32.xlu0 %v402, 20
        %v1254 = vpop.permute.xlu0 %1253
        %1255 = vrot.lane.b32.xlu0 %v403, 20
        %v1256 = vpop.permute.xlu0 %1255
        %1257 = vrot.lane.b32.xlu0 %v404, 20
        %v1258 = vpop.permute.xlu0 %1257
        %1259 = vrot.lane.b32.xlu0 %v405, 20
        %v1260 = vpop.permute.xlu0 %1259
        %1261 = vrot.lane.b32.xlu0 %v406, 20
        %v1262 = vpop.permute.xlu0 %1261
        %1263 = vrot.lane.b32.xlu0 %v407, 20
        %v1264 = vpop.permute.xlu0 %1263
        %1265 = vrot.lane.b32.xlu0 %v408, 20
        %v1266 = vpop.permute.xlu0 %1265
        %1267 = vrot.lane.b32.xlu0 %v409, 20
        %v1268 = vpop.permute.xlu0 %1267
        %1269 = vrot.lane.b32.xlu0 %v410, 20
        %v1270 = vpop.permute.xlu0 %1269
        %1271 = vrot.lane.b32.xlu0 %v411, 20
        %v1272 = vpop.permute.xlu0 %1271
        %1273 = vrot.lane.b32.xlu0 %v412, 20
        %v1274 = vpop.permute.xlu0 %1273
        %1275 = vrot.lane.b32.xlu0 %v413, 20
        %v1276 = vpop.permute.xlu0 %1275
        %1277 = vrot.lane.b32.xlu0 %v414, 20
        %v1278 = vpop.permute.xlu0 %1277
        %1279 = vrot.lane.b32.xlu0 %v415, 20
        %v1280 = vpop.permute.xlu0 %1279
        %1281 = vrot.lane.b32.xlu0 %v416, 20
        %v1282 = vpop.permute.xlu0 %1281
        %1283 = vrot.lane.b32.xlu0 %v417, 20
        %v1284 = vpop.permute.xlu0 %1283
        %1285 = vrot.lane.b32.xlu0 %v418, 20
        %v1286 = vpop.permute.xlu0 %1285
        %1287 = vrot.lane.b32.xlu0 %v419, 20
        %v1288 = vpop.permute.xlu0 %1287
        %1289 = vrot.lane.b32.xlu0 %v420, 20
        %v1290 = vpop.permute.xlu0 %1289
        %1291 = vrot.lane.b32.xlu0 %v421, 20
        %v1292 = vpop.permute.xlu0 %1291
        %1293 = vrot.lane.b32.xlu0 %v422, 20
        %v1294 = vpop.permute.xlu0 %1293
        %1295 = vrot.lane.b32.xlu0 %v423, 20
        %v1296 = vpop.permute.xlu0 %1295
        %1297 = vrot.lane.b32.xlu0 %v424, 20
        %v1298 = vpop.permute.xlu0 %1297
        %1299 = vrot.lane.b32.xlu0 %v425, 20
        %v1300 = vpop.permute.xlu0 %1299
        %1301 = vrot.lane.b32.xlu0 %v426, 20
        %v1302 = vpop.permute.xlu0 %1301
        %1303 = vrot.lane.b32.xlu0 %v427, 20
        %v1304 = vpop.permute.xlu0 %1303
        %1305 = vrot.lane.b32.xlu0 %v428, 20
        %v1306 = vpop.permute.xlu0 %1305
        %1307 = vrot.lane.b32.xlu0 %v429, 20
        %v1308 = vpop.permute.xlu0 %1307
        %1309 = vrot.lane.b32.xlu0 %v430, 20
        %v1310 = vpop.permute.xlu0 %1309
        %1375 = vrot.lane.b32.xlu0 %v431, 24
        %v1376 = vpop.permute.xlu0 %1375
        %1377 = vrot.lane.b32.xlu0 %v432, 24
        %v1378 = vpop.permute.xlu0 %1377
        %1379 = vrot.lane.b32.xlu0 %v433, 24
        %v1380 = vpop.permute.xlu0 %1379
        %1381 = vrot.lane.b32.xlu0 %v434, 24
        %v1382 = vpop.permute.xlu0 %1381
        %1383 = vrot.lane.b32.xlu0 %v435, 24
        %v1384 = vpop.permute.xlu0 %1383
        %1385 = vrot.lane.b32.xlu0 %v436, 24
        %v1386 = vpop.permute.xlu0 %1385
        %1387 = vrot.lane.b32.xlu0 %v437, 24
        %v1388 = vpop.permute.xlu0 %1387
        %1389 = vrot.lane.b32.xlu0 %v438, 24
        %v1390 = vpop.permute.xlu0 %1389
        %1391 = vrot.lane.b32.xlu0 %v439, 24
        %v1392 = vpop.permute.xlu0 %1391
        %1393 = vrot.lane.b32.xlu0 %v440, 24
        %v1394 = vpop.permute.xlu0 %1393
        %1395 = vrot.lane.b32.xlu0 %v441, 24
        %v1396 = vpop.permute.xlu0 %1395
        %1397 = vrot.lane.b32.xlu0 %v442, 24
        %v1398 = vpop.permute.xlu0 %1397
        %1399 = vrot.lane.b32.xlu0 %v443, 24
        %v1400 = vpop.permute.xlu0 %1399
        %1401 = vrot.lane.b32.xlu0 %v444, 24
        %v1402 = vpop.permute.xlu0 %1401
        %1403 = vrot.lane.b32.xlu0 %v445, 24
        %v1404 = vpop.permute.xlu0 %1403
        %1405 = vrot.lane.b32.xlu0 %v446, 24
        %v1406 = vpop.permute.xlu0 %1405
        %1407 = vrot.lane.b32.xlu0 %v447, 24
        %v1408 = vpop.permute.xlu0 %1407
        %1409 = vrot.lane.b32.xlu0 %v448, 24
        %v1410 = vpop.permute.xlu0 %1409
        %1411 = vrot.lane.b32.xlu0 %v449, 24
        %v1412 = vpop.permute.xlu0 %1411
        %1413 = vrot.lane.b32.xlu0 %v450, 24
        %v1414 = vpop.permute.xlu0 %1413
        %1415 = vrot.lane.b32.xlu0 %v451, 24
        %v1416 = vpop.permute.xlu0 %1415
        %1417 = vrot.lane.b32.xlu0 %v452, 24
        %v1418 = vpop.permute.xlu0 %1417
        %1419 = vrot.lane.b32.xlu0 %v453, 24
        %v1420 = vpop.permute.xlu0 %1419
        %1421 = vrot.lane.b32.xlu0 %v454, 24
        %v1422 = vpop.permute.xlu0 %1421
        %1423 = vrot.lane.b32.xlu0 %v455, 24
        %v1424 = vpop.permute.xlu0 %1423
        %1425 = vrot.lane.b32.xlu0 %v456, 24
        %v1426 = vpop.permute.xlu0 %1425
        %1427 = vrot.lane.b32.xlu0 %v457, 24
        %v1428 = vpop.permute.xlu0 %1427
        %1429 = vrot.lane.b32.xlu0 %v458, 24
        %v1430 = vpop.permute.xlu0 %1429
        %1431 = vrot.lane.b32.xlu0 %v459, 24
        %v1432 = vpop.permute.xlu0 %1431
        %1433 = vrot.lane.b32.xlu0 %v460, 24
        %v1434 = vpop.permute.xlu0 %1433
        %1435 = vrot.lane.b32.xlu0 %v461, 24
        %v1436 = vpop.permute.xlu0 %1435
        %1437 = vrot.lane.b32.xlu0 %v462, 24
        %v1438 = vpop.permute.xlu0 %1437
        %1503 = vrot.lane.b32.xlu0 %v463, 28
        %v1504 = vpop.permute.xlu0 %1503
        %1505 = vrot.lane.b32.xlu0 %v464, 28
        %v1506 = vpop.permute.xlu0 %1505
        %1507 = vrot.lane.b32.xlu0 %v465, 28
        %v1508 = vpop.permute.xlu0 %1507
        %1509 = vrot.lane.b32.xlu0 %v466, 28
        %v1510 = vpop.permute.xlu0 %1509
        %1511 = vrot.lane.b32.xlu0 %v467, 28
        %v1512 = vpop.permute.xlu0 %1511
        %1513 = vrot.lane.b32.xlu0 %v468, 28
        %v1514 = vpop.permute.xlu0 %1513
        %1515 = vrot.lane.b32.xlu0 %v469, 28
        %v1516 = vpop.permute.xlu0 %1515
        %1517 = vrot.lane.b32.xlu0 %v470, 28
        %v1518 = vpop.permute.xlu0 %1517
        %1519 = vrot.lane.b32.xlu0 %v471, 28
        %v1520 = vpop.permute.xlu0 %1519
        %1521 = vrot.lane.b32.xlu0 %v472, 28
        %v1522 = vpop.permute.xlu0 %1521
        %1523 = vrot.lane.b32.xlu0 %v473, 28
        %v1524 = vpop.permute.xlu0 %1523
        %1525 = vrot.lane.b32.xlu0 %v474, 28
        %v1526 = vpop.permute.xlu0 %1525
        %1527 = vrot.lane.b32.xlu0 %v475, 28
        %v1528 = vpop.permute.xlu0 %1527
        %1529 = vrot.lane.b32.xlu0 %v476, 28
        %v1530 = vpop.permute.xlu0 %1529
        %1531 = vrot.lane.b32.xlu0 %v477, 28
        %v1532 = vpop.permute.xlu0 %1531
        %1533 = vrot.lane.b32.xlu0 %v478, 28
        %v1534 = vpop.permute.xlu0 %1533
        %1535 = vrot.lane.b32.xlu0 %v479, 28
        %v1536 = vpop.permute.xlu0 %1535
        %1537 = vrot.lane.b32.xlu0 %v480, 28
        %v1538 = vpop.permute.xlu0 %1537
        %1539 = vrot.lane.b32.xlu0 %v481, 28
        %v1540 = vpop.permute.xlu0 %1539
        %1541 = vrot.lane.b32.xlu0 %v482, 28
        %v1542 = vpop.permute.xlu0 %1541
        %1543 = vrot.lane.b32.xlu0 %v483, 28
        %v1544 = vpop.permute.xlu0 %1543
        %1545 = vrot.lane.b32.xlu0 %v484, 28
        %v1546 = vpop.permute.xlu0 %1545
        %1547 = vrot.lane.b32.xlu0 %v485, 28
        %v1548 = vpop.permute.xlu0 %1547
        %1549 = vrot.lane.b32.xlu0 %v486, 28
        %v1550 = vpop.permute.xlu0 %1549
        %1551 = vrot.lane.b32.xlu0 %v487, 28
        %v1552 = vpop.permute.xlu0 %1551
        %1553 = vrot.lane.b32.xlu0 %v488, 28
        %v1554 = vpop.permute.xlu0 %1553
        %1555 = vrot.lane.b32.xlu0 %v489, 28
        %v1556 = vpop.permute.xlu0 %1555
        %1557 = vrot.lane.b32.xlu0 %v490, 28
        %v1558 = vpop.permute.xlu0 %1557
        %1559 = vrot.lane.b32.xlu0 %v491, 28
        %v1560 = vpop.permute.xlu0 %1559
        %1561 = vrot.lane.b32.xlu0 %v492, 28
        %v1562 = vpop.permute.xlu0 %1561
        %1563 = vrot.lane.b32.xlu0 %v493, 28
        %v1564 = vpop.permute.xlu0 %1563
        %1565 = vrot.lane.b32.xlu0 %v494, 28
        %v1566 = vpop.permute.xlu0 %1565
        %1631 = vrot.lane.b32.xlu0 %v240, 32
        %v1632 = vpop.permute.xlu0 %1631
        %1633 = vrot.lane.b32.xlu0 %v495, 32
        %v1634 = vpop.permute.xlu0 %1633
        %1635 = vrot.lane.b32.xlu0 %v242, 32
        %v1636 = vpop.permute.xlu0 %1635
        %1637 = vrot.lane.b32.xlu0 %v496, 32
        %v1638 = vpop.permute.xlu0 %1637
        %1639 = vrot.lane.b32.xlu0 %v244, 32
        %v1640 = vpop.permute.xlu0 %1639
        %1641 = vrot.lane.b32.xlu0 %v497, 32
        %v1642 = vpop.permute.xlu0 %1641
        %1643 = vrot.lane.b32.xlu0 %v246, 32
        %v1644 = vpop.permute.xlu0 %1643
        %1645 = vrot.lane.b32.xlu0 %v498, 32
        %v1646 = vpop.permute.xlu0 %1645
        %1647 = vrot.lane.b32.xlu0 %v248, 32
        %v1648 = vpop.permute.xlu0 %1647
        %1649 = vrot.lane.b32.xlu0 %v499, 32
        %v1650 = vpop.permute.xlu0 %1649
        %1651 = vrot.lane.b32.xlu0 %v250, 32
        %v1652 = vpop.permute.xlu0 %1651
        %1653 = vrot.lane.b32.xlu0 %v500, 32
        %v1654 = vpop.permute.xlu0 %1653
        %1655 = vrot.lane.b32.xlu0 %v252, 32
        %v1656 = vpop.permute.xlu0 %1655
        %1657 = vrot.lane.b32.xlu0 %v501, 32
        %v1658 = vpop.permute.xlu0 %1657
        %1659 = vrot.lane.b32.xlu0 %v254, 32
        %v1660 = vpop.permute.xlu0 %1659
        %1661 = vrot.lane.b32.xlu0 %v502, 32
        %v1662 = vpop.permute.xlu0 %1661
        %1663 = vrot.lane.b32.xlu0 %v256, 32
        %v1664 = vpop.permute.xlu0 %1663
        %1665 = vrot.lane.b32.xlu0 %v503, 32
        %v1666 = vpop.permute.xlu0 %1665
        %1667 = vrot.lane.b32.xlu0 %v258, 32
        %v1668 = vpop.permute.xlu0 %1667
        %1669 = vrot.lane.b32.xlu0 %v504, 32
        %v1670 = vpop.permute.xlu0 %1669
        %1671 = vrot.lane.b32.xlu0 %v260, 32
        %v1672 = vpop.permute.xlu0 %1671
        %1673 = vrot.lane.b32.xlu0 %v505, 32
        %v1674 = vpop.permute.xlu0 %1673
        %1675 = vrot.lane.b32.xlu0 %v262, 32
        %v1676 = vpop.permute.xlu0 %1675
        %1677 = vrot.lane.b32.xlu0 %v506, 32
        %v1678 = vpop.permute.xlu0 %1677
        %1679 = vrot.lane.b32.xlu0 %v264, 32
        %v1680 = vpop.permute.xlu0 %1679
        %1681 = vrot.lane.b32.xlu0 %v507, 32
        %v1682 = vpop.permute.xlu0 %1681
        %1683 = vrot.lane.b32.xlu0 %v266, 32
        %v1684 = vpop.permute.xlu0 %1683
        %1685 = vrot.lane.b32.xlu0 %v508, 32
        %v1686 = vpop.permute.xlu0 %1685
        %1687 = vrot.lane.b32.xlu0 %v268, 32
        %v1688 = vpop.permute.xlu0 %1687
        %1689 = vrot.lane.b32.xlu0 %v509, 32
        %v1690 = vpop.permute.xlu0 %1689
        %1691 = vrot.lane.b32.xlu0 %v270, 32
        %v1692 = vpop.permute.xlu0 %1691
        %1693 = vrot.lane.b32.xlu0 %v510, 32
        %v1694 = vpop.permute.xlu0 %1693
        %1743 = vrot.lane.b32.xlu0 %v272, 36
        %v1744 = vpop.permute.xlu0 %1743
        %1745 = vrot.lane.b32.xlu0 %v511, 36
        %v1746 = vpop.permute.xlu0 %1745
        %1747 = vrot.lane.b32.xlu0 %v274, 36
        %v1748 = vpop.permute.xlu0 %1747
        %1749 = vrot.lane.b32.xlu0 %v512, 36
        %v1750 = vpop.permute.xlu0 %1749
        %1751 = vrot.lane.b32.xlu0 %v276, 36
        %v1752 = vpop.permute.xlu0 %1751
        %1753 = vrot.lane.b32.xlu0 %v513, 36
        %v1754 = vpop.permute.xlu0 %1753
        %1755 = vrot.lane.b32.xlu0 %v278, 36
        %v1756 = vpop.permute.xlu0 %1755
        %1757 = vrot.lane.b32.xlu0 %v514, 36
        %v1758 = vpop.permute.xlu0 %1757
        %1759 = vrot.lane.b32.xlu0 %v280, 36
        %v1760 = vpop.permute.xlu0 %1759
        %1761 = vrot.lane.b32.xlu0 %v515, 36
        %v1762 = vpop.permute.xlu0 %1761
        %1763 = vrot.lane.b32.xlu0 %v282, 36
        %v1764 = vpop.permute.xlu0 %1763
        %1765 = vrot.lane.b32.xlu0 %v516, 36
        %v1766 = vpop.permute.xlu0 %1765
        %1767 = vrot.lane.b32.xlu0 %v284, 36
        %v1768 = vpop.permute.xlu0 %1767
        %1769 = vrot.lane.b32.xlu0 %v517, 36
        %v1770 = vpop.permute.xlu0 %1769
        %1771 = vrot.lane.b32.xlu0 %v286, 36
        %v1772 = vpop.permute.xlu0 %1771
        %1773 = vrot.lane.b32.xlu0 %v518, 36
        %v1774 = vpop.permute.xlu0 %1773
        %1775 = vrot.lane.b32.xlu0 %v288, 36
        %v1776 = vpop.permute.xlu0 %1775
        %1777 = vrot.lane.b32.xlu0 %v519, 36
        %v1778 = vpop.permute.xlu0 %1777
        %1779 = vrot.lane.b32.xlu0 %v290, 36
        %v1780 = vpop.permute.xlu0 %1779
        %1781 = vrot.lane.b32.xlu0 %v520, 36
        %v1782 = vpop.permute.xlu0 %1781
        %1783 = vrot.lane.b32.xlu0 %v292, 36
        %v1784 = vpop.permute.xlu0 %1783
        %1785 = vrot.lane.b32.xlu0 %v521, 36
        %v1786 = vpop.permute.xlu0 %1785
        %1787 = vrot.lane.b32.xlu0 %v294, 36
        %v1788 = vpop.permute.xlu0 %1787
        %1789 = vrot.lane.b32.xlu0 %v522, 36
        %v1790 = vpop.permute.xlu0 %1789
        %1791 = vrot.lane.b32.xlu0 %v296, 36
        %v1792 = vpop.permute.xlu0 %1791
        %1793 = vrot.lane.b32.xlu0 %v523, 36
        %v1794 = vpop.permute.xlu0 %1793
        %1795 = vrot.lane.b32.xlu0 %v298, 36
        %v1796 = vpop.permute.xlu0 %1795
        %1797 = vrot.lane.b32.xlu0 %v524, 36
        %v1798 = vpop.permute.xlu0 %1797
        %1799 = vrot.lane.b32.xlu0 %v300, 36
        %v1800 = vpop.permute.xlu0 %1799
        %1801 = vrot.lane.b32.xlu0 %v525, 36
        %v1802 = vpop.permute.xlu0 %1801
        %1803 = vrot.lane.b32.xlu0 %v302, 36
        %v1804 = vpop.permute.xlu0 %1803
        %1805 = vrot.lane.b32.xlu0 %v526, 36
        %v1806 = vpop.permute.xlu0 %1805
        %1855 = vrot.lane.b32.xlu0 %v304, 40
        %v1856 = vpop.permute.xlu0 %1855
        %1857 = vrot.lane.b32.xlu0 %v527, 40
        %v1858 = vpop.permute.xlu0 %1857
        %1859 = vrot.lane.b32.xlu0 %v306, 40
        %v1860 = vpop.permute.xlu0 %1859
        %1861 = vrot.lane.b32.xlu0 %v528, 40
        %v1862 = vpop.permute.xlu0 %1861
        %1863 = vrot.lane.b32.xlu0 %v308, 40
        %v1864 = vpop.permute.xlu0 %1863
        %1865 = vrot.lane.b32.xlu0 %v529, 40
        %v1866 = vpop.permute.xlu0 %1865
        %1867 = vrot.lane.b32.xlu0 %v310, 40
        %v1868 = vpop.permute.xlu0 %1867
        %1869 = vrot.lane.b32.xlu0 %v530, 40
        %v1870 = vpop.permute.xlu0 %1869
        %1871 = vrot.lane.b32.xlu0 %v312, 40
        %v1872 = vpop.permute.xlu0 %1871
        %1873 = vrot.lane.b32.xlu0 %v531, 40
        %v1874 = vpop.permute.xlu0 %1873
        %1875 = vrot.lane.b32.xlu0 %v314, 40
        %v1876 = vpop.permute.xlu0 %1875
        %1877 = vrot.lane.b32.xlu0 %v532, 40
        %v1878 = vpop.permute.xlu0 %1877
        %1879 = vrot.lane.b32.xlu0 %v316, 40
        %v1880 = vpop.permute.xlu0 %1879
        %1881 = vrot.lane.b32.xlu0 %v533, 40
        %v1882 = vpop.permute.xlu0 %1881
        %1883 = vrot.lane.b32.xlu0 %v318, 40
        %v1884 = vpop.permute.xlu0 %1883
        %1885 = vrot.lane.b32.xlu0 %v534, 40
        %v1886 = vpop.permute.xlu0 %1885
        %1887 = vrot.lane.b32.xlu0 %v320, 40
        %v1888 = vpop.permute.xlu0 %1887
        %1889 = vrot.lane.b32.xlu0 %v535, 40
        %v1890 = vpop.permute.xlu0 %1889
        %1891 = vrot.lane.b32.xlu0 %v322, 40
        %v1892 = vpop.permute.xlu0 %1891
        %1893 = vrot.lane.b32.xlu0 %v536, 40
        %v1894 = vpop.permute.xlu0 %1893
        %1895 = vrot.lane.b32.xlu0 %v324, 40
        %v1896 = vpop.permute.xlu0 %1895
        %1897 = vrot.lane.b32.xlu0 %v537, 40
        %v1898 = vpop.permute.xlu0 %1897
        %1899 = vrot.lane.b32.xlu0 %v326, 40
        %v1900 = vpop.permute.xlu0 %1899
        %1901 = vrot.lane.b32.xlu0 %v538, 40
        %v1902 = vpop.permute.xlu0 %1901
        %1903 = vrot.lane.b32.xlu0 %v328, 40
        %v1904 = vpop.permute.xlu0 %1903
        %1905 = vrot.lane.b32.xlu0 %v539, 40
        %v1906 = vpop.permute.xlu0 %1905
        %1907 = vrot.lane.b32.xlu0 %v330, 40
        %v1908 = vpop.permute.xlu0 %1907
        %1909 = vrot.lane.b32.xlu0 %v540, 40
        %v1910 = vpop.permute.xlu0 %1909
        %1911 = vrot.lane.b32.xlu0 %v332, 40
        %v1912 = vpop.permute.xlu0 %1911
        %1913 = vrot.lane.b32.xlu0 %v541, 40
        %v1914 = vpop.permute.xlu0 %1913
        %1915 = vrot.lane.b32.xlu0 %v334, 40
        %v1916 = vpop.permute.xlu0 %1915
        %1917 = vrot.lane.b32.xlu0 %v542, 40
        %v1918 = vpop.permute.xlu0 %1917
        %1967 = vrot.lane.b32.xlu0 %v336, 44
        %v1968 = vpop.permute.xlu0 %1967
        %1969 = vrot.lane.b32.xlu0 %v543, 44
        %v1970 = vpop.permute.xlu0 %1969
        %1971 = vrot.lane.b32.xlu0 %v338, 44
        %v1972 = vpop.permute.xlu0 %1971
        %1973 = vrot.lane.b32.xlu0 %v544, 44
        %v1974 = vpop.permute.xlu0 %1973
        %1975 = vrot.lane.b32.xlu0 %v340, 44
        %v1976 = vpop.permute.xlu0 %1975
        %1977 = vrot.lane.b32.xlu0 %v545, 44
        %v1978 = vpop.permute.xlu0 %1977
        %1979 = vrot.lane.b32.xlu0 %v342, 44
        %v1980 = vpop.permute.xlu0 %1979
        %1981 = vrot.lane.b32.xlu0 %v546, 44
        %v1982 = vpop.permute.xlu0 %1981
        %1983 = vrot.lane.b32.xlu0 %v344, 44
        %v1984 = vpop.permute.xlu0 %1983
        %1985 = vrot.lane.b32.xlu0 %v547, 44
        %v1986 = vpop.permute.xlu0 %1985
        %1987 = vrot.lane.b32.xlu0 %v346, 44
        %v1988 = vpop.permute.xlu0 %1987
        %1989 = vrot.lane.b32.xlu0 %v548, 44
        %v1990 = vpop.permute.xlu0 %1989
        %1991 = vrot.lane.b32.xlu0 %v348, 44
        %v1992 = vpop.permute.xlu0 %1991
        %1993 = vrot.lane.b32.xlu0 %v549, 44
        %v1994 = vpop.permute.xlu0 %1993
        %1995 = vrot.lane.b32.xlu0 %v350, 44
        %v1996 = vpop.permute.xlu0 %1995
        %1997 = vrot.lane.b32.xlu0 %v550, 44
        %v1998 = vpop.permute.xlu0 %1997
        %1999 = vrot.lane.b32.xlu0 %v352, 44
        %v2000 = vpop.permute.xlu0 %1999
        %2001 = vrot.lane.b32.xlu0 %v551, 44
        %v2002 = vpop.permute.xlu0 %2001
        %2003 = vrot.lane.b32.xlu0 %v354, 44
        %v2004 = vpop.permute.xlu0 %2003
        %2005 = vrot.lane.b32.xlu0 %v552, 44
        %v2006 = vpop.permute.xlu0 %2005
        %2007 = vrot.lane.b32.xlu0 %v356, 44
        %v2008 = vpop.permute.xlu0 %2007
        %2009 = vrot.lane.b32.xlu0 %v553, 44
        %v2010 = vpop.permute.xlu0 %2009
        %2011 = vrot.lane.b32.xlu0 %v358, 44
        %v2012 = vpop.permute.xlu0 %2011
        %2013 = vrot.lane.b32.xlu0 %v554, 44
        %v2014 = vpop.permute.xlu0 %2013
        %2015 = vrot.lane.b32.xlu0 %v360, 44
        %v2016 = vpop.permute.xlu0 %2015
        %2017 = vrot.lane.b32.xlu0 %v555, 44
        %v2018 = vpop.permute.xlu0 %2017
        %2019 = vrot.lane.b32.xlu0 %v362, 44
        %v2020 = vpop.permute.xlu0 %2019
        %2021 = vrot.lane.b32.xlu0 %v556, 44
        %v2022 = vpop.permute.xlu0 %2021
        %2023 = vrot.lane.b32.xlu0 %v364, 44
        %v2024 = vpop.permute.xlu0 %2023
        %2025 = vrot.lane.b32.xlu0 %v557, 44
        %v2026 = vpop.permute.xlu0 %2025
        %2027 = vrot.lane.b32.xlu0 %v366, 44
        %v2028 = vpop.permute.xlu0 %2027
        %2029 = vrot.lane.b32.xlu0 %v558, 44
        %v2030 = vpop.permute.xlu0 %2029
        %2079 = vrot.lane.b32.xlu0 %v368, 48
        %v2080 = vpop.permute.xlu0 %2079
        %2081 = vrot.lane.b32.xlu0 %v559, 48
        %v2082 = vpop.permute.xlu0 %2081
        %2083 = vrot.lane.b32.xlu0 %v370, 48
        %v2084 = vpop.permute.xlu0 %2083
        %2085 = vrot.lane.b32.xlu0 %v560, 48
        %v2086 = vpop.permute.xlu0 %2085
        %2087 = vrot.lane.b32.xlu0 %v372, 48
        %v2088 = vpop.permute.xlu0 %2087
        %2089 = vrot.lane.b32.xlu0 %v561, 48
        %v2090 = vpop.permute.xlu0 %2089
        %2091 = vrot.lane.b32.xlu0 %v374, 48
        %v2092 = vpop.permute.xlu0 %2091
        %2093 = vrot.lane.b32.xlu0 %v562, 48
        %v2094 = vpop.permute.xlu0 %2093
        %2095 = vrot.lane.b32.xlu0 %v376, 48
        %v2096 = vpop.permute.xlu0 %2095
        %2097 = vrot.lane.b32.xlu0 %v563, 48
        %v2098 = vpop.permute.xlu0 %2097
        %2099 = vrot.lane.b32.xlu0 %v378, 48
        %v2100 = vpop.permute.xlu0 %2099
        %2101 = vrot.lane.b32.xlu0 %v564, 48
        %v2102 = vpop.permute.xlu0 %2101
        %2103 = vrot.lane.b32.xlu0 %v380, 48
        %v2104 = vpop.permute.xlu0 %2103
        %2105 = vrot.lane.b32.xlu0 %v565, 48
        %v2106 = vpop.permute.xlu0 %2105
        %2107 = vrot.lane.b32.xlu0 %v382, 48
        %v2108 = vpop.permute.xlu0 %2107
        %2109 = vrot.lane.b32.xlu0 %v566, 48
        %v2110 = vpop.permute.xlu0 %2109
        %2111 = vrot.lane.b32.xlu0 %v384, 48
        %v2112 = vpop.permute.xlu0 %2111
        %2113 = vrot.lane.b32.xlu0 %v567, 48
        %v2114 = vpop.permute.xlu0 %2113
        %2115 = vrot.lane.b32.xlu0 %v386, 48
        %v2116 = vpop.permute.xlu0 %2115
        %2117 = vrot.lane.b32.xlu0 %v568, 48
        %v2118 = vpop.permute.xlu0 %2117
        %2119 = vrot.lane.b32.xlu0 %v388, 48
        %v2120 = vpop.permute.xlu0 %2119
        %2121 = vrot.lane.b32.xlu0 %v569, 48
        %v2122 = vpop.permute.xlu0 %2121
        %2123 = vrot.lane.b32.xlu0 %v390, 48
        %v2124 = vpop.permute.xlu0 %2123
        %2125 = vrot.lane.b32.xlu0 %v570, 48
        %v2126 = vpop.permute.xlu0 %2125
        %2127 = vrot.lane.b32.xlu0 %v392, 48
        %v2128 = vpop.permute.xlu0 %2127
        %2129 = vrot.lane.b32.xlu0 %v571, 48
        %v2130 = vpop.permute.xlu0 %2129
        %2131 = vrot.lane.b32.xlu0 %v394, 48
        %v2132 = vpop.permute.xlu0 %2131
        %2133 = vrot.lane.b32.xlu0 %v572, 48
        %v2134 = vpop.permute.xlu0 %2133
        %2135 = vrot.lane.b32.xlu0 %v396, 48
        %v2136 = vpop.permute.xlu0 %2135
        %2137 = vrot.lane.b32.xlu0 %v573, 48
        %v2138 = vpop.permute.xlu0 %2137
        %2139 = vrot.lane.b32.xlu0 %v398, 48
        %v2140 = vpop.permute.xlu0 %2139
        %2141 = vrot.lane.b32.xlu0 %v574, 48
        %v2142 = vpop.permute.xlu0 %2141
        %2191 = vrot.lane.b32.xlu0 %v400, 52
        %v2192 = vpop.permute.xlu0 %2191
        %2193 = vrot.lane.b32.xlu0 %v575, 52
        %v2194 = vpop.permute.xlu0 %2193
        %2195 = vrot.lane.b32.xlu0 %v402, 52
        %v2196 = vpop.permute.xlu0 %2195
        %2197 = vrot.lane.b32.xlu0 %v576, 52
        %v2198 = vpop.permute.xlu0 %2197
        %2199 = vrot.lane.b32.xlu0 %v404, 52
        %v2200 = vpop.permute.xlu0 %2199
        %2201 = vrot.lane.b32.xlu0 %v577, 52
        %v2202 = vpop.permute.xlu0 %2201
        %2203 = vrot.lane.b32.xlu0 %v406, 52
        %v2204 = vpop.permute.xlu0 %2203
        %2205 = vrot.lane.b32.xlu0 %v578, 52
        %v2206 = vpop.permute.xlu0 %2205
        %2207 = vrot.lane.b32.xlu0 %v408, 52
        %v2208 = vpop.permute.xlu0 %2207
        %2209 = vrot.lane.b32.xlu0 %v579, 52
        %v2210 = vpop.permute.xlu0 %2209
        %2211 = vrot.lane.b32.xlu0 %v410, 52
        %v2212 = vpop.permute.xlu0 %2211
        %2213 = vrot.lane.b32.xlu0 %v580, 52
        %v2214 = vpop.permute.xlu0 %2213
        %2215 = vrot.lane.b32.xlu0 %v412, 52
        %v2216 = vpop.permute.xlu0 %2215
        %2217 = vrot.lane.b32.xlu0 %v581, 52
        %v2218 = vpop.permute.xlu0 %2217
        %2219 = vrot.lane.b32.xlu0 %v414, 52
        %v2220 = vpop.permute.xlu0 %2219
        %2221 = vrot.lane.b32.xlu0 %v582, 52
        %v2222 = vpop.permute.xlu0 %2221
        %2223 = vrot.lane.b32.xlu0 %v416, 52
        %v2224 = vpop.permute.xlu0 %2223
        %2225 = vrot.lane.b32.xlu0 %v583, 52
        %v2226 = vpop.permute.xlu0 %2225
        %2227 = vrot.lane.b32.xlu0 %v418, 52
        %v2228 = vpop.permute.xlu0 %2227
        %2229 = vrot.lane.b32.xlu0 %v584, 52
        %v2230 = vpop.permute.xlu0 %2229
        %2231 = vrot.lane.b32.xlu0 %v420, 52
        %v2232 = vpop.permute.xlu0 %2231
        %2233 = vrot.lane.b32.xlu0 %v585, 52
        %v2234 = vpop.permute.xlu0 %2233
        %2235 = vrot.lane.b32.xlu0 %v422, 52
        %v2236 = vpop.permute.xlu0 %2235
        %2237 = vrot.lane.b32.xlu0 %v586, 52
        %v2238 = vpop.permute.xlu0 %2237
        %2239 = vrot.lane.b32.xlu0 %v424, 52
        %v2240 = vpop.permute.xlu0 %2239
        %2241 = vrot.lane.b32.xlu0 %v587, 52
        %v2242 = vpop.permute.xlu0 %2241
        %2243 = vrot.lane.b32.xlu0 %v426, 52
        %v2244 = vpop.permute.xlu0 %2243
        %2245 = vrot.lane.b32.xlu0 %v588, 52
        %v2246 = vpop.permute.xlu0 %2245
        %2247 = vrot.lane.b32.xlu0 %v428, 52
        %v2248 = vpop.permute.xlu0 %2247
        %2249 = vrot.lane.b32.xlu0 %v589, 52
        %v2250 = vpop.permute.xlu0 %2249
        %2251 = vrot.lane.b32.xlu0 %v430, 52
        %v2252 = vpop.permute.xlu0 %2251
        %2253 = vrot.lane.b32.xlu0 %v590, 52
        %v2254 = vpop.permute.xlu0 %2253
        %2303 = vrot.lane.b32.xlu0 %v432, 56
        %v2304 = vpop.permute.xlu0 %2303
        %2305 = vrot.lane.b32.xlu0 %v591, 56
        %v2306 = vpop.permute.xlu0 %2305
        %2307 = vrot.lane.b32.xlu0 %v434, 56
        %v2308 = vpop.permute.xlu0 %2307
        %2309 = vrot.lane.b32.xlu0 %v592, 56
        %v2310 = vpop.permute.xlu0 %2309
        %2311 = vrot.lane.b32.xlu0 %v436, 56
        %v2312 = vpop.permute.xlu0 %2311
        %2313 = vrot.lane.b32.xlu0 %v593, 56
        %v2314 = vpop.permute.xlu0 %2313
        %2315 = vrot.lane.b32.xlu0 %v438, 56
        %v2316 = vpop.permute.xlu0 %2315
        %2317 = vrot.lane.b32.xlu0 %v594, 56
        %v2318 = vpop.permute.xlu0 %2317
        %2319 = vrot.lane.b32.xlu0 %v440, 56
        %v2320 = vpop.permute.xlu0 %2319
        %2321 = vrot.lane.b32.xlu0 %v595, 56
        %v2322 = vpop.permute.xlu0 %2321
        %2323 = vrot.lane.b32.xlu0 %v442, 56
        %v2324 = vpop.permute.xlu0 %2323
        %2325 = vrot.lane.b32.xlu0 %v596, 56
        %v2326 = vpop.permute.xlu0 %2325
        %2327 = vrot.lane.b32.xlu0 %v444, 56
        %v2328 = vpop.permute.xlu0 %2327
        %2329 = vrot.lane.b32.xlu0 %v597, 56
        %v2330 = vpop.permute.xlu0 %2329
        %2331 = vrot.lane.b32.xlu0 %v446, 56
        %v2332 = vpop.permute.xlu0 %2331
        %2333 = vrot.lane.b32.xlu0 %v598, 56
        %v2334 = vpop.permute.xlu0 %2333
        %2335 = vrot.lane.b32.xlu0 %v448, 56
        %v2336 = vpop.permute.xlu0 %2335
        %2337 = vrot.lane.b32.xlu0 %v599, 56
        %v2338 = vpop.permute.xlu0 %2337
        %2339 = vrot.lane.b32.xlu0 %v450, 56
        %v2340 = vpop.permute.xlu0 %2339
        %2341 = vrot.lane.b32.xlu0 %v600, 56
        %v2342 = vpop.permute.xlu0 %2341
        %2343 = vrot.lane.b32.xlu0 %v452, 56
        %v2344 = vpop.permute.xlu0 %2343
        %2345 = vrot.lane.b32.xlu0 %v601, 56
        %v2346 = vpop.permute.xlu0 %2345
        %2347 = vrot.lane.b32.xlu0 %v454, 56
        %v2348 = vpop.permute.xlu0 %2347
        %2349 = vrot.lane.b32.xlu0 %v602, 56
        %v2350 = vpop.permute.xlu0 %2349
        %2351 = vrot.lane.b32.xlu0 %v456, 56
        %v2352 = vpop.permute.xlu0 %2351
        %2353 = vrot.lane.b32.xlu0 %v603, 56
        %v2354 = vpop.permute.xlu0 %2353
        %2355 = vrot.lane.b32.xlu0 %v458, 56
        %v2356 = vpop.permute.xlu0 %2355
        %2357 = vrot.lane.b32.xlu0 %v604, 56
        %v2358 = vpop.permute.xlu0 %2357
        %2359 = vrot.lane.b32.xlu0 %v460, 56
        %v2360 = vpop.permute.xlu0 %2359
        %2361 = vrot.lane.b32.xlu0 %v605, 56
        %v2362 = vpop.permute.xlu0 %2361
        %2363 = vrot.lane.b32.xlu0 %v462, 56
        %v2364 = vpop.permute.xlu0 %2363
        %2365 = vrot.lane.b32.xlu0 %v606, 56
        %v2366 = vpop.permute.xlu0 %2365
        %2415 = vrot.lane.b32.xlu0 %v464, 60
        %v2416 = vpop.permute.xlu0 %2415
        %2417 = vrot.lane.b32.xlu0 %v607, 60
        %v2418 = vpop.permute.xlu0 %2417
        %2419 = vrot.lane.b32.xlu0 %v466, 60
        %v2420 = vpop.permute.xlu0 %2419
        %2421 = vrot.lane.b32.xlu0 %v608, 60
        %v2422 = vpop.permute.xlu0 %2421
        %2423 = vrot.lane.b32.xlu0 %v468, 60
        %v2424 = vpop.permute.xlu0 %2423
        %2425 = vrot.lane.b32.xlu0 %v609, 60
        %v2426 = vpop.permute.xlu0 %2425
        %2427 = vrot.lane.b32.xlu0 %v470, 60
        %v2428 = vpop.permute.xlu0 %2427
        %2429 = vrot.lane.b32.xlu0 %v610, 60
        %v2430 = vpop.permute.xlu0 %2429
        %2431 = vrot.lane.b32.xlu0 %v472, 60
        %v2432 = vpop.permute.xlu0 %2431
        %2433 = vrot.lane.b32.xlu0 %v611, 60
        %v2434 = vpop.permute.xlu0 %2433
        %2435 = vrot.lane.b32.xlu0 %v474, 60
        %v2436 = vpop.permute.xlu0 %2435
        %2437 = vrot.lane.b32.xlu0 %v612, 60
        %v2438 = vpop.permute.xlu0 %2437
        %2439 = vrot.lane.b32.xlu0 %v476, 60
        %v2440 = vpop.permute.xlu0 %2439
        %2441 = vrot.lane.b32.xlu0 %v613, 60
        %v2442 = vpop.permute.xlu0 %2441
        %2443 = vrot.lane.b32.xlu0 %v478, 60
        %v2444 = vpop.permute.xlu0 %2443
        %2445 = vrot.lane.b32.xlu0 %v614, 60
        %v2446 = vpop.permute.xlu0 %2445
        %2447 = vrot.lane.b32.xlu0 %v480, 60
        %v2448 = vpop.permute.xlu0 %2447
        %2449 = vrot.lane.b32.xlu0 %v615, 60
        %v2450 = vpop.permute.xlu0 %2449
        %2451 = vrot.lane.b32.xlu0 %v482, 60
        %v2452 = vpop.permute.xlu0 %2451
        %2453 = vrot.lane.b32.xlu0 %v616, 60
        %v2454 = vpop.permute.xlu0 %2453
        %2455 = vrot.lane.b32.xlu0 %v484, 60
        %v2456 = vpop.permute.xlu0 %2455
        %2457 = vrot.lane.b32.xlu0 %v617, 60
        %v2458 = vpop.permute.xlu0 %2457
        %2459 = vrot.lane.b32.xlu0 %v486, 60
        %v2460 = vpop.permute.xlu0 %2459
        %2461 = vrot.lane.b32.xlu0 %v618, 60
        %v2462 = vpop.permute.xlu0 %2461
        %2463 = vrot.lane.b32.xlu0 %v488, 60
        %v2464 = vpop.permute.xlu0 %2463
        %2465 = vrot.lane.b32.xlu0 %v619, 60
        %v2466 = vpop.permute.xlu0 %2465
        %2467 = vrot.lane.b32.xlu0 %v490, 60
        %v2468 = vpop.permute.xlu0 %2467
        %2469 = vrot.lane.b32.xlu0 %v620, 60
        %v2470 = vpop.permute.xlu0 %2469
        %2471 = vrot.lane.b32.xlu0 %v492, 60
        %v2472 = vpop.permute.xlu0 %2471
        %2473 = vrot.lane.b32.xlu0 %v621, 60
        %v2474 = vpop.permute.xlu0 %2473
        %2475 = vrot.lane.b32.xlu0 %v494, 60
        %v2476 = vpop.permute.xlu0 %2475
        %2477 = vrot.lane.b32.xlu0 %v622, 60
        %v2478 = vpop.permute.xlu0 %2477
        %vm2511 = vcmask 31744
        %v2512 = vsel %vm2511, %v239, %v736
        %v2513 = vsel %vm2511, %v240, %v738
        %v2514 = vsel %vm2511, %v241, %v740
        %v2515 = vsel %vm2511, %v242, %v742
        %v2516 = vsel %vm2511, %v243, %v744
        %v2517 = vsel %vm2511, %v244, %v746
        %v2518 = vsel %vm2511, %v245, %v748
        %v2519 = vsel %vm2511, %v246, %v750
        %v2520 = vsel %vm2511, %v247, %v752
        %v2521 = vsel %vm2511, %v248, %v754
        %v2522 = vsel %vm2511, %v249, %v756
        %v2523 = vsel %vm2511, %v250, %v758
        %v2524 = vsel %vm2511, %v251, %v760
        %v2525 = vsel %vm2511, %v252, %v762
        %v2526 = vsel %vm2511, %v253, %v764
        %v2527 = vsel %vm2511, %v254, %v766
        %v2528 = vsel %vm2511, %v255, %v768
        %v2529 = vsel %vm2511, %v256, %v770
        %v2530 = vsel %vm2511, %v257, %v772
        %v2531 = vsel %vm2511, %v258, %v774
        %v2532 = vsel %vm2511, %v259, %v776
        %v2533 = vsel %vm2511, %v260, %v778
        %v2534 = vsel %vm2511, %v261, %v780
        %v2535 = vsel %vm2511, %v262, %v782
        %v2536 = vsel %vm2511, %v263, %v784
        %v2537 = vsel %vm2511, %v264, %v786
        %v2538 = vsel %vm2511, %v265, %v788
        %v2539 = vsel %vm2511, %v266, %v790
        %v2540 = vsel %vm2511, %v267, %v792
        %v2541 = vsel %vm2511, %v268, %v794
        %v2542 = vsel %vm2511, %v269, %v796
        %v2543 = vsel %vm2511, %v270, %v798
        %vm2544 = vcmask 64512
        %v2545 = vsel %vm2544, %v2512, %v864
        %v2546 = vsel %vm2544, %v2513, %v866
        %v2547 = vsel %vm2544, %v2514, %v868
        %v2548 = vsel %vm2544, %v2515, %v870
        %v2549 = vsel %vm2544, %v2516, %v872
        %v2550 = vsel %vm2544, %v2517, %v874
        %v2551 = vsel %vm2544, %v2518, %v876
        %v2552 = vsel %vm2544, %v2519, %v878
        %v2553 = vsel %vm2544, %v2520, %v880
        %v2554 = vsel %vm2544, %v2521, %v882
        %v2555 = vsel %vm2544, %v2522, %v884
        %v2556 = vsel %vm2544, %v2523, %v886
        %v2557 = vsel %vm2544, %v2524, %v888
        %v2558 = vsel %vm2544, %v2525, %v890
        %v2559 = vsel %vm2544, %v2526, %v892
        %v2560 = vsel %vm2544, %v2527, %v894
        %v2561 = vsel %vm2544, %v2528, %v896
        %v2562 = vsel %vm2544, %v2529, %v898
        %v2563 = vsel %vm2544, %v2530, %v900
        %v2564 = vsel %vm2544, %v2531, %v902
        %v2565 = vsel %vm2544, %v2532, %v904
        %v2566 = vsel %vm2544, %v2533, %v906
        %v2567 = vsel %vm2544, %v2534, %v908
        %v2568 = vsel %vm2544, %v2535, %v910
        %v2569 = vsel %vm2544, %v2536, %v912
        %v2570 = vsel %vm2544, %v2537, %v914
        %v2571 = vsel %vm2544, %v2538, %v916
        %v2572 = vsel %vm2544, %v2539, %v918
        %v2573 = vsel %vm2544, %v2540, %v920
        %v2574 = vsel %vm2544, %v2541, %v922
        %v2575 = vsel %vm2544, %v2542, %v924
        %v2576 = vsel %vm2544, %v2543, %v926
        %vm2577 = vcmask 97280
        %v2578 = vsel %vm2577, %v2545, %v992
        %v2579 = vsel %vm2577, %v2546, %v994
        %v2580 = vsel %vm2577, %v2547, %v996
        %v2581 = vsel %vm2577, %v2548, %v998
        %v2582 = vsel %vm2577, %v2549, %v1000
        %v2583 = vsel %vm2577, %v2550, %v1002
        %v2584 = vsel %vm2577, %v2551, %v1004
        %v2585 = vsel %vm2577, %v2552, %v1006
        %v2586 = vsel %vm2577, %v2553, %v1008
        %v2587 = vsel %vm2577, %v2554, %v1010
        %v2588 = vsel %vm2577, %v2555, %v1012
        %v2589 = vsel %vm2577, %v2556, %v1014
        %v2590 = vsel %vm2577, %v2557, %v1016
        %v2591 = vsel %vm2577, %v2558, %v1018
        %v2592 = vsel %vm2577, %v2559, %v1020
        %v2593 = vsel %vm2577, %v2560, %v1022
        %v2594 = vsel %vm2577, %v2561, %v1024
        %v2595 = vsel %vm2577, %v2562, %v1026
        %v2596 = vsel %vm2577, %v2563, %v1028
        %v2597 = vsel %vm2577, %v2564, %v1030
        %v2598 = vsel %vm2577, %v2565, %v1032
        %v2599 = vsel %vm2577, %v2566, %v1034
        %v2600 = vsel %vm2577, %v2567, %v1036
        %v2601 = vsel %vm2577, %v2568, %v1038
        %v2602 = vsel %vm2577, %v2569, %v1040
        %v2603 = vsel %vm2577, %v2570, %v1042
        %v2604 = vsel %vm2577, %v2571, %v1044
        %v2605 = vsel %vm2577, %v2572, %v1046
        %v2606 = vsel %vm2577, %v2573, %v1048
        %v2607 = vsel %vm2577, %v2574, %v1050
        %v2608 = vsel %vm2577, %v2575, %v1052
        %v2609 = vsel %vm2577, %v2576, %v1054
        %vm2610 = vcmask 130048
        %v2611 = vsel %vm2610, %v2578, %v1120
        %v2612 = vsel %vm2610, %v2579, %v1122
        %v2613 = vsel %vm2610, %v2580, %v1124
        %v2614 = vsel %vm2610, %v2581, %v1126
        %v2615 = vsel %vm2610, %v2582, %v1128
        %v2616 = vsel %vm2610, %v2583, %v1130
        %v2617 = vsel %vm2610, %v2584, %v1132
        %v2618 = vsel %vm2610, %v2585, %v1134
        %v2619 = vsel %vm2610, %v2586, %v1136
        %v2620 = vsel %vm2610, %v2587, %v1138
        %v2621 = vsel %vm2610, %v2588, %v1140
        %v2622 = vsel %vm2610, %v2589, %v1142
        %v2623 = vsel %vm2610, %v2590, %v1144
        %v2624 = vsel %vm2610, %v2591, %v1146
        %v2625 = vsel %vm2610, %v2592, %v1148
        %v2626 = vsel %vm2610, %v2593, %v1150
        %v2627 = vsel %vm2610, %v2594, %v1152
        %v2628 = vsel %vm2610, %v2595, %v1154
        %v2629 = vsel %vm2610, %v2596, %v1156
        %v2630 = vsel %vm2610, %v2597, %v1158
        %v2631 = vsel %vm2610, %v2598, %v1160
        %v2632 = vsel %vm2610, %v2599, %v1162
        %v2633 = vsel %vm2610, %v2600, %v1164
        %v2634 = vsel %vm2610, %v2601, %v1166
        %v2635 = vsel %vm2610, %v2602, %v1168
        %v2636 = vsel %vm2610, %v2603, %v1170
        %v2637 = vsel %vm2610, %v2604, %v1172
        %v2638 = vsel %vm2610, %v2605, %v1174
        %v2639 = vsel %vm2610, %v2606, %v1176
        %v2640 = vsel %vm2610, %v2607, %v1178
        %v2641 = vsel %vm2610, %v2608, %v1180
        %v2642 = vsel %vm2610, %v2609, %v1182
        %vm2643 = vcmask 162816
        %v2644 = vsel %vm2643, %v2611, %v1248
        %v2645 = vsel %vm2643, %v2612, %v1250
        %v2646 = vsel %vm2643, %v2613, %v1252
        %v2647 = vsel %vm2643, %v2614, %v1254
        %v2648 = vsel %vm2643, %v2615, %v1256
        %v2649 = vsel %vm2643, %v2616, %v1258
        %v2650 = vsel %vm2643, %v2617, %v1260
        %v2651 = vsel %vm2643, %v2618, %v1262
        %v2652 = vsel %vm2643, %v2619, %v1264
        %v2653 = vsel %vm2643, %v2620, %v1266
        %v2654 = vsel %vm2643, %v2621, %v1268
        %v2655 = vsel %vm2643, %v2622, %v1270
        %v2656 = vsel %vm2643, %v2623, %v1272
        %v2657 = vsel %vm2643, %v2624, %v1274
        %v2658 = vsel %vm2643, %v2625, %v1276
        %v2659 = vsel %vm2643, %v2626, %v1278
        %v2660 = vsel %vm2643, %v2627, %v1280
        %v2661 = vsel %vm2643, %v2628, %v1282
        %v2662 = vsel %vm2643, %v2629, %v1284
        %v2663 = vsel %vm2643, %v2630, %v1286
        %v2664 = vsel %vm2643, %v2631, %v1288
        %v2665 = vsel %vm2643, %v2632, %v1290
        %v2666 = vsel %vm2643, %v2633, %v1292
        %v2667 = vsel %vm2643, %v2634, %v1294
        %v2668 = vsel %vm2643, %v2635, %v1296
        %v2669 = vsel %vm2643, %v2636, %v1298
        %v2670 = vsel %vm2643, %v2637, %v1300
        %v2671 = vsel %vm2643, %v2638, %v1302
        %v2672 = vsel %vm2643, %v2639, %v1304
        %v2673 = vsel %vm2643, %v2640, %v1306
        %v2674 = vsel %vm2643, %v2641, %v1308
        %v2675 = vsel %vm2643, %v2642, %v1310
        %vm2676 = vcmask 195584
        %v2677 = vsel %vm2676, %v2644, %v1376
        %v2678 = vsel %vm2676, %v2645, %v1378
        %v2679 = vsel %vm2676, %v2646, %v1380
        %v2680 = vsel %vm2676, %v2647, %v1382
        %v2681 = vsel %vm2676, %v2648, %v1384
        %v2682 = vsel %vm2676, %v2649, %v1386
        %v2683 = vsel %vm2676, %v2650, %v1388
        %v2684 = vsel %vm2676, %v2651, %v1390
        %v2685 = vsel %vm2676, %v2652, %v1392
        %v2686 = vsel %vm2676, %v2653, %v1394
        %v2687 = vsel %vm2676, %v2654, %v1396
        %v2688 = vsel %vm2676, %v2655, %v1398
        %v2689 = vsel %vm2676, %v2656, %v1400
        %v2690 = vsel %vm2676, %v2657, %v1402
        %v2691 = vsel %vm2676, %v2658, %v1404
        %v2692 = vsel %vm2676, %v2659, %v1406
        %v2693 = vsel %vm2676, %v2660, %v1408
        %v2694 = vsel %vm2676, %v2661, %v1410
        %v2695 = vsel %vm2676, %v2662, %v1412
        %v2696 = vsel %vm2676, %v2663, %v1414
        %v2697 = vsel %vm2676, %v2664, %v1416
        %v2698 = vsel %vm2676, %v2665, %v1418
        %v2699 = vsel %vm2676, %v2666, %v1420
        %v2700 = vsel %vm2676, %v2667, %v1422
        %v2701 = vsel %vm2676, %v2668, %v1424
        %v2702 = vsel %vm2676, %v2669, %v1426
        %v2703 = vsel %vm2676, %v2670, %v1428
        %v2704 = vsel %vm2676, %v2671, %v1430
        %v2705 = vsel %vm2676, %v2672, %v1432
        %v2706 = vsel %vm2676, %v2673, %v1434
        %v2707 = vsel %vm2676, %v2674, %v1436
        %v2708 = vsel %vm2676, %v2675, %v1438
        %vm2709 = vcmask 228352
        %v2710 = vsel %vm2709, %v2677, %v1504
        %v2711 = vsel %vm2709, %v2678, %v1506
        %v2712 = vsel %vm2709, %v2679, %v1508
        %v2713 = vsel %vm2709, %v2680, %v1510
        %v2714 = vsel %vm2709, %v2681, %v1512
        %v2715 = vsel %vm2709, %v2682, %v1514
        %v2716 = vsel %vm2709, %v2683, %v1516
        %v2717 = vsel %vm2709, %v2684, %v1518
        %v2718 = vsel %vm2709, %v2685, %v1520
        %v2719 = vsel %vm2709, %v2686, %v1522
        %v2720 = vsel %vm2709, %v2687, %v1524
        %v2721 = vsel %vm2709, %v2688, %v1526
        %v2722 = vsel %vm2709, %v2689, %v1528
        %v2723 = vsel %vm2709, %v2690, %v1530
        %v2724 = vsel %vm2709, %v2691, %v1532
        %v2725 = vsel %vm2709, %v2692, %v1534
        %v2726 = vsel %vm2709, %v2693, %v1536
        %v2727 = vsel %vm2709, %v2694, %v1538
        %v2728 = vsel %vm2709, %v2695, %v1540
        %v2729 = vsel %vm2709, %v2696, %v1542
        %v2730 = vsel %vm2709, %v2697, %v1544
        %v2731 = vsel %vm2709, %v2698, %v1546
        %v2732 = vsel %vm2709, %v2699, %v1548
        %v2733 = vsel %vm2709, %v2700, %v1550
        %v2734 = vsel %vm2709, %v2701, %v1552
        %v2735 = vsel %vm2709, %v2702, %v1554
        %v2736 = vsel %vm2709, %v2703, %v1556
        %v2737 = vsel %vm2709, %v2704, %v1558
        %v2738 = vsel %vm2709, %v2705, %v1560
        %v2739 = vsel %vm2709, %v2706, %v1562
        %v2740 = vsel %vm2709, %v2707, %v1564
        %v2741 = vsel %vm2709, %v2708, %v1566
        %vm2742 = vcmask 261120
        %v2743 = vsel %vm2742, %v2710, %v1632
        %v2744 = vsel %vm2742, %v2711, %v1634
        %v2745 = vsel %vm2742, %v2712, %v1636
        %v2746 = vsel %vm2742, %v2713, %v1638
        %v2747 = vsel %vm2742, %v2714, %v1640
        %v2748 = vsel %vm2742, %v2715, %v1642
        %v2749 = vsel %vm2742, %v2716, %v1644
        %v2750 = vsel %vm2742, %v2717, %v1646
        %v2751 = vsel %vm2742, %v2718, %v1648
        %v2752 = vsel %vm2742, %v2719, %v1650
        %v2753 = vsel %vm2742, %v2720, %v1652
        %v2754 = vsel %vm2742, %v2721, %v1654
        %v2755 = vsel %vm2742, %v2722, %v1656
        %v2756 = vsel %vm2742, %v2723, %v1658
        %v2757 = vsel %vm2742, %v2724, %v1660
        %v2758 = vsel %vm2742, %v2725, %v1662
        %v2759 = vsel %vm2742, %v2726, %v1664
        %v2760 = vsel %vm2742, %v2727, %v1666
        %v2761 = vsel %vm2742, %v2728, %v1668
        %v2762 = vsel %vm2742, %v2729, %v1670
        %v2763 = vsel %vm2742, %v2730, %v1672
        %v2764 = vsel %vm2742, %v2731, %v1674
        %v2765 = vsel %vm2742, %v2732, %v1676
        %v2766 = vsel %vm2742, %v2733, %v1678
        %v2767 = vsel %vm2742, %v2734, %v1680
        %v2768 = vsel %vm2742, %v2735, %v1682
        %v2769 = vsel %vm2742, %v2736, %v1684
        %v2770 = vsel %vm2742, %v2737, %v1686
        %v2771 = vsel %vm2742, %v2738, %v1688
        %v2772 = vsel %vm2742, %v2739, %v1690
        %v2773 = vsel %vm2742, %v2740, %v1692
        %v2774 = vsel %vm2742, %v2741, %v1694
        %vm2775 = vcmask 293888
        %v2776 = vsel %vm2775, %v2743, %v1744
        %v2777 = vsel %vm2775, %v2744, %v1746
        %v2778 = vsel %vm2775, %v2745, %v1748
        %v2779 = vsel %vm2775, %v2746, %v1750
        %v2780 = vsel %vm2775, %v2747, %v1752
        %v2781 = vsel %vm2775, %v2748, %v1754
        %v2782 = vsel %vm2775, %v2749, %v1756
        %v2783 = vsel %vm2775, %v2750, %v1758
        %v2784 = vsel %vm2775, %v2751, %v1760
        %v2785 = vsel %vm2775, %v2752, %v1762
        %v2786 = vsel %vm2775, %v2753, %v1764
        %v2787 = vsel %vm2775, %v2754, %v1766
        %v2788 = vsel %vm2775, %v2755, %v1768
        %v2789 = vsel %vm2775, %v2756, %v1770
        %v2790 = vsel %vm2775, %v2757, %v1772
        %v2791 = vsel %vm2775, %v2758, %v1774
        %v2792 = vsel %vm2775, %v2759, %v1776
        %v2793 = vsel %vm2775, %v2760, %v1778
        %v2794 = vsel %vm2775, %v2761, %v1780
        %v2795 = vsel %vm2775, %v2762, %v1782
        %v2796 = vsel %vm2775, %v2763, %v1784
        %v2797 = vsel %vm2775, %v2764, %v1786
        %v2798 = vsel %vm2775, %v2765, %v1788
        %v2799 = vsel %vm2775, %v2766, %v1790
        %v2800 = vsel %vm2775, %v2767, %v1792
        %v2801 = vsel %vm2775, %v2768, %v1794
        %v2802 = vsel %vm2775, %v2769, %v1796
        %v2803 = vsel %vm2775, %v2770, %v1798
        %v2804 = vsel %vm2775, %v2771, %v1800
        %v2805 = vsel %vm2775, %v2772, %v1802
        %v2806 = vsel %vm2775, %v2773, %v1804
        %v2807 = vsel %vm2775, %v2774, %v1806
        %vm2808 = vcmask 326656
        %v2809 = vsel %vm2808, %v2776, %v1856
        %v2810 = vsel %vm2808, %v2777, %v1858
        %v2811 = vsel %vm2808, %v2778, %v1860
        %v2812 = vsel %vm2808, %v2779, %v1862
        %v2813 = vsel %vm2808, %v2780, %v1864
        %v2814 = vsel %vm2808, %v2781, %v1866
        %v2815 = vsel %vm2808, %v2782, %v1868
        %v2816 = vsel %vm2808, %v2783, %v1870
        %v2817 = vsel %vm2808, %v2784, %v1872
        %v2818 = vsel %vm2808, %v2785, %v1874
        %v2819 = vsel %vm2808, %v2786, %v1876
        %v2820 = vsel %vm2808, %v2787, %v1878
        %v2821 = vsel %vm2808, %v2788, %v1880
        %v2822 = vsel %vm2808, %v2789, %v1882
        %v2823 = vsel %vm2808, %v2790, %v1884
        %v2824 = vsel %vm2808, %v2791, %v1886
        %v2825 = vsel %vm2808, %v2792, %v1888
        %v2826 = vsel %vm2808, %v2793, %v1890
        %v2827 = vsel %vm2808, %v2794, %v1892
        %v2828 = vsel %vm2808, %v2795, %v1894
        %v2829 = vsel %vm2808, %v2796, %v1896
        %v2830 = vsel %vm2808, %v2797, %v1898
        %v2831 = vsel %vm2808, %v2798, %v1900
        %v2832 = vsel %vm2808, %v2799, %v1902
        %v2833 = vsel %vm2808, %v2800, %v1904
        %v2834 = vsel %vm2808, %v2801, %v1906
        %v2835 = vsel %vm2808, %v2802, %v1908
        %v2836 = vsel %vm2808, %v2803, %v1910
        %v2837 = vsel %vm2808, %v2804, %v1912
        %v2838 = vsel %vm2808, %v2805, %v1914
        %v2839 = vsel %vm2808, %v2806, %v1916
        %v2840 = vsel %vm2808, %v2807, %v1918
        %vm2841 = vcmask 359424
        %v2842 = vsel %vm2841, %v2809, %v1968
        %v2843 = vsel %vm2841, %v2810, %v1970
        %v2844 = vsel %vm2841, %v2811, %v1972
        %v2845 = vsel %vm2841, %v2812, %v1974
        %v2846 = vsel %vm2841, %v2813, %v1976
        %v2847 = vsel %vm2841, %v2814, %v1978
        %v2848 = vsel %vm2841, %v2815, %v1980
        %v2849 = vsel %vm2841, %v2816, %v1982
        %v2850 = vsel %vm2841, %v2817, %v1984
        %v2851 = vsel %vm2841, %v2818, %v1986
        %v2852 = vsel %vm2841, %v2819, %v1988
        %v2853 = vsel %vm2841, %v2820, %v1990
        %v2854 = vsel %vm2841, %v2821, %v1992
        %v2855 = vsel %vm2841, %v2822, %v1994
        %v2856 = vsel %vm2841, %v2823, %v1996
        %v2857 = vsel %vm2841, %v2824, %v1998
        %v2858 = vsel %vm2841, %v2825, %v2000
        %v2859 = vsel %vm2841, %v2826, %v2002
        %v2860 = vsel %vm2841, %v2827, %v2004
        %v2861 = vsel %vm2841, %v2828, %v2006
        %v2862 = vsel %vm2841, %v2829, %v2008
        %v2863 = vsel %vm2841, %v2830, %v2010
        %v2864 = vsel %vm2841, %v2831, %v2012
        %v2865 = vsel %vm2841, %v2832, %v2014
        %v2866 = vsel %vm2841, %v2833, %v2016
        %v2867 = vsel %vm2841, %v2834, %v2018
        %v2868 = vsel %vm2841, %v2835, %v2020
        %v2869 = vsel %vm2841, %v2836, %v2022
        %v2870 = vsel %vm2841, %v2837, %v2024
        %v2871 = vsel %vm2841, %v2838, %v2026
        %v2872 = vsel %vm2841, %v2839, %v2028
        %v2873 = vsel %vm2841, %v2840, %v2030
        %vm2874 = vcmask 392192
        %v2875 = vsel %vm2874, %v2842, %v2080
        %v2876 = vsel %vm2874, %v2843, %v2082
        %v2877 = vsel %vm2874, %v2844, %v2084
        %v2878 = vsel %vm2874, %v2845, %v2086
        %v2879 = vsel %vm2874, %v2846, %v2088
        %v2880 = vsel %vm2874, %v2847, %v2090
        %v2881 = vsel %vm2874, %v2848, %v2092
        %v2882 = vsel %vm2874, %v2849, %v2094
        %v2883 = vsel %vm2874, %v2850, %v2096
        %v2884 = vsel %vm2874, %v2851, %v2098
        %v2885 = vsel %vm2874, %v2852, %v2100
        %v2886 = vsel %vm2874, %v2853, %v2102
        %v2887 = vsel %vm2874, %v2854, %v2104
        %v2888 = vsel %vm2874, %v2855, %v2106
        %v2889 = vsel %vm2874, %v2856, %v2108
        %v2890 = vsel %vm2874, %v2857, %v2110
        %v2891 = vsel %vm2874, %v2858, %v2112
        %v2892 = vsel %vm2874, %v2859, %v2114
        %v2893 = vsel %vm2874, %v2860, %v2116
        %v2894 = vsel %vm2874, %v2861, %v2118
        %v2895 = vsel %vm2874, %v2862, %v2120
        %v2896 = vsel %vm2874, %v2863, %v2122
        %v2897 = vsel %vm2874, %v2864, %v2124
        %v2898 = vsel %vm2874, %v2865, %v2126
        %v2899 = vsel %vm2874, %v2866, %v2128
        %v2900 = vsel %vm2874, %v2867, %v2130
        %v2901 = vsel %vm2874, %v2868, %v2132
        %v2902 = vsel %vm2874, %v2869, %v2134
        %v2903 = vsel %vm2874, %v2870, %v2136
        %v2904 = vsel %vm2874, %v2871, %v2138
        %v2905 = vsel %vm2874, %v2872, %v2140
        %v2906 = vsel %vm2874, %v2873, %v2142
        %vm2907 = vcmask 424960
        %v2908 = vsel %vm2907, %v2875, %v2192
        %v2909 = vsel %vm2907, %v2876, %v2194
        %v2910 = vsel %vm2907, %v2877, %v2196
        %v2911 = vsel %vm2907, %v2878, %v2198
        %v2912 = vsel %vm2907, %v2879, %v2200
        %v2913 = vsel %vm2907, %v2880, %v2202
        %v2914 = vsel %vm2907, %v2881, %v2204
        %v2915 = vsel %vm2907, %v2882, %v2206
        %v2916 = vsel %vm2907, %v2883, %v2208
        %v2917 = vsel %vm2907, %v2884, %v2210
        %v2918 = vsel %vm2907, %v2885, %v2212
        %v2919 = vsel %vm2907, %v2886, %v2214
        %v2920 = vsel %vm2907, %v2887, %v2216
        %v2921 = vsel %vm2907, %v2888, %v2218
        %v2922 = vsel %vm2907, %v2889, %v2220
        %v2923 = vsel %vm2907, %v2890, %v2222
        %v2924 = vsel %vm2907, %v2891, %v2224
        %v2925 = vsel %vm2907, %v2892, %v2226
        %v2926 = vsel %vm2907, %v2893, %v2228
        %v2927 = vsel %vm2907, %v2894, %v2230
        %v2928 = vsel %vm2907, %v2895, %v2232
        %v2929 = vsel %vm2907, %v2896, %v2234
        %v2930 = vsel %vm2907, %v2897, %v2236
        %v2931 = vsel %vm2907, %v2898, %v2238
        %v2932 = vsel %vm2907, %v2899, %v2240
        %v2933 = vsel %vm2907, %v2900, %v2242
        %v2934 = vsel %vm2907, %v2901, %v2244
        %v2935 = vsel %vm2907, %v2902, %v2246
        %v2936 = vsel %vm2907, %v2903, %v2248
        %v2937 = vsel %vm2907, %v2904, %v2250
        %v2938 = vsel %vm2907, %v2905, %v2252
        %v2939 = vsel %vm2907, %v2906, %v2254
        %vm2940 = vcmask 457728
        %v2941 = vsel %vm2940, %v2908, %v2304
        %v2942 = vsel %vm2940, %v2909, %v2306
        %v2943 = vsel %vm2940, %v2910, %v2308
        %v2944 = vsel %vm2940, %v2911, %v2310
        %v2945 = vsel %vm2940, %v2912, %v2312
        %v2946 = vsel %vm2940, %v2913, %v2314
        %v2947 = vsel %vm2940, %v2914, %v2316
        %v2948 = vsel %vm2940, %v2915, %v2318
        %v2949 = vsel %vm2940, %v2916, %v2320
        %v2950 = vsel %vm2940, %v2917, %v2322
        %v2951 = vsel %vm2940, %v2918, %v2324
        %v2952 = vsel %vm2940, %v2919, %v2326
        %v2953 = vsel %vm2940, %v2920, %v2328
        %v2954 = vsel %vm2940, %v2921, %v2330
        %v2955 = vsel %vm2940, %v2922, %v2332
        %v2956 = vsel %vm2940, %v2923, %v2334
        %v2957 = vsel %vm2940, %v2924, %v2336
        %v2958 = vsel %vm2940, %v2925, %v2338
        %v2959 = vsel %vm2940, %v2926, %v2340
        %v2960 = vsel %vm2940, %v2927, %v2342
        %v2961 = vsel %vm2940, %v2928, %v2344
        %v2962 = vsel %vm2940, %v2929, %v2346
        %v2963 = vsel %vm2940, %v2930, %v2348
        %v2964 = vsel %vm2940, %v2931, %v2350
        %v2965 = vsel %vm2940, %v2932, %v2352
        %v2966 = vsel %vm2940, %v2933, %v2354
        %v2967 = vsel %vm2940, %v2934, %v2356
        %v2968 = vsel %vm2940, %v2935, %v2358
        %v2969 = vsel %vm2940, %v2936, %v2360
        %v2970 = vsel %vm2940, %v2937, %v2362
        %v2971 = vsel %vm2940, %v2938, %v2364
        %v2972 = vsel %vm2940, %v2939, %v2366
        %vm2973 = vcmask 490496
        %v2974 = vsel %vm2973, %v2941, %v2416
        %v2975 = vsel %vm2973, %v2942, %v2418
        %v2976 = vsel %vm2973, %v2943, %v2420
        %v2977 = vsel %vm2973, %v2944, %v2422
        %v2978 = vsel %vm2973, %v2945, %v2424
        %v2979 = vsel %vm2973, %v2946, %v2426
        %v2980 = vsel %vm2973, %v2947, %v2428
        %v2981 = vsel %vm2973, %v2948, %v2430
        %v2982 = vsel %vm2973, %v2949, %v2432
        %v2983 = vsel %vm2973, %v2950, %v2434
        %v2984 = vsel %vm2973, %v2951, %v2436
        %v2985 = vsel %vm2973, %v2952, %v2438
        %v2986 = vsel %vm2973, %v2953, %v2440
        %v2987 = vsel %vm2973, %v2954, %v2442
        %v2988 = vsel %vm2973, %v2955, %v2444
        %v2989 = vsel %vm2973, %v2956, %v2446
        %v2990 = vsel %vm2973, %v2957, %v2448
        %v2991 = vsel %vm2973, %v2958, %v2450
        %v2992 = vsel %vm2973, %v2959, %v2452
        %v2993 = vsel %vm2973, %v2960, %v2454
        %v2994 = vsel %vm2973, %v2961, %v2456
        %v2995 = vsel %vm2973, %v2962, %v2458
        %v2996 = vsel %vm2973, %v2963, %v2460
        %v2997 = vsel %vm2973, %v2964, %v2462
        %v2998 = vsel %vm2973, %v2965, %v2464
        %v2999 = vsel %vm2973, %v2966, %v2466
        %v3000 = vsel %vm2973, %v2967, %v2468
        %v3001 = vsel %vm2973, %v2968, %v2470
        %v3002 = vsel %vm2973, %v2969, %v2472
        %v3003 = vsel %vm2973, %v2970, %v2474
        %v3004 = vsel %vm2973, %v2971, %v2476
        %v3005 = vsel %vm2973, %v2972, %v2478
        %3022 = vrot.lane.b32.xlu0 %v511, 4
        %v3023 = vpop.permute.xlu0 %3022
        %3024 = vrot.lane.b32.xlu0 %v639, 4
        %v3025 = vpop.permute.xlu0 %3024
        %3026 = vrot.lane.b32.xlu0 %v512, 4
        %v3027 = vpop.permute.xlu0 %3026
        %3028 = vrot.lane.b32.xlu0 %v640, 4
        %v3029 = vpop.permute.xlu0 %3028
        %3030 = vrot.lane.b32.xlu0 %v513, 4
        %v3031 = vpop.permute.xlu0 %3030
        %3032 = vrot.lane.b32.xlu0 %v641, 4
        %v3033 = vpop.permute.xlu0 %3032
        %3034 = vrot.lane.b32.xlu0 %v514, 4
        %v3035 = vpop.permute.xlu0 %3034
        %3036 = vrot.lane.b32.xlu0 %v642, 4
        %v3037 = vpop.permute.xlu0 %3036
        %3038 = vrot.lane.b32.xlu0 %v515, 4
        %v3039 = vpop.permute.xlu0 %3038
        %3040 = vrot.lane.b32.xlu0 %v643, 4
        %v3041 = vpop.permute.xlu0 %3040
        %3042 = vrot.lane.b32.xlu0 %v516, 4
        %v3043 = vpop.permute.xlu0 %3042
        %3044 = vrot.lane.b32.xlu0 %v644, 4
        %v3045 = vpop.permute.xlu0 %3044
        %3046 = vrot.lane.b32.xlu0 %v517, 4
        %v3047 = vpop.permute.xlu0 %3046
        %3048 = vrot.lane.b32.xlu0 %v645, 4
        %v3049 = vpop.permute.xlu0 %3048
        %3050 = vrot.lane.b32.xlu0 %v518, 4
        %v3051 = vpop.permute.xlu0 %3050
        %3052 = vrot.lane.b32.xlu0 %v646, 4
        %v3053 = vpop.permute.xlu0 %3052
        %3054 = vrot.lane.b32.xlu0 %v519, 4
        %v3055 = vpop.permute.xlu0 %3054
        %3056 = vrot.lane.b32.xlu0 %v647, 4
        %v3057 = vpop.permute.xlu0 %3056
        %3058 = vrot.lane.b32.xlu0 %v520, 4
        %v3059 = vpop.permute.xlu0 %3058
        %3060 = vrot.lane.b32.xlu0 %v648, 4
        %v3061 = vpop.permute.xlu0 %3060
        %3062 = vrot.lane.b32.xlu0 %v521, 4
        %v3063 = vpop.permute.xlu0 %3062
        %3064 = vrot.lane.b32.xlu0 %v649, 4
        %v3065 = vpop.permute.xlu0 %3064
        %3066 = vrot.lane.b32.xlu0 %v522, 4
        %v3067 = vpop.permute.xlu0 %3066
        %3068 = vrot.lane.b32.xlu0 %v650, 4
        %v3069 = vpop.permute.xlu0 %3068
        %3070 = vrot.lane.b32.xlu0 %v523, 4
        %v3071 = vpop.permute.xlu0 %3070
        %3072 = vrot.lane.b32.xlu0 %v651, 4
        %v3073 = vpop.permute.xlu0 %3072
        %3074 = vrot.lane.b32.xlu0 %v524, 4
        %v3075 = vpop.permute.xlu0 %3074
        %3076 = vrot.lane.b32.xlu0 %v652, 4
        %v3077 = vpop.permute.xlu0 %3076
        %3078 = vrot.lane.b32.xlu0 %v525, 4
        %v3079 = vpop.permute.xlu0 %3078
        %3080 = vrot.lane.b32.xlu0 %v653, 4
        %v3081 = vpop.permute.xlu0 %3080
        %3082 = vrot.lane.b32.xlu0 %v526, 4
        %v3083 = vpop.permute.xlu0 %3082
        %3084 = vrot.lane.b32.xlu0 %v654, 4
        %v3085 = vpop.permute.xlu0 %3084
        %3134 = vrot.lane.b32.xlu0 %v527, 8
        %v3135 = vpop.permute.xlu0 %3134
        %3136 = vrot.lane.b32.xlu0 %v655, 8
        %v3137 = vpop.permute.xlu0 %3136
        %3138 = vrot.lane.b32.xlu0 %v528, 8
        %v3139 = vpop.permute.xlu0 %3138
        %3140 = vrot.lane.b32.xlu0 %v656, 8
        %v3141 = vpop.permute.xlu0 %3140
        %3142 = vrot.lane.b32.xlu0 %v529, 8
        %v3143 = vpop.permute.xlu0 %3142
        %3144 = vrot.lane.b32.xlu0 %v657, 8
        %v3145 = vpop.permute.xlu0 %3144
        %3146 = vrot.lane.b32.xlu0 %v530, 8
        %v3147 = vpop.permute.xlu0 %3146
        %3148 = vrot.lane.b32.xlu0 %v658, 8
        %v3149 = vpop.permute.xlu0 %3148
        %3150 = vrot.lane.b32.xlu0 %v531, 8
        %v3151 = vpop.permute.xlu0 %3150
        %3152 = vrot.lane.b32.xlu0 %v659, 8
        %v3153 = vpop.permute.xlu0 %3152
        %3154 = vrot.lane.b32.xlu0 %v532, 8
        %v3155 = vpop.permute.xlu0 %3154
        %3156 = vrot.lane.b32.xlu0 %v660, 8
        %v3157 = vpop.permute.xlu0 %3156
        %3158 = vrot.lane.b32.xlu0 %v533, 8
        %v3159 = vpop.permute.xlu0 %3158
        %3160 = vrot.lane.b32.xlu0 %v661, 8
        %v3161 = vpop.permute.xlu0 %3160
        %3162 = vrot.lane.b32.xlu0 %v534, 8
        %v3163 = vpop.permute.xlu0 %3162
        %3164 = vrot.lane.b32.xlu0 %v662, 8
        %v3165 = vpop.permute.xlu0 %3164
        %3166 = vrot.lane.b32.xlu0 %v535, 8
        %v3167 = vpop.permute.xlu0 %3166
        %3168 = vrot.lane.b32.xlu0 %v663, 8
        %v3169 = vpop.permute.xlu0 %3168
        %3170 = vrot.lane.b32.xlu0 %v536, 8
        %v3171 = vpop.permute.xlu0 %3170
        %3172 = vrot.lane.b32.xlu0 %v664, 8
        %v3173 = vpop.permute.xlu0 %3172
        %3174 = vrot.lane.b32.xlu0 %v537, 8
        %v3175 = vpop.permute.xlu0 %3174
        %3176 = vrot.lane.b32.xlu0 %v665, 8
        %v3177 = vpop.permute.xlu0 %3176
        %3178 = vrot.lane.b32.xlu0 %v538, 8
        %v3179 = vpop.permute.xlu0 %3178
        %3180 = vrot.lane.b32.xlu0 %v666, 8
        %v3181 = vpop.permute.xlu0 %3180
        %3182 = vrot.lane.b32.xlu0 %v539, 8
        %v3183 = vpop.permute.xlu0 %3182
        %3184 = vrot.lane.b32.xlu0 %v667, 8
        %v3185 = vpop.permute.xlu0 %3184
        %3186 = vrot.lane.b32.xlu0 %v540, 8
        %v3187 = vpop.permute.xlu0 %3186
        %3188 = vrot.lane.b32.xlu0 %v668, 8
        %v3189 = vpop.permute.xlu0 %3188
        %3190 = vrot.lane.b32.xlu0 %v541, 8
        %v3191 = vpop.permute.xlu0 %3190
        %3192 = vrot.lane.b32.xlu0 %v669, 8
        %v3193 = vpop.permute.xlu0 %3192
        %3194 = vrot.lane.b32.xlu0 %v542, 8
        %v3195 = vpop.permute.xlu0 %3194
        %3196 = vrot.lane.b32.xlu0 %v670, 8
        %v3197 = vpop.permute.xlu0 %3196
        %3246 = vrot.lane.b32.xlu0 %v543, 12
        %v3247 = vpop.permute.xlu0 %3246
        %3248 = vrot.lane.b32.xlu0 %v671, 12
        %v3249 = vpop.permute.xlu0 %3248
        %3250 = vrot.lane.b32.xlu0 %v544, 12
        %v3251 = vpop.permute.xlu0 %3250
        %3252 = vrot.lane.b32.xlu0 %v672, 12
        %v3253 = vpop.permute.xlu0 %3252
        %3254 = vrot.lane.b32.xlu0 %v545, 12
        %v3255 = vpop.permute.xlu0 %3254
        %3256 = vrot.lane.b32.xlu0 %v673, 12
        %v3257 = vpop.permute.xlu0 %3256
        %3258 = vrot.lane.b32.xlu0 %v546, 12
        %v3259 = vpop.permute.xlu0 %3258
        %3260 = vrot.lane.b32.xlu0 %v674, 12
        %v3261 = vpop.permute.xlu0 %3260
        %3262 = vrot.lane.b32.xlu0 %v547, 12
        %v3263 = vpop.permute.xlu0 %3262
        %3264 = vrot.lane.b32.xlu0 %v675, 12
        %v3265 = vpop.permute.xlu0 %3264
        %3266 = vrot.lane.b32.xlu0 %v548, 12
        %v3267 = vpop.permute.xlu0 %3266
        %3268 = vrot.lane.b32.xlu0 %v676, 12
        %v3269 = vpop.permute.xlu0 %3268
        %3270 = vrot.lane.b32.xlu0 %v549, 12
        %v3271 = vpop.permute.xlu0 %3270
        %3272 = vrot.lane.b32.xlu0 %v677, 12
        %v3273 = vpop.permute.xlu0 %3272
        %3274 = vrot.lane.b32.xlu0 %v550, 12
        %v3275 = vpop.permute.xlu0 %3274
        %3276 = vrot.lane.b32.xlu0 %v678, 12
        %v3277 = vpop.permute.xlu0 %3276
        %3278 = vrot.lane.b32.xlu0 %v551, 12
        %v3279 = vpop.permute.xlu0 %3278
        %3280 = vrot.lane.b32.xlu0 %v679, 12
        %v3281 = vpop.permute.xlu0 %3280
        %3282 = vrot.lane.b32.xlu0 %v552, 12
        %v3283 = vpop.permute.xlu0 %3282
        %3284 = vrot.lane.b32.xlu0 %v680, 12
        %v3285 = vpop.permute.xlu0 %3284
        %3286 = vrot.lane.b32.xlu0 %v553, 12
        %v3287 = vpop.permute.xlu0 %3286
        %3288 = vrot.lane.b32.xlu0 %v681, 12
        %v3289 = vpop.permute.xlu0 %3288
        %3290 = vrot.lane.b32.xlu0 %v554, 12
        %v3291 = vpop.permute.xlu0 %3290
        %3292 = vrot.lane.b32.xlu0 %v682, 12
        %v3293 = vpop.permute.xlu0 %3292
        %3294 = vrot.lane.b32.xlu0 %v555, 12
        %v3295 = vpop.permute.xlu0 %3294
        %3296 = vrot.lane.b32.xlu0 %v683, 12
        %v3297 = vpop.permute.xlu0 %3296
        %3298 = vrot.lane.b32.xlu0 %v556, 12
        %v3299 = vpop.permute.xlu0 %3298
        %3300 = vrot.lane.b32.xlu0 %v684, 12
        %v3301 = vpop.permute.xlu0 %3300
        %3302 = vrot.lane.b32.xlu0 %v557, 12
        %v3303 = vpop.permute.xlu0 %3302
        %3304 = vrot.lane.b32.xlu0 %v685, 12
        %v3305 = vpop.permute.xlu0 %3304
        %3306 = vrot.lane.b32.xlu0 %v558, 12
        %v3307 = vpop.permute.xlu0 %3306
        %3308 = vrot.lane.b32.xlu0 %v686, 12
        %v3309 = vpop.permute.xlu0 %3308
        %3358 = vrot.lane.b32.xlu0 %v559, 16
        %v3359 = vpop.permute.xlu0 %3358
        %3360 = vrot.lane.b32.xlu0 %v687, 16
        %v3361 = vpop.permute.xlu0 %3360
        %3362 = vrot.lane.b32.xlu0 %v560, 16
        %v3363 = vpop.permute.xlu0 %3362
        %3364 = vrot.lane.b32.xlu0 %v688, 16
        %v3365 = vpop.permute.xlu0 %3364
        %3366 = vrot.lane.b32.xlu0 %v561, 16
        %v3367 = vpop.permute.xlu0 %3366
        %3368 = vrot.lane.b32.xlu0 %v689, 16
        %v3369 = vpop.permute.xlu0 %3368
        %3370 = vrot.lane.b32.xlu0 %v562, 16
        %v3371 = vpop.permute.xlu0 %3370
        %3372 = vrot.lane.b32.xlu0 %v690, 16
        %v3373 = vpop.permute.xlu0 %3372
        %3374 = vrot.lane.b32.xlu0 %v563, 16
        %v3375 = vpop.permute.xlu0 %3374
        %3376 = vrot.lane.b32.xlu0 %v691, 16
        %v3377 = vpop.permute.xlu0 %3376
        %3378 = vrot.lane.b32.xlu0 %v564, 16
        %v3379 = vpop.permute.xlu0 %3378
        %3380 = vrot.lane.b32.xlu0 %v692, 16
        %v3381 = vpop.permute.xlu0 %3380
        %3382 = vrot.lane.b32.xlu0 %v565, 16
        %v3383 = vpop.permute.xlu0 %3382
        %3384 = vrot.lane.b32.xlu0 %v693, 16
        %v3385 = vpop.permute.xlu0 %3384
        %3386 = vrot.lane.b32.xlu0 %v566, 16
        %v3387 = vpop.permute.xlu0 %3386
        %3388 = vrot.lane.b32.xlu0 %v694, 16
        %v3389 = vpop.permute.xlu0 %3388
        %3390 = vrot.lane.b32.xlu0 %v567, 16
        %v3391 = vpop.permute.xlu0 %3390
        %3392 = vrot.lane.b32.xlu0 %v695, 16
        %v3393 = vpop.permute.xlu0 %3392
        %3394 = vrot.lane.b32.xlu0 %v568, 16
        %v3395 = vpop.permute.xlu0 %3394
        %3396 = vrot.lane.b32.xlu0 %v696, 16
        %v3397 = vpop.permute.xlu0 %3396
        %3398 = vrot.lane.b32.xlu0 %v569, 16
        %v3399 = vpop.permute.xlu0 %3398
        %3400 = vrot.lane.b32.xlu0 %v697, 16
        %v3401 = vpop.permute.xlu0 %3400
        %3402 = vrot.lane.b32.xlu0 %v570, 16
        %v3403 = vpop.permute.xlu0 %3402
        %3404 = vrot.lane.b32.xlu0 %v698, 16
        %v3405 = vpop.permute.xlu0 %3404
        %3406 = vrot.lane.b32.xlu0 %v571, 16
        %v3407 = vpop.permute.xlu0 %3406
        %3408 = vrot.lane.b32.xlu0 %v699, 16
        %v3409 = vpop.permute.xlu0 %3408
        %3410 = vrot.lane.b32.xlu0 %v572, 16
        %v3411 = vpop.permute.xlu0 %3410
        %3412 = vrot.lane.b32.xlu0 %v700, 16
        %v3413 = vpop.permute.xlu0 %3412
        %3414 = vrot.lane.b32.xlu0 %v573, 16
        %v3415 = vpop.permute.xlu0 %3414
        %3416 = vrot.lane.b32.xlu0 %v701, 16
        %v3417 = vpop.permute.xlu0 %3416
        %3418 = vrot.lane.b32.xlu0 %v574, 16
        %v3419 = vpop.permute.xlu0 %3418
        %3420 = vrot.lane.b32.xlu0 %v702, 16
        %v3421 = vpop.permute.xlu0 %3420
        %v3454 = vsel %vm2511, %v495, %v3023
        %v3455 = vsel %vm2511, %v623, %v3025
        %v3456 = vsel %vm2511, %v496, %v3027
        %v3457 = vsel %vm2511, %v624, %v3029
        %v3458 = vsel %vm2511, %v497, %v3031
        %v3459 = vsel %vm2511, %v625, %v3033
        %v3460 = vsel %vm2511, %v498, %v3035
        %v3461 = vsel %vm2511, %v626, %v3037
        %v3462 = vsel %vm2511, %v499, %v3039
        %v3463 = vsel %vm2511, %v627, %v3041
        %v3464 = vsel %vm2511, %v500, %v3043
        %v3465 = vsel %vm2511, %v628, %v3045
        %v3466 = vsel %vm2511, %v501, %v3047
        %v3467 = vsel %vm2511, %v629, %v3049
        %v3468 = vsel %vm2511, %v502, %v3051
        %v3469 = vsel %vm2511, %v630, %v3053
        %v3470 = vsel %vm2511, %v503, %v3055
        %v3471 = vsel %vm2511, %v631, %v3057
        %v3472 = vsel %vm2511, %v504, %v3059
        %v3473 = vsel %vm2511, %v632, %v3061
        %v3474 = vsel %vm2511, %v505, %v3063
        %v3475 = vsel %vm2511, %v633, %v3065
        %v3476 = vsel %vm2511, %v506, %v3067
        %v3477 = vsel %vm2511, %v634, %v3069
        %v3478 = vsel %vm2511, %v507, %v3071
        %v3479 = vsel %vm2511, %v635, %v3073
        %v3480 = vsel %vm2511, %v508, %v3075
        %v3481 = vsel %vm2511, %v636, %v3077
        %v3482 = vsel %vm2511, %v509, %v3079
        %v3483 = vsel %vm2511, %v637, %v3081
        %v3484 = vsel %vm2511, %v510, %v3083
        %v3485 = vsel %vm2511, %v638, %v3085
        %v3486 = vsel %vm2544, %v3454, %v3135
        %v3487 = vsel %vm2544, %v3455, %v3137
        %v3488 = vsel %vm2544, %v3456, %v3139
        %v3489 = vsel %vm2544, %v3457, %v3141
        %v3490 = vsel %vm2544, %v3458, %v3143
        %v3491 = vsel %vm2544, %v3459, %v3145
        %v3492 = vsel %vm2544, %v3460, %v3147
        %v3493 = vsel %vm2544, %v3461, %v3149
        %v3494 = vsel %vm2544, %v3462, %v3151
        %v3495 = vsel %vm2544, %v3463, %v3153
        %v3496 = vsel %vm2544, %v3464, %v3155
        %v3497 = vsel %vm2544, %v3465, %v3157
        %v3498 = vsel %vm2544, %v3466, %v3159
        %v3499 = vsel %vm2544, %v3467, %v3161
        %v3500 = vsel %vm2544, %v3468, %v3163
        %v3501 = vsel %vm2544, %v3469, %v3165
        %v3502 = vsel %vm2544, %v3470, %v3167
        %v3503 = vsel %vm2544, %v3471, %v3169
        %v3504 = vsel %vm2544, %v3472, %v3171
        %v3505 = vsel %vm2544, %v3473, %v3173
        %v3506 = vsel %vm2544, %v3474, %v3175
        %v3507 = vsel %vm2544, %v3475, %v3177
        %v3508 = vsel %vm2544, %v3476, %v3179
        %v3509 = vsel %vm2544, %v3477, %v3181
        %v3510 = vsel %vm2544, %v3478, %v3183
        %v3511 = vsel %vm2544, %v3479, %v3185
        %v3512 = vsel %vm2544, %v3480, %v3187
        %v3513 = vsel %vm2544, %v3481, %v3189
        %v3514 = vsel %vm2544, %v3482, %v3191
        %v3515 = vsel %vm2544, %v3483, %v3193
        %v3516 = vsel %vm2544, %v3484, %v3195
        %v3517 = vsel %vm2544, %v3485, %v3197
        %v3518 = vsel %vm2577, %v3486, %v3247
        %v3519 = vsel %vm2577, %v3487, %v3249
        %v3520 = vsel %vm2577, %v3488, %v3251
        %v3521 = vsel %vm2577, %v3489, %v3253
        %v3522 = vsel %vm2577, %v3490, %v3255
        %v3523 = vsel %vm2577, %v3491, %v3257
        %v3524 = vsel %vm2577, %v3492, %v3259
        %v3525 = vsel %vm2577, %v3493, %v3261
        %v3526 = vsel %vm2577, %v3494, %v3263
        %v3527 = vsel %vm2577, %v3495, %v3265
        %v3528 = vsel %vm2577, %v3496, %v3267
        %v3529 = vsel %vm2577, %v3497, %v3269
        %v3530 = vsel %vm2577, %v3498, %v3271
        %v3531 = vsel %vm2577, %v3499, %v3273
        %v3532 = vsel %vm2577, %v3500, %v3275
        %v3533 = vsel %vm2577, %v3501, %v3277
        %v3534 = vsel %vm2577, %v3502, %v3279
        %v3535 = vsel %vm2577, %v3503, %v3281
        %v3536 = vsel %vm2577, %v3504, %v3283
        %v3537 = vsel %vm2577, %v3505, %v3285
        %v3538 = vsel %vm2577, %v3506, %v3287
        %v3539 = vsel %vm2577, %v3507, %v3289
        %v3540 = vsel %vm2577, %v3508, %v3291
        %v3541 = vsel %vm2577, %v3509, %v3293
        %v3542 = vsel %vm2577, %v3510, %v3295
        %v3543 = vsel %vm2577, %v3511, %v3297
        %v3544 = vsel %vm2577, %v3512, %v3299
        %v3545 = vsel %vm2577, %v3513, %v3301
        %v3546 = vsel %vm2577, %v3514, %v3303
        %v3547 = vsel %vm2577, %v3515, %v3305
        %v3548 = vsel %vm2577, %v3516, %v3307
        %v3549 = vsel %vm2577, %v3517, %v3309
        %v3550 = vsel %vm2610, %v3518, %v3359
        %v3551 = vsel %vm2610, %v3519, %v3361
        %v3552 = vsel %vm2610, %v3520, %v3363
        %v3553 = vsel %vm2610, %v3521, %v3365
        %v3554 = vsel %vm2610, %v3522, %v3367
        %v3555 = vsel %vm2610, %v3523, %v3369
        %v3556 = vsel %vm2610, %v3524, %v3371
        %v3557 = vsel %vm2610, %v3525, %v3373
        %v3558 = vsel %vm2610, %v3526, %v3375
        %v3559 = vsel %vm2610, %v3527, %v3377
        %v3560 = vsel %vm2610, %v3528, %v3379
        %v3561 = vsel %vm2610, %v3529, %v3381
        %v3562 = vsel %vm2610, %v3530, %v3383
        %v3563 = vsel %vm2610, %v3531, %v3385
        %v3564 = vsel %vm2610, %v3532, %v3387
        %v3565 = vsel %vm2610, %v3533, %v3389
        %v3566 = vsel %vm2610, %v3534, %v3391
        %v3567 = vsel %vm2610, %v3535, %v3393
        %v3568 = vsel %vm2610, %v3536, %v3395
        %v3569 = vsel %vm2610, %v3537, %v3397
        %v3570 = vsel %vm2610, %v3538, %v3399
        %v3571 = vsel %vm2610, %v3539, %v3401
        %v3572 = vsel %vm2610, %v3540, %v3403
        %v3573 = vsel %vm2610, %v3541, %v3405
        %v3574 = vsel %vm2610, %v3542, %v3407
        %v3575 = vsel %vm2610, %v3543, %v3409
        %v3576 = vsel %vm2610, %v3544, %v3411
        %v3577 = vsel %vm2610, %v3545, %v3413
        %v3578 = vsel %vm2610, %v3546, %v3415
        %v3579 = vsel %vm2610, %v3547, %v3417
        %v3580 = vsel %vm2610, %v3548, %v3419
        %v3581 = vsel %vm2610, %v3549, %v3421
        %3614 = vrot.lane.b32.xlu0 %v3550, 64
        %v3615 = vpop.permute.xlu0 %3614
        %3616 = vrot.lane.b32.xlu0 %v3551, 64
        %v3617 = vpop.permute.xlu0 %3616
        %3618 = vrot.lane.b32.xlu0 %v3552, 64
        %v3619 = vpop.permute.xlu0 %3618
        %3620 = vrot.lane.b32.xlu0 %v3553, 64
        %v3621 = vpop.permute.xlu0 %3620
        %3622 = vrot.lane.b32.xlu0 %v3554, 64
        %v3623 = vpop.permute.xlu0 %3622
        %3624 = vrot.lane.b32.xlu0 %v3555, 64
        %v3625 = vpop.permute.xlu0 %3624
        %3626 = vrot.lane.b32.xlu0 %v3556, 64
        %v3627 = vpop.permute.xlu0 %3626
        %3628 = vrot.lane.b32.xlu0 %v3557, 64
        %v3629 = vpop.permute.xlu0 %3628
        %3630 = vrot.lane.b32.xlu0 %v3558, 64
        %v3631 = vpop.permute.xlu0 %3630
        %3632 = vrot.lane.b32.xlu0 %v3559, 64
        %v3633 = vpop.permute.xlu0 %3632
        %3634 = vrot.lane.b32.xlu0 %v3560, 64
        %v3635 = vpop.permute.xlu0 %3634
        %3636 = vrot.lane.b32.xlu0 %v3561, 64
        %v3637 = vpop.permute.xlu0 %3636
        %3638 = vrot.lane.b32.xlu0 %v3562, 64
        %v3639 = vpop.permute.xlu0 %3638
        %3640 = vrot.lane.b32.xlu0 %v3563, 64
        %v3641 = vpop.permute.xlu0 %3640
        %3642 = vrot.lane.b32.xlu0 %v3564, 64
        %v3643 = vpop.permute.xlu0 %3642
        %3644 = vrot.lane.b32.xlu0 %v3565, 64
        %v3645 = vpop.permute.xlu0 %3644
        %3646 = vrot.lane.b32.xlu0 %v3566, 64
        %v3647 = vpop.permute.xlu0 %3646
        %3648 = vrot.lane.b32.xlu0 %v3567, 64
        %v3649 = vpop.permute.xlu0 %3648
        %3650 = vrot.lane.b32.xlu0 %v3568, 64
        %v3651 = vpop.permute.xlu0 %3650
        %3652 = vrot.lane.b32.xlu0 %v3569, 64
        %v3653 = vpop.permute.xlu0 %3652
        %3654 = vrot.lane.b32.xlu0 %v3570, 64
        %v3655 = vpop.permute.xlu0 %3654
        %3656 = vrot.lane.b32.xlu0 %v3571, 64
        %v3657 = vpop.permute.xlu0 %3656
        %3658 = vrot.lane.b32.xlu0 %v3572, 64
        %v3659 = vpop.permute.xlu0 %3658
        %3660 = vrot.lane.b32.xlu0 %v3573, 64
        %v3661 = vpop.permute.xlu0 %3660
        %3662 = vrot.lane.b32.xlu0 %v3574, 64
        %v3663 = vpop.permute.xlu0 %3662
        %3664 = vrot.lane.b32.xlu0 %v3575, 64
        %v3665 = vpop.permute.xlu0 %3664
        %3666 = vrot.lane.b32.xlu0 %v3576, 64
        %v3667 = vpop.permute.xlu0 %3666
        %3668 = vrot.lane.b32.xlu0 %v3577, 64
        %v3669 = vpop.permute.xlu0 %3668
        %3670 = vrot.lane.b32.xlu0 %v3578, 64
        %v3671 = vpop.permute.xlu0 %3670
        %3672 = vrot.lane.b32.xlu0 %v3579, 64
        %v3673 = vpop.permute.xlu0 %3672
        %3674 = vrot.lane.b32.xlu0 %v3580, 64
        %v3675 = vpop.permute.xlu0 %3674
        %3676 = vrot.lane.b32.xlu0 %v3581, 64
        %v3677 = vpop.permute.xlu0 %3676
        %vm3710 = vcmask 523264
        %v3711 = vsel %vm3710, %v2974, %v3615
        %v3712 = vsel %vm3710, %v2975, %v3617
        %v3713 = vsel %vm3710, %v2976, %v3619
        %v3714 = vsel %vm3710, %v2977, %v3621
        %v3715 = vsel %vm3710, %v2978, %v3623
        %v3716 = vsel %vm3710, %v2979, %v3625
        %v3717 = vsel %vm3710, %v2980, %v3627
        %v3718 = vsel %vm3710, %v2981, %v3629
        %v3719 = vsel %vm3710, %v2982, %v3631
        %v3720 = vsel %vm3710, %v2983, %v3633
        %v3721 = vsel %vm3710, %v2984, %v3635
        %v3722 = vsel %vm3710, %v2985, %v3637
        %v3723 = vsel %vm3710, %v2986, %v3639
        %v3724 = vsel %vm3710, %v2987, %v3641
        %v3725 = vsel %vm3710, %v2988, %v3643
        %v3726 = vsel %vm3710, %v2989, %v3645
        %v3727 = vsel %vm3710, %v2990, %v3647
        %v3728 = vsel %vm3710, %v2991, %v3649
        %v3729 = vsel %vm3710, %v2992, %v3651
        %v3730 = vsel %vm3710, %v2993, %v3653
        %v3731 = vsel %vm3710, %v2994, %v3655
        %v3732 = vsel %vm3710, %v2995, %v3657
        %v3733 = vsel %vm3710, %v2996, %v3659
        %v3734 = vsel %vm3710, %v2997, %v3661
        %v3735 = vsel %vm3710, %v2998, %v3663
        %v3736 = vsel %vm3710, %v2999, %v3665
        %v3737 = vsel %vm3710, %v3000, %v3667
        %v3738 = vsel %vm3710, %v3001, %v3669
        %v3739 = vsel %vm3710, %v3002, %v3671
        %v3740 = vsel %vm3710, %v3003, %v3673
        %v3741 = vsel %vm3710, %v3004, %v3675
        %v3742 = vsel %vm3710, %v3005, %v3677
        %v3743 = vld [vmem:[#allocation2] sm:$0xff]
        %v3744 = vld [vmem:[#allocation2 + $0x8] sm:$0xff]
        %v3745 = vld [vmem:[#allocation2 + $0x10] sm:$0xff]
        %v3746 = vld [vmem:[#allocation2 + $0x18] sm:$0xff]
        %v3747 = vld [vmem:[#allocation2 + $0x20] sm:$0xff]
        %v3748 = vld [vmem:[#allocation2 + $0x28] sm:$0xff]
        %v3749 = vld [vmem:[#allocation2 + $0x30] sm:$0xff]
        %v3750 = vld [vmem:[#allocation2 + $0x38] sm:$0xff]
        %v3751 = vld [vmem:[#allocation2 + $0x40] sm:$0xff]
        %v3752 = vld [vmem:[#allocation2 + $0x48] sm:$0xff]
        %v3753 = vld [vmem:[#allocation2 + $0x50] sm:$0xff]
        %v3754 = vld [vmem:[#allocation2 + $0x58] sm:$0xff]
        %v3755 = vld [vmem:[#allocation2 + $0x60] sm:$0xff]
        %v3756 = vld [vmem:[#allocation2 + $0x68] sm:$0xff]
        %v3757 = vld [vmem:[#allocation2 + $0x70] sm:$0xff]
        %v3758 = vld [vmem:[#allocation2 + $0x78] sm:$0xff]
        %v3759 = vld [vmem:[#allocation2 + $0x80] sm:$0xff]
        %v3760 = vld [vmem:[#allocation2 + $0x88] sm:$0xff]
        %v3761 = vld [vmem:[#allocation2 + $0x90] sm:$0xff]
        %v3762 = vld [vmem:[#allocation2 + $0x98] sm:$0xff]
        %v3763 = vld [vmem:[#allocation2 + $0xa0] sm:$0xff]
        %v3764 = vld [vmem:[#allocation2 + $0xa8] sm:$0xff]
        %v3765 = vld [vmem:[#allocation2 + $0xb0] sm:$0xff]
        %v3766 = vld [vmem:[#allocation2 + $0xb8] sm:$0xff]
        %v3767 = vld [vmem:[#allocation2 + $0xc0] sm:$0xff]
        %v3768 = vld [vmem:[#allocation2 + $0xc8] sm:$0xff]
        %v3769 = vld [vmem:[#allocation2 + $0xd0] sm:$0xff]
        %v3770 = vld [vmem:[#allocation2 + $0xd8] sm:$0xff]
        %v3771 = vld [vmem:[#allocation2 + $0xe0] sm:$0xff]
        %v3772 = vld [vmem:[#allocation2 + $0xe8] sm:$0xff]
        %v3773 = vld [vmem:[#allocation2 + $0xf0] sm:$0xff]
        %v3774 = vld [vmem:[#allocation2 + $0xf8] sm:$0xff]
        %v3775 = vpack.c.bf16 %v3712, %v3711
        %v3776 = vpack.c.bf16 %v3714, %v3713
        %v3777 = vpack.c.bf16 %v3716, %v3715
        %v3778 = vpack.c.bf16 %v3718, %v3717
        %v3779 = vpack.c.bf16 %v3720, %v3719
        %v3780 = vpack.c.bf16 %v3722, %v3721
        %v3781 = vpack.c.bf16 %v3724, %v3723
        %v3782 = vpack.c.bf16 %v3726, %v3725
        %v3783 = vpack.c.bf16 %v3728, %v3727
        %v3784 = vpack.c.bf16 %v3730, %v3729
        %v3785 = vpack.c.bf16 %v3732, %v3731
        %v3786 = vpack.c.bf16 %v3734, %v3733
        %v3787 = vpack.c.bf16 %v3736, %v3735
        %v3788 = vpack.c.bf16 %v3738, %v3737
        %v3789 = vpack.c.bf16 %v3740, %v3739
        %v3790 = vpack.c.bf16 %v3742, %v3741
        %s3791 = smul.u32 %s232, 11
        %s3792 = smul.addr %s3791, 4
        %s3793 = scalar_lea.vmem %s1, %s3792
        %v3794 = vld [vmem:[%s3793] sm:$0xf]
        %v3795 = vld [vmem:[%s3793 + $0x4] sm:$0xf]
        %v3796 = vld [vmem:[%s3793 + $0x8] sm:$0xf]
        %v3797 = vld [vmem:[%s3793 + $0xc] sm:$0xf]
        %v3798 = vld [vmem:[%s3793 + $0x10] sm:$0xf]
        %v3799 = vld [vmem:[%s3793 + $0x14] sm:$0xf]
        %v3800 = vld [vmem:[%s3793 + $0x18] sm:$0xf]
        %v3801 = vld [vmem:[%s3793 + $0x1c] sm:$0xf]
        %v3802 = vld [vmem:[%s3793 + $0x20] sm:$0xf]
        %v3803 = vld [vmem:[%s3793 + $0x24] sm:$0xf]
        %v3804 = vld [vmem:[%s3793 + $0x28] sm:$0x3]
        %v3816 = vunpack.c.l.b16 %v3794
        %v3817 = vunpack.c.l.b16 %v3795
        %v3818 = vunpack.c.l.b16 %v3796
        %v3819 = vunpack.c.l.b16 %v3797
        %v3820 = vunpack.c.l.b16 %v3798
        %v3821 = vunpack.c.l.b16 %v3799
        %v3822 = vunpack.c.l.b16 %v3800
        %v3823 = vunpack.c.l.b16 %v3801
        %v3824 = vunpack.c.l.b16 %v3802
        %v3825 = vunpack.c.l.b16 %v3803
        %v3826 = vunpack.c.l.b16 %v3804
        %v3827 = vpack.c.b16 %v3817, %v3816
        %v3828 = vpack.c.b16 %v3819, %v3818
        %v3829 = vpack.c.b16 %v3821, %v3820
        %v3830 = vpack.c.b16 %v3823, %v3822
        %v3831 = vpack.c.b16 %v3825, %v3824
        %v3832 = vpack.c.b16 %v3826, %v3826
        %vm3838 = vcmask 687104
        %v3840 = vsel %vm3838, %v3775, 0
        %v3843 = vsel %vm3838, %v3776, 0
        %v3846 = vsel %vm3838, %v3777, 0
        %v3849 = vsel %vm3838, %v3778, 0
        %v3852 = vsel %vm3838, %v3779, 0
        %v3855 = vsel %vm3838, %v3780, 0
        %v3858 = vsel %vm3838, %v3781, 0
        %v3861 = vsel %vm3838, %v3782, 0
        %v3864 = vsel %vm3838, %v3783, 0
        %v3867 = vsel %vm3838, %v3784, 0
        %v3870 = vsel %vm3838, %v3785, 0
        %v3873 = vsel %vm3838, %v3786, 0
        %v3876 = vsel %vm3838, %v3787, 0
        %v3879 = vsel %vm3838, %v3788, 0
        %v3882 = vsel %vm3838, %v3789, 0
        %v3885 = vsel %vm3838, %v3790, 0
        %vm3887 = vcmask 1041408
        %v3889 = vsel %vm3887, %v3832, 0
        %3891 = vmatpush.bf16.msra.mxu0 0
        %3892 = vmatpush.bf16.msra.mxu0 0
        %3893 = vmatpush.bf16.msra.mxu0 %v3889
        %3894 = vmatpush.bf16.msra.mxu0 %v3831
        %3895 = vmatpush.bf16.msra.mxu0 %v3830
        %3896 = vmatpush.bf16.msra.mxu0 %v3829
        %3897 = vmatpush.bf16.msra.mxu0 %v3828
        %3898 = vmatpush.bf16.msra.mxu0 %v3827
        %3899 = vmatmul.bf16.gmra.mxu0 %v3840
        %v3900 = vpop.f32.mrf.mxu0
        %v3901 = vadd.f32 0.0, %v3900
        %v3902 = vpop.f32.mrf.mxu0
        %v3903 = vadd.f32 0.0, %v3902
        %3904 = vmatmul.bf16.gmra.mxu0 %v3843
        %v3905 = vpop.f32.mrf.mxu0
        %v3906 = vadd.f32 0.0, %v3905
        %v3907 = vpop.f32.mrf.mxu0
        %v3908 = vadd.f32 0.0, %v3907
        %3909 = vmatmul.bf16.gmra.mxu0 %v3846
        %v3910 = vpop.f32.mrf.mxu0
        %v3911 = vadd.f32 0.0, %v3910
        %v3912 = vpop.f32.mrf.mxu0
        %v3913 = vadd.f32 0.0, %v3912
        %3914 = vmatmul.bf16.gmra.mxu0 %v3849
        %v3915 = vpop.f32.mrf.mxu0
        %v3916 = vadd.f32 0.0, %v3915
        %v3917 = vpop.f32.mrf.mxu0
        %v3918 = vadd.f32 0.0, %v3917
        %3919 = vmatmul.bf16.gmra.mxu0 %v3852
        %v3920 = vpop.f32.mrf.mxu0
        %v3921 = vadd.f32 0.0, %v3920
        %v3922 = vpop.f32.mrf.mxu0
        %v3923 = vadd.f32 0.0, %v3922
        %3924 = vmatmul.bf16.gmra.mxu0 %v3855
        %v3925 = vpop.f32.mrf.mxu0
        %v3926 = vadd.f32 0.0, %v3925
        %v3927 = vpop.f32.mrf.mxu0
        %v3928 = vadd.f32 0.0, %v3927
        %3929 = vmatmul.bf16.gmra.mxu0 %v3858
        %v3930 = vpop.f32.mrf.mxu0
        %v3931 = vadd.f32 0.0, %v3930
        %v3932 = vpop.f32.mrf.mxu0
        %v3933 = vadd.f32 0.0, %v3932
        %3934 = vmatmul.bf16.gmra.mxu0 %v3861
        %v3935 = vpop.f32.mrf.mxu0
        %v3936 = vadd.f32 0.0, %v3935
        %v3937 = vpop.f32.mrf.mxu0
        %v3938 = vadd.f32 0.0, %v3937
        %3939 = vmatmul.bf16.gmra.mxu0 %v3864
        %v3940 = vpop.f32.mrf.mxu0
        %v3941 = vadd.f32 0.0, %v3940
        %v3942 = vpop.f32.mrf.mxu0
        %v3943 = vadd.f32 0.0, %v3942
        %3944 = vmatmul.bf16.gmra.mxu0 %v3867
        %v3945 = vpop.f32.mrf.mxu0
        %v3946 = vadd.f32 0.0, %v3945
        %v3947 = vpop.f32.mrf.mxu0
        %v3948 = vadd.f32 0.0, %v3947
        %3949 = vmatmul.bf16.gmra.mxu0 %v3870
        %v3950 = vpop.f32.mrf.mxu0
        %v3951 = vadd.f32 0.0, %v3950
        %v3952 = vpop.f32.mrf.mxu0
        %v3953 = vadd.f32 0.0, %v3952
        %3954 = vmatmul.bf16.gmra.mxu0 %v3873
        %v3955 = vpop.f32.mrf.mxu0
        %v3956 = vadd.f32 0.0, %v3955
        %v3957 = vpop.f32.mrf.mxu0
        %v3958 = vadd.f32 0.0, %v3957
        %3959 = vmatmul.bf16.gmra.mxu0 %v3876
        %v3960 = vpop.f32.mrf.mxu0
        %v3961 = vadd.f32 0.0, %v3960
        %v3962 = vpop.f32.mrf.mxu0
        %v3963 = vadd.f32 0.0, %v3962
        %3964 = vmatmul.bf16.gmra.mxu0 %v3879
        %v3965 = vpop.f32.mrf.mxu0
        %v3966 = vadd.f32 0.0, %v3965
        %v3967 = vpop.f32.mrf.mxu0
        %v3968 = vadd.f32 0.0, %v3967
        %3969 = vmatmul.bf16.gmra.mxu0 %v3882
        %v3970 = vpop.f32.mrf.mxu0
        %v3971 = vadd.f32 0.0, %v3970
        %v3972 = vpop.f32.mrf.mxu0
        %v3973 = vadd.f32 0.0, %v3972
        %3974 = vmatmul.bf16.gmra.mxu0 %v3885
        %v3975 = vpop.f32.mrf.mxu0
        %v3976 = vadd.f32 0.0, %v3975
        %v3977 = vpop.f32.mrf.mxu0
        %v3978 = vadd.f32 0.0, %v3977
        %3979 = vdwg.mxu0
        %v3980 = vadd.f32 %v3743, %v3901
        %v3981 = vadd.f32 %v3744, %v3903
        %v3982 = vadd.f32 %v3745, %v3906
        %v3983 = vadd.f32 %v3746, %v3908
        %v3984 = vadd.f32 %v3747, %v3911
        %v3985 = vadd.f32 %v3748, %v3913
        %v3986 = vadd.f32 %v3749, %v3916
        %v3987 = vadd.f32 %v3750, %v3918
        %v3988 = vadd.f32 %v3751, %v3921
        %v3989 = vadd.f32 %v3752, %v3923
        %v3990 = vadd.f32 %v3753, %v3926
        %v3991 = vadd.f32 %v3754, %v3928
        %v3992 = vadd.f32 %v3755, %v3931
        %v3993 = vadd.f32 %v3756, %v3933
        %v3994 = vadd.f32 %v3757, %v3936
        %v3995 = vadd.f32 %v3758, %v3938
        %v3996 = vadd.f32 %v3759, %v3941
        %v3997 = vadd.f32 %v3760, %v3943
        %v3998 = vadd.f32 %v3761, %v3946
        %v3999 = vadd.f32 %v3762, %v3948
        %v4000 = vadd.f32 %v3763, %v3951
        %v4001 = vadd.f32 %v3764, %v3953
        %v4002 = vadd.f32 %v3765, %v3956
        %v4003 = vadd.f32 %v3766, %v3958
        %v4004 = vadd.f32 %v3767, %v3961
        %v4005 = vadd.f32 %v3768, %v3963
        %v4006 = vadd.f32 %v3769, %v3966
        %v4007 = vadd.f32 %v3770, %v3968
        %v4008 = vadd.f32 %v3771, %v3971
        %v4009 = vadd.f32 %v3772, %v3973
        %v4010 = vadd.f32 %v3773, %v3976
        %v4011 = vadd.f32 %v3774, %v3978
        %4012 = vst [vmem:[#allocation2] sm:$0xff] %v3980
        %4013 = vst [vmem:[#allocation2 + $0x8] sm:$0xff] %v3981
        %4014 = vst [vmem:[#allocation2 + $0x10] sm:$0xff] %v3982
        %4015 = vst [vmem:[#allocation2 + $0x18] sm:$0xff] %v3983
        %4016 = vst [vmem:[#allocation2 + $0x20] sm:$0xff] %v3984
        %4017 = vst [vmem:[#allocation2 + $0x28] sm:$0xff] %v3985
        %4018 = vst [vmem:[#allocation2 + $0x30] sm:$0xff] %v3986
        %4019 = vst [vmem:[#allocation2 + $0x38] sm:$0xff] %v3987
        %4020 = vst [vmem:[#allocation2 + $0x40] sm:$0xff] %v3988
        %4021 = vst [vmem:[#allocation2 + $0x48] sm:$0xff] %v3989
        %4022 = vst [vmem:[#allocation2 + $0x50] sm:$0xff] %v3990
        %4023 = vst [vmem:[#allocation2 + $0x58] sm:$0xff] %v3991
        %4024 = vst [vmem:[#allocation2 + $0x60] sm:$0xff] %v3992
        %4025 = vst [vmem:[#allocation2 + $0x68] sm:$0xff] %v3993
        %4026 = vst [vmem:[#allocation2 + $0x70] sm:$0xff] %v3994
        %4027 = vst [vmem:[#allocation2 + $0x78] sm:$0xff] %v3995
        %4028 = vst [vmem:[#allocation2 + $0x80] sm:$0xff] %v3996
        %4029 = vst [vmem:[#allocation2 + $0x88] sm:$0xff] %v3997
        %4030 = vst [vmem:[#allocation2 + $0x90] sm:$0xff] %v3998
        %4031 = vst [vmem:[#allocation2 + $0x98] sm:$0xff] %v3999
        %4032 = vst [vmem:[#allocation2 + $0xa0] sm:$0xff] %v4000
        %4033 = vst [vmem:[#allocation2 + $0xa8] sm:$0xff] %v4001
        %4034 = vst [vmem:[#allocation2 + $0xb0] sm:$0xff] %v4002
        %4035 = vst [vmem:[#allocation2 + $0xb8] sm:$0xff] %v4003
        %4036 = vst [vmem:[#allocation2 + $0xc0] sm:$0xff] %v4004
        %4037 = vst [vmem:[#allocation2 + $0xc8] sm:$0xff] %v4005
        %4038 = vst [vmem:[#allocation2 + $0xd0] sm:$0xff] %v4006
        %4039 = vst [vmem:[#allocation2 + $0xd8] sm:$0xff] %v4007
        %4040 = vst [vmem:[#allocation2 + $0xe0] sm:$0xff] %v4008
        %4041 = vst [vmem:[#allocation2 + $0xe8] sm:$0xff] %v4009
        %4042 = vst [vmem:[#allocation2 + $0xf0] sm:$0xff] %v4010
        %4043 = vst [vmem:[#allocation2 + $0xf8] sm:$0xff] %v4011
      $region41: #{block_forward.1} parent=35 // loop_footer
        %s236 = sadd.s32 1, %s232
      $region42: #{block_forward.1} parent=35 // loop_footer_branch
        %231 = sbr.rel target = $region38
      $region43: #{block_forward.1} parent=35 // loop_exit
        _
      %v4044 = vld [vmem:[#allocation2] sm:$0xff]
      %v4045 = vld [vmem:[#allocation2 + $0x8] sm:$0xff]
      %v4046 = vld [vmem:[#allocation2 + $0x10] sm:$0xff]
      %v4047 = vld [vmem:[#allocation2 + $0x18] sm:$0xff]
      %v4048 = vld [vmem:[#allocation2 + $0x20] sm:$0xff]
      %v4049 = vld [vmem:[#allocation2 + $0x28] sm:$0xff]
      %v4050 = vld [vmem:[#allocation2 + $0x30] sm:$0xff]
      %v4051 = vld [vmem:[#allocation2 + $0x38] sm:$0xff]
      %v4052 = vld [vmem:[#allocation2 + $0x40] sm:$0xff]
      %v4053 = vld [vmem:[#allocation2 + $0x48] sm:$0xff]
      %v4054 = vld [vmem:[#allocation2 + $0x50] sm:$0xff]
      %v4055 = vld [vmem:[#allocation2 + $0x58] sm:$0xff]
      %v4056 = vld [vmem:[#allocation2 + $0x60] sm:$0xff]
      %v4057 = vld [vmem:[#allocation2 + $0x68] sm:$0xff]
      %v4058 = vld [vmem:[#allocation2 + $0x70] sm:$0xff]
      %v4059 = vld [vmem:[#allocation2 + $0x78] sm:$0xff]
      %v4060 = vld [vmem:[#allocation2 + $0x80] sm:$0xff]
      %v4061 = vld [vmem:[#allocation2 + $0x88] sm:$0xff]
      %v4062 = vld [vmem:[#allocation2 + $0x90] sm:$0xff]
      %v4063 = vld [vmem:[#allocation2 + $0x98] sm:$0xff]
      %v4064 = vld [vmem:[#allocation2 + $0xa0] sm:$0xff]
      %v4065 = vld [vmem:[#allocation2 + $0xa8] sm:$0xff]
      %v4066 = vld [vmem:[#allocation2 + $0xb0] sm:$0xff]
      %v4067 = vld [vmem:[#allocation2 + $0xb8] sm:$0xff]
      %v4068 = vld [vmem:[#allocation2 + $0xc0] sm:$0xff]
      %v4069 = vld [vmem:[#allocation2 + $0xc8] sm:$0xff]
      %v4070 = vld [vmem:[#allocation2 + $0xd0] sm:$0xff]
      %v4071 = vld [vmem:[#allocation2 + $0xd8] sm:$0xff]
      %v4072 = vld [vmem:[#allocation2 + $0xe0] sm:$0xff]
      %v4073 = vld [vmem:[#allocation2 + $0xe8] sm:$0xff]
      %v4074 = vld [vmem:[#allocation2 + $0xf0] sm:$0xff]
      %v4075 = vld [vmem:[#allocation2 + $0xf8] sm:$0xff]
      %v4076 = vld [vmem:[%s2] sm:$0x1]
      %v4078 = vperm.slane %v4076, 0
      %v4080 = vadd.f32 %v4044, %v4078
      %v4081 = vadd.f32 %v4045, %v4078
      %v4082 = vadd.f32 %v4046, %v4078
      %v4083 = vadd.f32 %v4047, %v4078
      %v4084 = vadd.f32 %v4048, %v4078
      %v4085 = vadd.f32 %v4049, %v4078
      %v4086 = vadd.f32 %v4050, %v4078
      %v4087 = vadd.f32 %v4051, %v4078
      %v4088 = vadd.f32 %v4052, %v4078
      %v4089 = vadd.f32 %v4053, %v4078
      %v4090 = vadd.f32 %v4054, %v4078
      %v4091 = vadd.f32 %v4055, %v4078
      %v4092 = vadd.f32 %v4056, %v4078
      %v4093 = vadd.f32 %v4057, %v4078
      %v4094 = vadd.f32 %v4058, %v4078
      %v4095 = vadd.f32 %v4059, %v4078
      %v4096 = vadd.f32 %v4060, %v4078
      %v4097 = vadd.f32 %v4061, %v4078
      %v4098 = vadd.f32 %v4062, %v4078
      %v4099 = vadd.f32 %v4063, %v4078
      %v4100 = vadd.f32 %v4064, %v4078
      %v4101 = vadd.f32 %v4065, %v4078
      %v4102 = vadd.f32 %v4066, %v4078
      %v4103 = vadd.f32 %v4067, %v4078
      %v4104 = vadd.f32 %v4068, %v4078
      %v4105 = vadd.f32 %v4069, %v4078
      %v4106 = vadd.f32 %v4070, %v4078
      %v4107 = vadd.f32 %v4071, %v4078
      %v4108 = vadd.f32 %v4072, %v4078
      %v4109 = vadd.f32 %v4073, %v4078
      %v4110 = vadd.f32 %v4074, %v4078
      %v4111 = vadd.f32 %v4075, %v4078
      %v4112 = vmul.f32 %v4080, %v4080
      %v4113 = vmul.f32 %v4081, %v4081
      %v4114 = vmul.f32 %v4082, %v4082
      %v4115 = vmul.f32 %v4083, %v4083
      %v4116 = vmul.f32 %v4084, %v4084
      %v4117 = vmul.f32 %v4085, %v4085
      %v4118 = vmul.f32 %v4086, %v4086
      %v4119 = vmul.f32 %v4087, %v4087
      %v4120 = vmul.f32 %v4088, %v4088
      %v4121 = vmul.f32 %v4089, %v4089
      %v4122 = vmul.f32 %v4090, %v4090
      %v4123 = vmul.f32 %v4091, %v4091
      %v4124 = vmul.f32 %v4092, %v4092
      %v4125 = vmul.f32 %v4093, %v4093
      %v4126 = vmul.f32 %v4094, %v4094
      %v4127 = vmul.f32 %v4095, %v4095
      %v4128 = vmul.f32 %v4096, %v4096
      %v4129 = vmul.f32 %v4097, %v4097
      %v4130 = vmul.f32 %v4098, %v4098
      %v4131 = vmul.f32 %v4099, %v4099
      %v4132 = vmul.f32 %v4100, %v4100
      %v4133 = vmul.f32 %v4101, %v4101
      %v4134 = vmul.f32 %v4102, %v4102
      %v4135 = vmul.f32 %v4103, %v4103
      %v4136 = vmul.f32 %v4104, %v4104
      %v4137 = vmul.f32 %v4105, %v4105
      %v4138 = vmul.f32 %v4106, %v4106
      %v4139 = vmul.f32 %v4107, %v4107
      %v4140 = vmul.f32 %v4108, %v4108
      %v4141 = vmul.f32 %v4109, %v4109
      %v4142 = vmul.f32 %v4110, %v4110
      %v4143 = vmul.f32 %v4111, %v4111
      %4144 = vadd.xlane.f32.xlu0 %v4112
      %v4145 = vpop.xlane.xlu0 %4144
      %4146 = vadd.xlane.f32.xlu0 %v4113
      %v4147 = vpop.xlane.xlu0 %4146
      %4148 = vadd.xlane.f32.xlu0 %v4114
      %v4149 = vpop.xlane.xlu0 %4148
      %4150 = vadd.xlane.f32.xlu0 %v4115
      %v4151 = vpop.xlane.xlu0 %4150
      %4152 = vadd.xlane.f32.xlu0 %v4116
      %v4153 = vpop.xlane.xlu0 %4152
      %4154 = vadd.xlane.f32.xlu0 %v4117
      %v4155 = vpop.xlane.xlu0 %4154
      %4156 = vadd.xlane.f32.xlu0 %v4118
      %v4157 = vpop.xlane.xlu0 %4156
      %4158 = vadd.xlane.f32.xlu0 %v4119
      %v4159 = vpop.xlane.xlu0 %4158
      %4160 = vadd.xlane.f32.xlu0 %v4120
      %v4161 = vpop.xlane.xlu0 %4160
      %4162 = vadd.xlane.f32.xlu0 %v4121
      %v4163 = vpop.xlane.xlu0 %4162
      %4164 = vadd.xlane.f32.xlu0 %v4122
      %v4165 = vpop.xlane.xlu0 %4164
      %4166 = vadd.xlane.f32.xlu0 %v4123
      %v4167 = vpop.xlane.xlu0 %4166
      %4168 = vadd.xlane.f32.xlu0 %v4124
      %v4169 = vpop.xlane.xlu0 %4168
      %4170 = vadd.xlane.f32.xlu0 %v4125
      %v4171 = vpop.xlane.xlu0 %4170
      %4172 = vadd.xlane.f32.xlu0 %v4126
      %v4173 = vpop.xlane.xlu0 %4172
      %4174 = vadd.xlane.f32.xlu0 %v4127
      %v4175 = vpop.xlane.xlu0 %4174
      %4176 = vadd.xlane.f32.xlu0 %v4128
      %v4177 = vpop.xlane.xlu0 %4176
      %4178 = vadd.xlane.f32.xlu0 %v4129
      %v4179 = vpop.xlane.xlu0 %4178
      %4180 = vadd.xlane.f32.xlu0 %v4130
      %v4181 = vpop.xlane.xlu0 %4180
      %4182 = vadd.xlane.f32.xlu0 %v4131
      %v4183 = vpop.xlane.xlu0 %4182
      %4184 = vadd.xlane.f32.xlu0 %v4132
      %v4185 = vpop.xlane.xlu0 %4184
      %4186 = vadd.xlane.f32.xlu0 %v4133
      %v4187 = vpop.xlane.xlu0 %4186
      %4188 = vadd.xlane.f32.xlu0 %v4134
      %v4189 = vpop.xlane.xlu0 %4188
      %4190 = vadd.xlane.f32.xlu0 %v4135
      %v4191 = vpop.xlane.xlu0 %4190
      %4192 = vadd.xlane.f32.xlu0 %v4136
      %v4193 = vpop.xlane.xlu0 %4192
      %4194 = vadd.xlane.f32.xlu0 %v4137
      %v4195 = vpop.xlane.xlu0 %4194
      %4196 = vadd.xlane.f32.xlu0 %v4138
      %v4197 = vpop.xlane.xlu0 %4196
      %4198 = vadd.xlane.f32.xlu0 %v4139
      %v4199 = vpop.xlane.xlu0 %4198
      %4200 = vadd.xlane.f32.xlu0 %v4140
      %v4201 = vpop.xlane.xlu0 %4200
      %4202 = vadd.xlane.f32.xlu0 %v4141
      %v4203 = vpop.xlane.xlu0 %4202
      %4204 = vadd.xlane.f32.xlu0 %v4142
      %v4205 = vpop.xlane.xlu0 %4204
      %4206 = vadd.xlane.f32.xlu0 %v4143
      %v4207 = vpop.xlane.xlu0 %4206
      %v4208 = vmax.f32 %v4145, 1e-24
      %v4209 = vmax.f32 %v4147, 1e-24
      %v4210 = vmax.f32 %v4149, 1e-24
      %v4211 = vmax.f32 %v4151, 1e-24
      %v4212 = vmax.f32 %v4153, 1e-24
      %v4213 = vmax.f32 %v4155, 1e-24
      %v4214 = vmax.f32 %v4157, 1e-24
      %v4215 = vmax.f32 %v4159, 1e-24
      %v4216 = vmax.f32 %v4161, 1e-24
      %v4217 = vmax.f32 %v4163, 1e-24
      %v4218 = vmax.f32 %v4165, 1e-24
      %v4219 = vmax.f32 %v4167, 1e-24
      %v4220 = vmax.f32 %v4169, 1e-24
      %v4221 = vmax.f32 %v4171, 1e-24
      %v4222 = vmax.f32 %v4173, 1e-24
      %v4223 = vmax.f32 %v4175, 1e-24
      %v4224 = vmax.f32 %v4177, 1e-24
      %v4225 = vmax.f32 %v4179, 1e-24
      %v4226 = vmax.f32 %v4181, 1e-24
      %v4227 = vmax.f32 %v4183, 1e-24
      %v4228 = vmax.f32 %v4185, 1e-24
      %v4229 = vmax.f32 %v4187, 1e-24
      %v4230 = vmax.f32 %v4189, 1e-24
      %v4231 = vmax.f32 %v4191, 1e-24
      %v4232 = vmax.f32 %v4193, 1e-24
      %v4233 = vmax.f32 %v4195, 1e-24
      %v4234 = vmax.f32 %v4197, 1e-24
      %v4235 = vmax.f32 %v4199, 1e-24
      %v4236 = vmax.f32 %v4201, 1e-24
      %v4237 = vmax.f32 %v4203, 1e-24
      %v4238 = vmax.f32 %v4205, 1e-24
      %v4239 = vmax.f32 %v4207, 1e-24
      %v4240 = vrsqrt.pop %v4208
      %v4241 = vmul.f32 %v4240, %v4208
      %v4242 = vmul.f32 %v4241, %v4240
      %v4243 = vmul.f32 0.5, %v4242
      %v4244 = vsub.f32 1.5, %v4243
      %v4245 = vmul.f32 %v4240, %v4244
      %vm4246 = vweird.f32 %v4208
      %vm4247 = vweird.f32 %v4240
      %vm4248 = vmor %vm4246, %vm4247
      %v4249 = vsel %vm4248, %v4240, %v4245
      %v4250 = vrsqrt.pop %v4209
      %v4251 = vmul.f32 %v4250, %v4209
      %v4252 = vmul.f32 %v4251, %v4250
      %v4253 = vmul.f32 0.5, %v4252
      %v4254 = vsub.f32 1.5, %v4253
      %v4255 = vmul.f32 %v4250, %v4254
      %vm4256 = vweird.f32 %v4209
      %vm4257 = vweird.f32 %v4250
      %vm4258 = vmor %vm4256, %vm4257
      %v4259 = vsel %vm4258, %v4250, %v4255
      %v4260 = vrsqrt.pop %v4210
      %v4261 = vmul.f32 %v4260, %v4210
      %v4262 = vmul.f32 %v4261, %v4260
      %v4263 = vmul.f32 0.5, %v4262
      %v4264 = vsub.f32 1.5, %v4263
      %v4265 = vmul.f32 %v4260, %v4264
      %vm4266 = vweird.f32 %v4210
      %vm4267 = vweird.f32 %v4260
      %vm4268 = vmor %vm4266, %vm4267
      %v4269 = vsel %vm4268, %v4260, %v4265
      %v4270 = vrsqrt.pop %v4211
      %v4271 = vmul.f32 %v4270, %v4211
      %v4272 = vmul.f32 %v4271, %v4270
      %v4273 = vmul.f32 0.5, %v4272
      %v4274 = vsub.f32 1.5, %v4273
      %v4275 = vmul.f32 %v4270, %v4274
      %vm4276 = vweird.f32 %v4211
      %vm4277 = vweird.f32 %v4270
      %vm4278 = vmor %vm4276, %vm4277
      %v4279 = vsel %vm4278, %v4270, %v4275
      %v4280 = vrsqrt.pop %v4212
      %v4281 = vmul.f32 %v4280, %v4212
      %v4282 = vmul.f32 %v4281, %v4280
      %v4283 = vmul.f32 0.5, %v4282
      %v4284 = vsub.f32 1.5, %v4283
      %v4285 = vmul.f32 %v4280, %v4284
      %vm4286 = vweird.f32 %v4212
      %vm4287 = vweird.f32 %v4280
      %vm4288 = vmor %vm4286, %vm4287
      %v4289 = vsel %vm4288, %v4280, %v4285
      %v4290 = vrsqrt.pop %v4213
      %v4291 = vmul.f32 %v4290, %v4213
      %v4292 = vmul.f32 %v4291, %v4290
      %v4293 = vmul.f32 0.5, %v4292
      %v4294 = vsub.f32 1.5, %v4293
      %v4295 = vmul.f32 %v4290, %v4294
      %vm4296 = vweird.f32 %v4213
      %vm4297 = vweird.f32 %v4290
      %vm4298 = vmor %vm4296, %vm4297
      %v4299 = vsel %vm4298, %v4290, %v4295
      %v4300 = vrsqrt.pop %v4214
      %v4301 = vmul.f32 %v4300, %v4214
      %v4302 = vmul.f32 %v4301, %v4300
      %v4303 = vmul.f32 0.5, %v4302
      %v4304 = vsub.f32 1.5, %v4303
      %v4305 = vmul.f32 %v4300, %v4304
      %vm4306 = vweird.f32 %v4214
      %vm4307 = vweird.f32 %v4300
      %vm4308 = vmor %vm4306, %vm4307
      %v4309 = vsel %vm4308, %v4300, %v4305
      %v4310 = vrsqrt.pop %v4215
      %v4311 = vmul.f32 %v4310, %v4215
      %v4312 = vmul.f32 %v4311, %v4310
      %v4313 = vmul.f32 0.5, %v4312
      %v4314 = vsub.f32 1.5, %v4313
      %v4315 = vmul.f32 %v4310, %v4314
      %vm4316 = vweird.f32 %v4215
      %vm4317 = vweird.f32 %v4310
      %vm4318 = vmor %vm4316, %vm4317
      %v4319 = vsel %vm4318, %v4310, %v4315
      %v4320 = vrsqrt.pop %v4216
      %v4321 = vmul.f32 %v4320, %v4216
      %v4322 = vmul.f32 %v4321, %v4320
      %v4323 = vmul.f32 0.5, %v4322
      %v4324 = vsub.f32 1.5, %v4323
      %v4325 = vmul.f32 %v4320, %v4324
      %vm4326 = vweird.f32 %v4216
      %vm4327 = vweird.f32 %v4320
      %vm4328 = vmor %vm4326, %vm4327
      %v4329 = vsel %vm4328, %v4320, %v4325
      %v4330 = vrsqrt.pop %v4217
      %v4331 = vmul.f32 %v4330, %v4217
      %v4332 = vmul.f32 %v4331, %v4330
      %v4333 = vmul.f32 0.5, %v4332
      %v4334 = vsub.f32 1.5, %v4333
      %v4335 = vmul.f32 %v4330, %v4334
      %vm4336 = vweird.f32 %v4217
      %vm4337 = vweird.f32 %v4330
      %vm4338 = vmor %vm4336, %vm4337
      %v4339 = vsel %vm4338, %v4330, %v4335
      %v4340 = vrsqrt.pop %v4218
      %v4341 = vmul.f32 %v4340, %v4218
      %v4342 = vmul.f32 %v4341, %v4340
      %v4343 = vmul.f32 0.5, %v4342
      %v4344 = vsub.f32 1.5, %v4343
      %v4345 = vmul.f32 %v4340, %v4344
      %vm4346 = vweird.f32 %v4218
      %vm4347 = vweird.f32 %v4340
      %vm4348 = vmor %vm4346, %vm4347
      %v4349 = vsel %vm4348, %v4340, %v4345
      %v4350 = vrsqrt.pop %v4219
      %v4351 = vmul.f32 %v4350, %v4219
      %v4352 = vmul.f32 %v4351, %v4350
      %v4353 = vmul.f32 0.5, %v4352
      %v4354 = vsub.f32 1.5, %v4353
      %v4355 = vmul.f32 %v4350, %v4354
      %vm4356 = vweird.f32 %v4219
      %vm4357 = vweird.f32 %v4350
      %vm4358 = vmor %vm4356, %vm4357
      %v4359 = vsel %vm4358, %v4350, %v4355
      %v4360 = vrsqrt.pop %v4220
      %v4361 = vmul.f32 %v4360, %v4220
      %v4362 = vmul.f32 %v4361, %v4360
      %v4363 = vmul.f32 0.5, %v4362
      %v4364 = vsub.f32 1.5, %v4363
      %v4365 = vmul.f32 %v4360, %v4364
      %vm4366 = vweird.f32 %v4220
      %vm4367 = vweird.f32 %v4360
      %vm4368 = vmor %vm4366, %vm4367
      %v4369 = vsel %vm4368, %v4360, %v4365
      %v4370 = vrsqrt.pop %v4221
      %v4371 = vmul.f32 %v4370, %v4221
      %v4372 = vmul.f32 %v4371, %v4370
      %v4373 = vmul.f32 0.5, %v4372
      %v4374 = vsub.f32 1.5, %v4373
      %v4375 = vmul.f32 %v4370, %v4374
      %vm4376 = vweird.f32 %v4221
      %vm4377 = vweird.f32 %v4370
      %vm4378 = vmor %vm4376, %vm4377
      %v4379 = vsel %vm4378, %v4370, %v4375
      %v4380 = vrsqrt.pop %v4222
      %v4381 = vmul.f32 %v4380, %v4222
      %v4382 = vmul.f32 %v4381, %v4380
      %v4383 = vmul.f32 0.5, %v4382
      %v4384 = vsub.f32 1.5, %v4383
      %v4385 = vmul.f32 %v4380, %v4384
      %vm4386 = vweird.f32 %v4222
      %vm4387 = vweird.f32 %v4380
      %vm4388 = vmor %vm4386, %vm4387
      %v4389 = vsel %vm4388, %v4380, %v4385
      %v4390 = vrsqrt.pop %v4223
      %v4391 = vmul.f32 %v4390, %v4223
      %v4392 = vmul.f32 %v4391, %v4390
      %v4393 = vmul.f32 0.5, %v4392
      %v4394 = vsub.f32 1.5, %v4393
      %v4395 = vmul.f32 %v4390, %v4394
      %vm4396 = vweird.f32 %v4223
      %vm4397 = vweird.f32 %v4390
      %vm4398 = vmor %vm4396, %vm4397
      %v4399 = vsel %vm4398, %v4390, %v4395
      %v4400 = vrsqrt.pop %v4224
      %v4401 = vmul.f32 %v4400, %v4224
      %v4402 = vmul.f32 %v4401, %v4400
      %v4403 = vmul.f32 0.5, %v4402
      %v4404 = vsub.f32 1.5, %v4403
      %v4405 = vmul.f32 %v4400, %v4404
      %vm4406 = vweird.f32 %v4224
      %vm4407 = vweird.f32 %v4400
      %vm4408 = vmor %vm4406, %vm4407
      %v4409 = vsel %vm4408, %v4400, %v4405
      %v4410 = vrsqrt.pop %v4225
      %v4411 = vmul.f32 %v4410, %v4225
      %v4412 = vmul.f32 %v4411, %v4410
      %v4413 = vmul.f32 0.5, %v4412
      %v4414 = vsub.f32 1.5, %v4413
      %v4415 = vmul.f32 %v4410, %v4414
      %vm4416 = vweird.f32 %v4225
      %vm4417 = vweird.f32 %v4410
      %vm4418 = vmor %vm4416, %vm4417
      %v4419 = vsel %vm4418, %v4410, %v4415
      %v4420 = vrsqrt.pop %v4226
      %v4421 = vmul.f32 %v4420, %v4226
      %v4422 = vmul.f32 %v4421, %v4420
      %v4423 = vmul.f32 0.5, %v4422
      %v4424 = vsub.f32 1.5, %v4423
      %v4425 = vmul.f32 %v4420, %v4424
      %vm4426 = vweird.f32 %v4226
      %vm4427 = vweird.f32 %v4420
      %vm4428 = vmor %vm4426, %vm4427
      %v4429 = vsel %vm4428, %v4420, %v4425
      %v4430 = vrsqrt.pop %v4227
      %v4431 = vmul.f32 %v4430, %v4227
      %v4432 = vmul.f32 %v4431, %v4430
      %v4433 = vmul.f32 0.5, %v4432
      %v4434 = vsub.f32 1.5, %v4433
      %v4435 = vmul.f32 %v4430, %v4434
      %vm4436 = vweird.f32 %v4227
      %vm4437 = vweird.f32 %v4430
      %vm4438 = vmor %vm4436, %vm4437
      %v4439 = vsel %vm4438, %v4430, %v4435
      %v4440 = vrsqrt.pop %v4228
      %v4441 = vmul.f32 %v4440, %v4228
      %v4442 = vmul.f32 %v4441, %v4440
      %v4443 = vmul.f32 0.5, %v4442
      %v4444 = vsub.f32 1.5, %v4443
      %v4445 = vmul.f32 %v4440, %v4444
      %vm4446 = vweird.f32 %v4228
      %vm4447 = vweird.f32 %v4440
      %vm4448 = vmor %vm4446, %vm4447
      %v4449 = vsel %vm4448, %v4440, %v4445
      %v4450 = vrsqrt.pop %v4229
      %v4451 = vmul.f32 %v4450, %v4229
      %v4452 = vmul.f32 %v4451, %v4450
      %v4453 = vmul.f32 0.5, %v4452
      %v4454 = vsub.f32 1.5, %v4453
      %v4455 = vmul.f32 %v4450, %v4454
      %vm4456 = vweird.f32 %v4229
      %vm4457 = vweird.f32 %v4450
      %vm4458 = vmor %vm4456, %vm4457
      %v4459 = vsel %vm4458, %v4450, %v4455
      %v4460 = vrsqrt.pop %v4230
      %v4461 = vmul.f32 %v4460, %v4230
      %v4462 = vmul.f32 %v4461, %v4460
      %v4463 = vmul.f32 0.5, %v4462
      %v4464 = vsub.f32 1.5, %v4463
      %v4465 = vmul.f32 %v4460, %v4464
      %vm4466 = vweird.f32 %v4230
      %vm4467 = vweird.f32 %v4460
      %vm4468 = vmor %vm4466, %vm4467
      %v4469 = vsel %vm4468, %v4460, %v4465
      %v4470 = vrsqrt.pop %v4231
      %v4471 = vmul.f32 %v4470, %v4231
      %v4472 = vmul.f32 %v4471, %v4470
      %v4473 = vmul.f32 0.5, %v4472
      %v4474 = vsub.f32 1.5, %v4473
      %v4475 = vmul.f32 %v4470, %v4474
      %vm4476 = vweird.f32 %v4231
      %vm4477 = vweird.f32 %v4470
      %vm4478 = vmor %vm4476, %vm4477
      %v4479 = vsel %vm4478, %v4470, %v4475
      %v4480 = vrsqrt.pop %v4232
      %v4481 = vmul.f32 %v4480, %v4232
      %v4482 = vmul.f32 %v4481, %v4480
      %v4483 = vmul.f32 0.5, %v4482
      %v4484 = vsub.f32 1.5, %v4483
      %v4485 = vmul.f32 %v4480, %v4484
      %vm4486 = vweird.f32 %v4232
      %vm4487 = vweird.f32 %v4480
      %vm4488 = vmor %vm4486, %vm4487
      %v4489 = vsel %vm4488, %v4480, %v4485
      %v4490 = vrsqrt.pop %v4233
      %v4491 = vmul.f32 %v4490, %v4233
      %v4492 = vmul.f32 %v4491, %v4490
      %v4493 = vmul.f32 0.5, %v4492
      %v4494 = vsub.f32 1.5, %v4493
      %v4495 = vmul.f32 %v4490, %v4494
      %vm4496 = vweird.f32 %v4233
      %vm4497 = vweird.f32 %v4490
      %vm4498 = vmor %vm4496, %vm4497
      %v4499 = vsel %vm4498, %v4490, %v4495
      %v4500 = vrsqrt.pop %v4234
      %v4501 = vmul.f32 %v4500, %v4234
      %v4502 = vmul.f32 %v4501, %v4500
      %v4503 = vmul.f32 0.5, %v4502
      %v4504 = vsub.f32 1.5, %v4503
      %v4505 = vmul.f32 %v4500, %v4504
      %vm4506 = vweird.f32 %v4234
      %vm4507 = vweird.f32 %v4500
      %vm4508 = vmor %vm4506, %vm4507
      %v4509 = vsel %vm4508, %v4500, %v4505
      %v4510 = vrsqrt.pop %v4235
      %v4511 = vmul.f32 %v4510, %v4235
      %v4512 = vmul.f32 %v4511, %v4510
      %v4513 = vmul.f32 0.5, %v4512
      %v4514 = vsub.f32 1.5, %v4513
      %v4515 = vmul.f32 %v4510, %v4514
      %vm4516 = vweird.f32 %v4235
      %vm4517 = vweird.f32 %v4510
      %vm4518 = vmor %vm4516, %vm4517
      %v4519 = vsel %vm4518, %v4510, %v4515
      %v4520 = vrsqrt.pop %v4236
      %v4521 = vmul.f32 %v4520, %v4236
      %v4522 = vmul.f32 %v4521, %v4520
      %v4523 = vmul.f32 0.5, %v4522
      %v4524 = vsub.f32 1.5, %v4523
      %v4525 = vmul.f32 %v4520, %v4524
      %vm4526 = vweird.f32 %v4236
      %vm4527 = vweird.f32 %v4520
      %vm4528 = vmor %vm4526, %vm4527
      %v4529 = vsel %vm4528, %v4520, %v4525
      %v4530 = vrsqrt.pop %v4237
      %v4531 = vmul.f32 %v4530, %v4237
      %v4532 = vmul.f32 %v4531, %v4530
      %v4533 = vmul.f32 0.5, %v4532
      %v4534 = vsub.f32 1.5, %v4533
      %v4535 = vmul.f32 %v4530, %v4534
      %vm4536 = vweird.f32 %v4237
      %vm4537 = vweird.f32 %v4530
      %vm4538 = vmor %vm4536, %vm4537
      %v4539 = vsel %vm4538, %v4530, %v4535
      %v4540 = vrsqrt.pop %v4238
      %v4541 = vmul.f32 %v4540, %v4238
      %v4542 = vmul.f32 %v4541, %v4540
      %v4543 = vmul.f32 0.5, %v4542
      %v4544 = vsub.f32 1.5, %v4543
      %v4545 = vmul.f32 %v4540, %v4544
      %vm4546 = vweird.f32 %v4238
      %vm4547 = vweird.f32 %v4540
      %vm4548 = vmor %vm4546, %vm4547
      %v4549 = vsel %vm4548, %v4540, %v4545
      %v4550 = vrsqrt.pop %v4239
      %v4551 = vmul.f32 %v4550, %v4239
      %v4552 = vmul.f32 %v4551, %v4550
      %v4553 = vmul.f32 0.5, %v4552
      %v4554 = vsub.f32 1.5, %v4553
      %v4555 = vmul.f32 %v4550, %v4554
      %vm4556 = vweird.f32 %v4239
      %vm4557 = vweird.f32 %v4550
      %vm4558 = vmor %vm4556, %vm4557
      %v4559 = vsel %vm4558, %v4550, %v4555
      %v4560 = vmul.f32 %v4080, %v4249
      %v4561 = vmul.f32 %v4081, %v4259
      %v4562 = vmul.f32 %v4082, %v4269
      %v4563 = vmul.f32 %v4083, %v4279
      %v4564 = vmul.f32 %v4084, %v4289
      %v4565 = vmul.f32 %v4085, %v4299
      %v4566 = vmul.f32 %v4086, %v4309
      %v4567 = vmul.f32 %v4087, %v4319
      %v4568 = vmul.f32 %v4088, %v4329
      %v4569 = vmul.f32 %v4089, %v4339
      %v4570 = vmul.f32 %v4090, %v4349
      %v4571 = vmul.f32 %v4091, %v4359
      %v4572 = vmul.f32 %v4092, %v4369
      %v4573 = vmul.f32 %v4093, %v4379
      %v4574 = vmul.f32 %v4094, %v4389
      %v4575 = vmul.f32 %v4095, %v4399
      %v4576 = vmul.f32 %v4096, %v4409
      %v4577 = vmul.f32 %v4097, %v4419
      %v4578 = vmul.f32 %v4098, %v4429
      %v4579 = vmul.f32 %v4099, %v4439
      %v4580 = vmul.f32 %v4100, %v4449
      %v4581 = vmul.f32 %v4101, %v4459
      %v4582 = vmul.f32 %v4102, %v4469
      %v4583 = vmul.f32 %v4103, %v4479
      %v4584 = vmul.f32 %v4104, %v4489
      %v4585 = vmul.f32 %v4105, %v4499
      %v4586 = vmul.f32 %v4106, %v4509
      %v4587 = vmul.f32 %v4107, %v4519
      %v4588 = vmul.f32 %v4108, %v4529
      %v4589 = vmul.f32 %v4109, %v4539
      %v4590 = vmul.f32 %v4110, %v4549
      %v4591 = vmul.f32 %v4111, %v4559
      %v4592 = vld [vmem:[%s3] sm:$0x1]
      %v4593 = vmul.f32 %v4592, 2.828427
      %v4595 = vperm.slane %v4593, 0
      %v4597 = vmul.f32 %v4560, %v4595
      %v4598 = vmul.f32 %v4561, %v4595
      %v4599 = vmul.f32 %v4562, %v4595
      %v4600 = vmul.f32 %v4563, %v4595
      %v4601 = vmul.f32 %v4564, %v4595
      %v4602 = vmul.f32 %v4565, %v4595
      %v4603 = vmul.f32 %v4566, %v4595
      %v4604 = vmul.f32 %v4567, %v4595
      %v4605 = vmul.f32 %v4568, %v4595
      %v4606 = vmul.f32 %v4569, %v4595
      %v4607 = vmul.f32 %v4570, %v4595
      %v4608 = vmul.f32 %v4571, %v4595
      %v4609 = vmul.f32 %v4572, %v4595
      %v4610 = vmul.f32 %v4573, %v4595
      %v4611 = vmul.f32 %v4574, %v4595
      %v4612 = vmul.f32 %v4575, %v4595
      %v4613 = vmul.f32 %v4576, %v4595
      %v4614 = vmul.f32 %v4577, %v4595
      %v4615 = vmul.f32 %v4578, %v4595
      %v4616 = vmul.f32 %v4579, %v4595
      %v4617 = vmul.f32 %v4580, %v4595
      %v4618 = vmul.f32 %v4581, %v4595
      %v4619 = vmul.f32 %v4582, %v4595
      %v4620 = vmul.f32 %v4583, %v4595
      %v4621 = vmul.f32 %v4584, %v4595
      %v4622 = vmul.f32 %v4585, %v4595
      %v4623 = vmul.f32 %v4586, %v4595
      %v4624 = vmul.f32 %v4587, %v4595
      %v4625 = vmul.f32 %v4588, %v4595
      %v4626 = vmul.f32 %v4589, %v4595
      %v4627 = vmul.f32 %v4590, %v4595
      %v4628 = vmul.f32 %v4591, %v4595
      %v4629 = vxor.u32 %v4597, 2147483648
      %v4630 = vxor.u32 %v4598, 2147483648
      %v4631 = vxor.u32 %v4599, 2147483648
      %v4632 = vxor.u32 %v4600, 2147483648
      %v4633 = vxor.u32 %v4601, 2147483648
      %v4634 = vxor.u32 %v4602, 2147483648
      %v4635 = vxor.u32 %v4603, 2147483648
      %v4636 = vxor.u32 %v4604, 2147483648
      %v4637 = vxor.u32 %v4605, 2147483648
      %v4638 = vxor.u32 %v4606, 2147483648
      %v4639 = vxor.u32 %v4607, 2147483648
      %v4640 = vxor.u32 %v4608, 2147483648
      %v4641 = vxor.u32 %v4609, 2147483648
      %v4642 = vxor.u32 %v4610, 2147483648
      %v4643 = vxor.u32 %v4611, 2147483648
      %v4644 = vxor.u32 %v4612, 2147483648
      %v4645 = vxor.u32 %v4613, 2147483648
      %v4646 = vxor.u32 %v4614, 2147483648
      %v4647 = vxor.u32 %v4615, 2147483648
      %v4648 = vxor.u32 %v4616, 2147483648
      %v4649 = vxor.u32 %v4617, 2147483648
      %v4650 = vxor.u32 %v4618, 2147483648
      %v4651 = vxor.u32 %v4619, 2147483648
      %v4652 = vxor.u32 %v4620, 2147483648
      %v4653 = vxor.u32 %v4621, 2147483648
      %v4654 = vxor.u32 %v4622, 2147483648
      %v4655 = vxor.u32 %v4623, 2147483648
      %v4656 = vxor.u32 %v4624, 2147483648
      %v4657 = vxor.u32 %v4625, 2147483648
      %v4658 = vxor.u32 %v4626, 2147483648
      %v4659 = vxor.u32 %v4627, 2147483648
      %v4660 = vxor.u32 %v4628, 2147483648
      %v4661 = vmul.f32 %v4629, 1.442695
      %v4662 = vpow.pop %v4661
      %v4663 = vmul.f32 %v4630, 1.442695
      %v4664 = vpow.pop %v4663
      %v4665 = vmul.f32 %v4631, 1.442695
      %v4666 = vpow.pop %v4665
      %v4667 = vmul.f32 %v4632, 1.442695
      %v4668 = vpow.pop %v4667
      %v4669 = vmul.f32 %v4633, 1.442695
      %v4670 = vpow.pop %v4669
      %v4671 = vmul.f32 %v4634, 1.442695
      %v4672 = vpow.pop %v4671
      %v4673 = vmul.f32 %v4635, 1.442695
      %v4674 = vpow.pop %v4673
      %v4675 = vmul.f32 %v4636, 1.442695
      %v4676 = vpow.pop %v4675
      %v4677 = vmul.f32 %v4637, 1.442695
      %v4678 = vpow.pop %v4677
      %v4679 = vmul.f32 %v4638, 1.442695
      %v4680 = vpow.pop %v4679
      %v4681 = vmul.f32 %v4639, 1.442695
      %v4682 = vpow.pop %v4681
      %v4683 = vmul.f32 %v4640, 1.442695
      %v4684 = vpow.pop %v4683
      %v4685 = vmul.f32 %v4641, 1.442695
      %v4686 = vpow.pop %v4685
      %v4687 = vmul.f32 %v4642, 1.442695
      %v4688 = vpow.pop %v4687
      %v4689 = vmul.f32 %v4643, 1.442695
      %v4690 = vpow.pop %v4689
      %v4691 = vmul.f32 %v4644, 1.442695
      %v4692 = vpow.pop %v4691
      %v4693 = vmul.f32 %v4645, 1.442695
      %v4694 = vpow.pop %v4693
      %v4695 = vmul.f32 %v4646, 1.442695
      %v4696 = vpow.pop %v4695
      %v4697 = vmul.f32 %v4647, 1.442695
      %v4698 = vpow.pop %v4697
      %v4699 = vmul.f32 %v4648, 1.442695
      %v4700 = vpow.pop %v4699
      %v4701 = vmul.f32 %v4649, 1.442695
      %v4702 = vpow.pop %v4701
      %v4703 = vmul.f32 %v4650, 1.442695
      %v4704 = vpow.pop %v4703
      %v4705 = vmul.f32 %v4651, 1.442695
      %v4706 = vpow.pop %v4705
      %v4707 = vmul.f32 %v4652, 1.442695
      %v4708 = vpow.pop %v4707
      %v4709 = vmul.f32 %v4653, 1.442695
      %v4710 = vpow.pop %v4709
      %v4711 = vmul.f32 %v4654, 1.442695
      %v4712 = vpow.pop %v4711
      %v4713 = vmul.f32 %v4655, 1.442695
      %v4714 = vpow.pop %v4713
      %v4715 = vmul.f32 %v4656, 1.442695
      %v4716 = vpow.pop %v4715
      %v4717 = vmul.f32 %v4657, 1.442695
      %v4718 = vpow.pop %v4717
      %v4719 = vmul.f32 %v4658, 1.442695
      %v4720 = vpow.pop %v4719
      %v4721 = vmul.f32 %v4659, 1.442695
      %v4722 = vpow.pop %v4721
      %v4723 = vmul.f32 %v4660, 1.442695
      %v4724 = vpow.pop %v4723
      %v4725 = vadd.f32 %v4662, 1.0
      %v4726 = vadd.f32 %v4664, 1.0
      %v4727 = vadd.f32 %v4666, 1.0
      %v4728 = vadd.f32 %v4668, 1.0
      %v4729 = vadd.f32 %v4670, 1.0
      %v4730 = vadd.f32 %v4672, 1.0
      %v4731 = vadd.f32 %v4674, 1.0
      %v4732 = vadd.f32 %v4676, 1.0
      %v4733 = vadd.f32 %v4678, 1.0
      %v4734 = vadd.f32 %v4680, 1.0
      %v4735 = vadd.f32 %v4682, 1.0
      %v4736 = vadd.f32 %v4684, 1.0
      %v4737 = vadd.f32 %v4686, 1.0
      %v4738 = vadd.f32 %v4688, 1.0
      %v4739 = vadd.f32 %v4690, 1.0
      %v4740 = vadd.f32 %v4692, 1.0
      %v4741 = vadd.f32 %v4694, 1.0
      %v4742 = vadd.f32 %v4696, 1.0
      %v4743 = vadd.f32 %v4698, 1.0
      %v4744 = vadd.f32 %v4700, 1.0
      %v4745 = vadd.f32 %v4702, 1.0
      %v4746 = vadd.f32 %v4704, 1.0
      %v4747 = vadd.f32 %v4706, 1.0
      %v4748 = vadd.f32 %v4708, 1.0
      %v4749 = vadd.f32 %v4710, 1.0
      %v4750 = vadd.f32 %v4712, 1.0
      %v4751 = vadd.f32 %v4714, 1.0
      %v4752 = vadd.f32 %v4716, 1.0
      %v4753 = vadd.f32 %v4718, 1.0
      %v4754 = vadd.f32 %v4720, 1.0
      %v4755 = vadd.f32 %v4722, 1.0
      %v4756 = vadd.f32 %v4724, 1.0
      %v4757 = vrcp.pop %v4725
      %v4758 = vmul.f32 %v4725, %v4757
      %v4759 = vsub.f32 1.0, %v4758
      %v4760 = vmul.f32 %v4757, %v4759
      %v4761 = vadd.f32 %v4757, %v4760
      %vm4762 = vweird.f32 %v4725
      %vm4763 = vweird.f32 %v4757
      %vm4764 = vmor %vm4762, %vm4763
      %v4765 = vsel %vm4764, %v4757, %v4761
      %v4766 = vand.u32 2147483647, %v4725
      %vm4767 = vcmp.eq.f32.partialorder %v4766, 8.507059e+37
      %v4768 = vand.u32 %v4725, 2147483648
      %v4769 = vor.u32 1.1754944e-38, %v4768
      %v4770 = vsel %vm4767, %v4769, %v4765
      %v4771 = vmul.f32 1.0, %v4770
      %v4772 = vrcp.pop %v4726
      %v4773 = vmul.f32 %v4726, %v4772
      %v4774 = vsub.f32 1.0, %v4773
      %v4775 = vmul.f32 %v4772, %v4774
      %v4776 = vadd.f32 %v4772, %v4775
      %vm4777 = vweird.f32 %v4726
      %vm4778 = vweird.f32 %v4772
      %vm4779 = vmor %vm4777, %vm4778
      %v4780 = vsel %vm4779, %v4772, %v4776
      %v4781 = vand.u32 2147483647, %v4726
      %vm4782 = vcmp.eq.f32.partialorder %v4781, 8.507059e+37
      %v4783 = vand.u32 %v4726, 2147483648
      %v4784 = vor.u32 1.1754944e-38, %v4783
      %v4785 = vsel %vm4782, %v4784, %v4780
      %v4786 = vmul.f32 1.0, %v4785
      %v4787 = vrcp.pop %v4727
      %v4788 = vmul.f32 %v4727, %v4787
      %v4789 = vsub.f32 1.0, %v4788
      %v4790 = vmul.f32 %v4787, %v4789
      %v4791 = vadd.f32 %v4787, %v4790
      %vm4792 = vweird.f32 %v4727
      %vm4793 = vweird.f32 %v4787
      %vm4794 = vmor %vm4792, %vm4793
      %v4795 = vsel %vm4794, %v4787, %v4791
      %v4796 = vand.u32 2147483647, %v4727
      %vm4797 = vcmp.eq.f32.partialorder %v4796, 8.507059e+37
      %v4798 = vand.u32 %v4727, 2147483648
      %v4799 = vor.u32 1.1754944e-38, %v4798
      %v4800 = vsel %vm4797, %v4799, %v4795
      %v4801 = vmul.f32 1.0, %v4800
      %v4802 = vrcp.pop %v4728
      %v4803 = vmul.f32 %v4728, %v4802
      %v4804 = vsub.f32 1.0, %v4803
      %v4805 = vmul.f32 %v4802, %v4804
      %v4806 = vadd.f32 %v4802, %v4805
      %vm4807 = vweird.f32 %v4728
      %vm4808 = vweird.f32 %v4802
      %vm4809 = vmor %vm4807, %vm4808
      %v4810 = vsel %vm4809, %v4802, %v4806
      %v4811 = vand.u32 2147483647, %v4728
      %vm4812 = vcmp.eq.f32.partialorder %v4811, 8.507059e+37
      %v4813 = vand.u32 %v4728, 2147483648
      %v4814 = vor.u32 1.1754944e-38, %v4813
      %v4815 = vsel %vm4812, %v4814, %v4810
      %v4816 = vmul.f32 1.0, %v4815
      %v4817 = vrcp.pop %v4729
      %v4818 = vmul.f32 %v4729, %v4817
      %v4819 = vsub.f32 1.0, %v4818
      %v4820 = vmul.f32 %v4817, %v4819
      %v4821 = vadd.f32 %v4817, %v4820
      %vm4822 = vweird.f32 %v4729
      %vm4823 = vweird.f32 %v4817
      %vm4824 = vmor %vm4822, %vm4823
      %v4825 = vsel %vm4824, %v4817, %v4821
      %v4826 = vand.u32 2147483647, %v4729
      %vm4827 = vcmp.eq.f32.partialorder %v4826, 8.507059e+37
      %v4828 = vand.u32 %v4729, 2147483648
      %v4829 = vor.u32 1.1754944e-38, %v4828
      %v4830 = vsel %vm4827, %v4829, %v4825
      %v4831 = vmul.f32 1.0, %v4830
      %v4832 = vrcp.pop %v4730
      %v4833 = vmul.f32 %v4730, %v4832
      %v4834 = vsub.f32 1.0, %v4833
      %v4835 = vmul.f32 %v4832, %v4834
      %v4836 = vadd.f32 %v4832, %v4835
      %vm4837 = vweird.f32 %v4730
      %vm4838 = vweird.f32 %v4832
      %vm4839 = vmor %vm4837, %vm4838
      %v4840 = vsel %vm4839, %v4832, %v4836
      %v4841 = vand.u32 2147483647, %v4730
      %vm4842 = vcmp.eq.f32.partialorder %v4841, 8.507059e+37
      %v4843 = vand.u32 %v4730, 2147483648
      %v4844 = vor.u32 1.1754944e-38, %v4843
      %v4845 = vsel %vm4842, %v4844, %v4840
      %v4846 = vmul.f32 1.0, %v4845
      %v4847 = vrcp.pop %v4731
      %v4848 = vmul.f32 %v4731, %v4847
      %v4849 = vsub.f32 1.0, %v4848
      %v4850 = vmul.f32 %v4847, %v4849
      %v4851 = vadd.f32 %v4847, %v4850
      %vm4852 = vweird.f32 %v4731
      %vm4853 = vweird.f32 %v4847
      %vm4854 = vmor %vm4852, %vm4853
      %v4855 = vsel %vm4854, %v4847, %v4851
      %v4856 = vand.u32 2147483647, %v4731
      %vm4857 = vcmp.eq.f32.partialorder %v4856, 8.507059e+37
      %v4858 = vand.u32 %v4731, 2147483648
      %v4859 = vor.u32 1.1754944e-38, %v4858
      %v4860 = vsel %vm4857, %v4859, %v4855
      %v4861 = vmul.f32 1.0, %v4860
      %v4862 = vrcp.pop %v4732
      %v4863 = vmul.f32 %v4732, %v4862
      %v4864 = vsub.f32 1.0, %v4863
      %v4865 = vmul.f32 %v4862, %v4864
      %v4866 = vadd.f32 %v4862, %v4865
      %vm4867 = vweird.f32 %v4732
      %vm4868 = vweird.f32 %v4862
      %vm4869 = vmor %vm4867, %vm4868
      %v4870 = vsel %vm4869, %v4862, %v4866
      %v4871 = vand.u32 2147483647, %v4732
      %vm4872 = vcmp.eq.f32.partialorder %v4871, 8.507059e+37
      %v4873 = vand.u32 %v4732, 2147483648
      %v4874 = vor.u32 1.1754944e-38, %v4873
      %v4875 = vsel %vm4872, %v4874, %v4870
      %v4876 = vmul.f32 1.0, %v4875
      %v4877 = vrcp.pop %v4733
      %v4878 = vmul.f32 %v4733, %v4877
      %v4879 = vsub.f32 1.0, %v4878
      %v4880 = vmul.f32 %v4877, %v4879
      %v4881 = vadd.f32 %v4877, %v4880
      %vm4882 = vweird.f32 %v4733
      %vm4883 = vweird.f32 %v4877
      %vm4884 = vmor %vm4882, %vm4883
      %v4885 = vsel %vm4884, %v4877, %v4881
      %v4886 = vand.u32 2147483647, %v4733
      %vm4887 = vcmp.eq.f32.partialorder %v4886, 8.507059e+37
      %v4888 = vand.u32 %v4733, 2147483648
      %v4889 = vor.u32 1.1754944e-38, %v4888
      %v4890 = vsel %vm4887, %v4889, %v4885
      %v4891 = vmul.f32 1.0, %v4890
      %v4892 = vrcp.pop %v4734
      %v4893 = vmul.f32 %v4734, %v4892
      %v4894 = vsub.f32 1.0, %v4893
      %v4895 = vmul.f32 %v4892, %v4894
      %v4896 = vadd.f32 %v4892, %v4895
      %vm4897 = vweird.f32 %v4734
      %vm4898 = vweird.f32 %v4892
      %vm4899 = vmor %vm4897, %vm4898
      %v4900 = vsel %vm4899, %v4892, %v4896
      %v4901 = vand.u32 2147483647, %v4734
      %vm4902 = vcmp.eq.f32.partialorder %v4901, 8.507059e+37
      %v4903 = vand.u32 %v4734, 2147483648
      %v4904 = vor.u32 1.1754944e-38, %v4903
      %v4905 = vsel %vm4902, %v4904, %v4900
      %v4906 = vmul.f32 1.0, %v4905
      %v4907 = vrcp.pop %v4735
      %v4908 = vmul.f32 %v4735, %v4907
      %v4909 = vsub.f32 1.0, %v4908
      %v4910 = vmul.f32 %v4907, %v4909
      %v4911 = vadd.f32 %v4907, %v4910
      %vm4912 = vweird.f32 %v4735
      %vm4913 = vweird.f32 %v4907
      %vm4914 = vmor %vm4912, %vm4913
      %v4915 = vsel %vm4914, %v4907, %v4911
      %v4916 = vand.u32 2147483647, %v4735
      %vm4917 = vcmp.eq.f32.partialorder %v4916, 8.507059e+37
      %v4918 = vand.u32 %v4735, 2147483648
      %v4919 = vor.u32 1.1754944e-38, %v4918
      %v4920 = vsel %vm4917, %v4919, %v4915
      %v4921 = vmul.f32 1.0, %v4920
      %v4922 = vrcp.pop %v4736
      %v4923 = vmul.f32 %v4736, %v4922
      %v4924 = vsub.f32 1.0, %v4923
      %v4925 = vmul.f32 %v4922, %v4924
      %v4926 = vadd.f32 %v4922, %v4925
      %vm4927 = vweird.f32 %v4736
      %vm4928 = vweird.f32 %v4922
      %vm4929 = vmor %vm4927, %vm4928
      %v4930 = vsel %vm4929, %v4922, %v4926
      %v4931 = vand.u32 2147483647, %v4736
      %vm4932 = vcmp.eq.f32.partialorder %v4931, 8.507059e+37
      %v4933 = vand.u32 %v4736, 2147483648
      %v4934 = vor.u32 1.1754944e-38, %v4933
      %v4935 = vsel %vm4932, %v4934, %v4930
      %v4936 = vmul.f32 1.0, %v4935
      %v4937 = vrcp.pop %v4737
      %v4938 = vmul.f32 %v4737, %v4937
      %v4939 = vsub.f32 1.0, %v4938
      %v4940 = vmul.f32 %v4937, %v4939
      %v4941 = vadd.f32 %v4937, %v4940
      %vm4942 = vweird.f32 %v4737
      %vm4943 = vweird.f32 %v4937
      %vm4944 = vmor %vm4942, %vm4943
      %v4945 = vsel %vm4944, %v4937, %v4941
      %v4946 = vand.u32 2147483647, %v4737
      %vm4947 = vcmp.eq.f32.partialorder %v4946, 8.507059e+37
      %v4948 = vand.u32 %v4737, 2147483648
      %v4949 = vor.u32 1.1754944e-38, %v4948
      %v4950 = vsel %vm4947, %v4949, %v4945
      %v4951 = vmul.f32 1.0, %v4950
      %v4952 = vrcp.pop %v4738
      %v4953 = vmul.f32 %v4738, %v4952
      %v4954 = vsub.f32 1.0, %v4953
      %v4955 = vmul.f32 %v4952, %v4954
      %v4956 = vadd.f32 %v4952, %v4955
      %vm4957 = vweird.f32 %v4738
      %vm4958 = vweird.f32 %v4952
      %vm4959 = vmor %vm4957, %vm4958
      %v4960 = vsel %vm4959, %v4952, %v4956
      %v4961 = vand.u32 2147483647, %v4738
      %vm4962 = vcmp.eq.f32.partialorder %v4961, 8.507059e+37
      %v4963 = vand.u32 %v4738, 2147483648
      %v4964 = vor.u32 1.1754944e-38, %v4963
      %v4965 = vsel %vm4962, %v4964, %v4960
      %v4966 = vmul.f32 1.0, %v4965
      %v4967 = vrcp.pop %v4739
      %v4968 = vmul.f32 %v4739, %v4967
      %v4969 = vsub.f32 1.0, %v4968
      %v4970 = vmul.f32 %v4967, %v4969
      %v4971 = vadd.f32 %v4967, %v4970
      %vm4972 = vweird.f32 %v4739
      %vm4973 = vweird.f32 %v4967
      %vm4974 = vmor %vm4972, %vm4973
      %v4975 = vsel %vm4974, %v4967, %v4971
      %v4976 = vand.u32 2147483647, %v4739
      %vm4977 = vcmp.eq.f32.partialorder %v4976, 8.507059e+37
      %v4978 = vand.u32 %v4739, 2147483648
      %v4979 = vor.u32 1.1754944e-38, %v4978
      %v4980 = vsel %vm4977, %v4979, %v4975
      %v4981 = vmul.f32 1.0, %v4980
      %v4982 = vrcp.pop %v4740
      %v4983 = vmul.f32 %v4740, %v4982
      %v4984 = vsub.f32 1.0, %v4983
      %v4985 = vmul.f32 %v4982, %v4984
      %v4986 = vadd.f32 %v4982, %v4985
      %vm4987 = vweird.f32 %v4740
      %vm4988 = vweird.f32 %v4982
      %vm4989 = vmor %vm4987, %vm4988
      %v4990 = vsel %vm4989, %v4982, %v4986
      %v4991 = vand.u32 2147483647, %v4740
      %vm4992 = vcmp.eq.f32.partialorder %v4991, 8.507059e+37
      %v4993 = vand.u32 %v4740, 2147483648
      %v4994 = vor.u32 1.1754944e-38, %v4993
      %v4995 = vsel %vm4992, %v4994, %v4990
      %v4996 = vmul.f32 1.0, %v4995
      %v4997 = vrcp.pop %v4741
      %v4998 = vmul.f32 %v4741, %v4997
      %v4999 = vsub.f32 1.0, %v4998
      %v5000 = vmul.f32 %v4997, %v4999
      %v5001 = vadd.f32 %v4997, %v5000
      %vm5002 = vweird.f32 %v4741
      %vm5003 = vweird.f32 %v4997
      %vm5004 = vmor %vm5002, %vm5003
      %v5005 = vsel %vm5004, %v4997, %v5001
      %v5006 = vand.u32 2147483647, %v4741
      %vm5007 = vcmp.eq.f32.partialorder %v5006, 8.507059e+37
      %v5008 = vand.u32 %v4741, 2147483648
      %v5009 = vor.u32 1.1754944e-38, %v5008
      %v5010 = vsel %vm5007, %v5009, %v5005
      %v5011 = vmul.f32 1.0, %v5010
      %v5012 = vrcp.pop %v4742
      %v5013 = vmul.f32 %v4742, %v5012
      %v5014 = vsub.f32 1.0, %v5013
      %v5015 = vmul.f32 %v5012, %v5014
      %v5016 = vadd.f32 %v5012, %v5015
      %vm5017 = vweird.f32 %v4742
      %vm5018 = vweird.f32 %v5012
      %vm5019 = vmor %vm5017, %vm5018
      %v5020 = vsel %vm5019, %v5012, %v5016
      %v5021 = vand.u32 2147483647, %v4742
      %vm5022 = vcmp.eq.f32.partialorder %v5021, 8.507059e+37
      %v5023 = vand.u32 %v4742, 2147483648
      %v5024 = vor.u32 1.1754944e-38, %v5023
      %v5025 = vsel %vm5022, %v5024, %v5020
      %v5026 = vmul.f32 1.0, %v5025
      %v5027 = vrcp.pop %v4743
      %v5028 = vmul.f32 %v4743, %v5027
      %v5029 = vsub.f32 1.0, %v5028
      %v5030 = vmul.f32 %v5027, %v5029
      %v5031 = vadd.f32 %v5027, %v5030
      %vm5032 = vweird.f32 %v4743
      %vm5033 = vweird.f32 %v5027
      %vm5034 = vmor %vm5032, %vm5033
      %v5035 = vsel %vm5034, %v5027, %v5031
      %v5036 = vand.u32 2147483647, %v4743
      %vm5037 = vcmp.eq.f32.partialorder %v5036, 8.507059e+37
      %v5038 = vand.u32 %v4743, 2147483648
      %v5039 = vor.u32 1.1754944e-38, %v5038
      %v5040 = vsel %vm5037, %v5039, %v5035
      %v5041 = vmul.f32 1.0, %v5040
      %v5042 = vrcp.pop %v4744
      %v5043 = vmul.f32 %v4744, %v5042
      %v5044 = vsub.f32 1.0, %v5043
      %v5045 = vmul.f32 %v5042, %v5044
      %v5046 = vadd.f32 %v5042, %v5045
      %vm5047 = vweird.f32 %v4744
      %vm5048 = vweird.f32 %v5042
      %vm5049 = vmor %vm5047, %vm5048
      %v5050 = vsel %vm5049, %v5042, %v5046
      %v5051 = vand.u32 2147483647, %v4744
      %vm5052 = vcmp.eq.f32.partialorder %v5051, 8.507059e+37
      %v5053 = vand.u32 %v4744, 2147483648
      %v5054 = vor.u32 1.1754944e-38, %v5053
      %v5055 = vsel %vm5052, %v5054, %v5050
      %v5056 = vmul.f32 1.0, %v5055
      %v5057 = vrcp.pop %v4745
      %v5058 = vmul.f32 %v4745, %v5057
      %v5059 = vsub.f32 1.0, %v5058
      %v5060 = vmul.f32 %v5057, %v5059
      %v5061 = vadd.f32 %v5057, %v5060
      %vm5062 = vweird.f32 %v4745
      %vm5063 = vweird.f32 %v5057
      %vm5064 = vmor %vm5062, %vm5063
      %v5065 = vsel %vm5064, %v5057, %v5061
      %v5066 = vand.u32 2147483647, %v4745
      %vm5067 = vcmp.eq.f32.partialorder %v5066, 8.507059e+37
      %v5068 = vand.u32 %v4745, 2147483648
      %v5069 = vor.u32 1.1754944e-38, %v5068
      %v5070 = vsel %vm5067, %v5069, %v5065
      %v5071 = vmul.f32 1.0, %v5070
      %v5072 = vrcp.pop %v4746
      %v5073 = vmul.f32 %v4746, %v5072
      %v5074 = vsub.f32 1.0, %v5073
      %v5075 = vmul.f32 %v5072, %v5074
      %v5076 = vadd.f32 %v5072, %v5075
      %vm5077 = vweird.f32 %v4746
      %vm5078 = vweird.f32 %v5072
      %vm5079 = vmor %vm5077, %vm5078
      %v5080 = vsel %vm5079, %v5072, %v5076
      %v5081 = vand.u32 2147483647, %v4746
      %vm5082 = vcmp.eq.f32.partialorder %v5081, 8.507059e+37
      %v5083 = vand.u32 %v4746, 2147483648
      %v5084 = vor.u32 1.1754944e-38, %v5083
      %v5085 = vsel %vm5082, %v5084, %v5080
      %v5086 = vmul.f32 1.0, %v5085
      %v5087 = vrcp.pop %v4747
      %v5088 = vmul.f32 %v4747, %v5087
      %v5089 = vsub.f32 1.0, %v5088
      %v5090 = vmul.f32 %v5087, %v5089
      %v5091 = vadd.f32 %v5087, %v5090
      %vm5092 = vweird.f32 %v4747
      %vm5093 = vweird.f32 %v5087
      %vm5094 = vmor %vm5092, %vm5093
      %v5095 = vsel %vm5094, %v5087, %v5091
      %v5096 = vand.u32 2147483647, %v4747
      %vm5097 = vcmp.eq.f32.partialorder %v5096, 8.507059e+37
      %v5098 = vand.u32 %v4747, 2147483648
      %v5099 = vor.u32 1.1754944e-38, %v5098
      %v5100 = vsel %vm5097, %v5099, %v5095
      %v5101 = vmul.f32 1.0, %v5100
      %v5102 = vrcp.pop %v4748
      %v5103 = vmul.f32 %v4748, %v5102
      %v5104 = vsub.f32 1.0, %v5103
      %v5105 = vmul.f32 %v5102, %v5104
      %v5106 = vadd.f32 %v5102, %v5105
      %vm5107 = vweird.f32 %v4748
      %vm5108 = vweird.f32 %v5102
      %vm5109 = vmor %vm5107, %vm5108
      %v5110 = vsel %vm5109, %v5102, %v5106
      %v5111 = vand.u32 2147483647, %v4748
      %vm5112 = vcmp.eq.f32.partialorder %v5111, 8.507059e+37
      %v5113 = vand.u32 %v4748, 2147483648
      %v5114 = vor.u32 1.1754944e-38, %v5113
      %v5115 = vsel %vm5112, %v5114, %v5110
      %v5116 = vmul.f32 1.0, %v5115
      %v5117 = vrcp.pop %v4749
      %v5118 = vmul.f32 %v4749, %v5117
      %v5119 = vsub.f32 1.0, %v5118
      %v5120 = vmul.f32 %v5117, %v5119
      %v5121 = vadd.f32 %v5117, %v5120
      %vm5122 = vweird.f32 %v4749
      %vm5123 = vweird.f32 %v5117
      %vm5124 = vmor %vm5122, %vm5123
      %v5125 = vsel %vm5124, %v5117, %v5121
      %v5126 = vand.u32 2147483647, %v4749
      %vm5127 = vcmp.eq.f32.partialorder %v5126, 8.507059e+37
      %v5128 = vand.u32 %v4749, 2147483648
      %v5129 = vor.u32 1.1754944e-38, %v5128
      %v5130 = vsel %vm5127, %v5129, %v5125
      %v5131 = vmul.f32 1.0, %v5130
      %v5132 = vrcp.pop %v4750
      %v5133 = vmul.f32 %v4750, %v5132
      %v5134 = vsub.f32 1.0, %v5133
      %v5135 = vmul.f32 %v5132, %v5134
      %v5136 = vadd.f32 %v5132, %v5135
      %vm5137 = vweird.f32 %v4750
      %vm5138 = vweird.f32 %v5132
      %vm5139 = vmor %vm5137, %vm5138
      %v5140 = vsel %vm5139, %v5132, %v5136
      %v5141 = vand.u32 2147483647, %v4750
      %vm5142 = vcmp.eq.f32.partialorder %v5141, 8.507059e+37
      %v5143 = vand.u32 %v4750, 2147483648
      %v5144 = vor.u32 1.1754944e-38, %v5143
      %v5145 = vsel %vm5142, %v5144, %v5140
      %v5146 = vmul.f32 1.0, %v5145
      %v5147 = vrcp.pop %v4751
      %v5148 = vmul.f32 %v4751, %v5147
      %v5149 = vsub.f32 1.0, %v5148
      %v5150 = vmul.f32 %v5147, %v5149
      %v5151 = vadd.f32 %v5147, %v5150
      %vm5152 = vweird.f32 %v4751
      %vm5153 = vweird.f32 %v5147
      %vm5154 = vmor %vm5152, %vm5153
      %v5155 = vsel %vm5154, %v5147, %v5151
      %v5156 = vand.u32 2147483647, %v4751
      %vm5157 = vcmp.eq.f32.partialorder %v5156, 8.507059e+37
      %v5158 = vand.u32 %v4751, 2147483648
      %v5159 = vor.u32 1.1754944e-38, %v5158
      %v5160 = vsel %vm5157, %v5159, %v5155
      %v5161 = vmul.f32 1.0, %v5160
      %v5162 = vrcp.pop %v4752
      %v5163 = vmul.f32 %v4752, %v5162
      %v5164 = vsub.f32 1.0, %v5163
      %v5165 = vmul.f32 %v5162, %v5164
      %v5166 = vadd.f32 %v5162, %v5165
      %vm5167 = vweird.f32 %v4752
      %vm5168 = vweird.f32 %v5162
      %vm5169 = vmor %vm5167, %vm5168
      %v5170 = vsel %vm5169, %v5162, %v5166
      %v5171 = vand.u32 2147483647, %v4752
      %vm5172 = vcmp.eq.f32.partialorder %v5171, 8.507059e+37
      %v5173 = vand.u32 %v4752, 2147483648
      %v5174 = vor.u32 1.1754944e-38, %v5173
      %v5175 = vsel %vm5172, %v5174, %v5170
      %v5176 = vmul.f32 1.0, %v5175
      %v5177 = vrcp.pop %v4753
      %v5178 = vmul.f32 %v4753, %v5177
      %v5179 = vsub.f32 1.0, %v5178
      %v5180 = vmul.f32 %v5177, %v5179
      %v5181 = vadd.f32 %v5177, %v5180
      %vm5182 = vweird.f32 %v4753
      %vm5183 = vweird.f32 %v5177
      %vm5184 = vmor %vm5182, %vm5183
      %v5185 = vsel %vm5184, %v5177, %v5181
      %v5186 = vand.u32 2147483647, %v4753
      %vm5187 = vcmp.eq.f32.partialorder %v5186, 8.507059e+37
      %v5188 = vand.u32 %v4753, 2147483648
      %v5189 = vor.u32 1.1754944e-38, %v5188
      %v5190 = vsel %vm5187, %v5189, %v5185
      %v5191 = vmul.f32 1.0, %v5190
      %v5192 = vrcp.pop %v4754
      %v5193 = vmul.f32 %v4754, %v5192
      %v5194 = vsub.f32 1.0, %v5193
      %v5195 = vmul.f32 %v5192, %v5194
      %v5196 = vadd.f32 %v5192, %v5195
      %vm5197 = vweird.f32 %v4754
      %vm5198 = vweird.f32 %v5192
      %vm5199 = vmor %vm5197, %vm5198
      %v5200 = vsel %vm5199, %v5192, %v5196
      %v5201 = vand.u32 2147483647, %v4754
      %vm5202 = vcmp.eq.f32.partialorder %v5201, 8.507059e+37
      %v5203 = vand.u32 %v4754, 2147483648
      %v5204 = vor.u32 1.1754944e-38, %v5203
      %v5205 = vsel %vm5202, %v5204, %v5200
      %v5206 = vmul.f32 1.0, %v5205
      %v5207 = vrcp.pop %v4755
      %v5208 = vmul.f32 %v4755, %v5207
      %v5209 = vsub.f32 1.0, %v5208
      %v5210 = vmul.f32 %v5207, %v5209
      %v5211 = vadd.f32 %v5207, %v5210
      %vm5212 = vweird.f32 %v4755
      %vm5213 = vweird.f32 %v5207
      %vm5214 = vmor %vm5212, %vm5213
      %v5215 = vsel %vm5214, %v5207, %v5211
      %v5216 = vand.u32 2147483647, %v4755
      %vm5217 = vcmp.eq.f32.partialorder %v5216, 8.507059e+37
      %v5218 = vand.u32 %v4755, 2147483648
      %v5219 = vor.u32 1.1754944e-38, %v5218
      %v5220 = vsel %vm5217, %v5219, %v5215
      %v5221 = vmul.f32 1.0, %v5220
      %v5222 = vrcp.pop %v4756
      %v5223 = vmul.f32 %v4756, %v5222
      %v5224 = vsub.f32 1.0, %v5223
      %v5225 = vmul.f32 %v5222, %v5224
      %v5226 = vadd.f32 %v5222, %v5225
      %vm5227 = vweird.f32 %v4756
      %vm5228 = vweird.f32 %v5222
      %vm5229 = vmor %vm5227, %vm5228
      %v5230 = vsel %vm5229, %v5222, %v5226
      %v5231 = vand.u32 2147483647, %v4756
      %vm5232 = vcmp.eq.f32.partialorder %v5231, 8.507059e+37
      %v5233 = vand.u32 %v4756, 2147483648
      %v5234 = vor.u32 1.1754944e-38, %v5233
      %v5235 = vsel %vm5232, %v5234, %v5230
      %v5236 = vmul.f32 1.0, %v5235
      %v5237 = vmul.f32 %v4597, %v4771
      %v5238 = vmul.f32 %v4598, %v4786
      %v5239 = vmul.f32 %v4599, %v4801
      %v5240 = vmul.f32 %v4600, %v4816
      %v5241 = vmul.f32 %v4601, %v4831
      %v5242 = vmul.f32 %v4602, %v4846
      %v5243 = vmul.f32 %v4603, %v4861
      %v5244 = vmul.f32 %v4604, %v4876
      %v5245 = vmul.f32 %v4605, %v4891
      %v5246 = vmul.f32 %v4606, %v4906
      %v5247 = vmul.f32 %v4607, %v4921
      %v5248 = vmul.f32 %v4608, %v4936
      %v5249 = vmul.f32 %v4609, %v4951
      %v5250 = vmul.f32 %v4610, %v4966
      %v5251 = vmul.f32 %v4611, %v4981
      %v5252 = vmul.f32 %v4612, %v4996
      %v5253 = vmul.f32 %v4613, %v5011
      %v5254 = vmul.f32 %v4614, %v5026
      %v5255 = vmul.f32 %v4615, %v5041
      %v5256 = vmul.f32 %v4616, %v5056
      %v5257 = vmul.f32 %v4617, %v5071
      %v5258 = vmul.f32 %v4618, %v5086
      %v5259 = vmul.f32 %v4619, %v5101
      %v5260 = vmul.f32 %v4620, %v5116
      %v5261 = vmul.f32 %v4621, %v5131
      %v5262 = vmul.f32 %v4622, %v5146
      %v5263 = vmul.f32 %v4623, %v5161
      %v5264 = vmul.f32 %v4624, %v5176
      %v5265 = vmul.f32 %v4625, %v5191
      %v5266 = vmul.f32 %v4626, %v5206
      %v5267 = vmul.f32 %v4627, %v5221
      %v5268 = vmul.f32 %v4628, %v5236
      %5269 = vst [vmem:[%s197] sm:$0xff] %v5237
      %5270 = vst [vmem:[%s197 + $0x8] sm:$0xff] %v5238
      %5271 = vst [vmem:[%s197 + $0x10] sm:$0xff] %v5239
      %5272 = vst [vmem:[%s197 + $0x18] sm:$0xff] %v5240
      %5273 = vst [vmem:[%s197 + $0x20] sm:$0xff] %v5241
      %5274 = vst [vmem:[%s197 + $0x28] sm:$0xff] %v5242
      %5275 = vst [vmem:[%s197 + $0x30] sm:$0xff] %v5243
      %5276 = vst [vmem:[%s197 + $0x38] sm:$0xff] %v5244
      %5277 = vst [vmem:[%s197 + $0x40] sm:$0xff] %v5245
      %5278 = vst [vmem:[%s197 + $0x48] sm:$0xff] %v5246
      %5279 = vst [vmem:[%s197 + $0x50] sm:$0xff] %v5247
      %5280 = vst [vmem:[%s197 + $0x58] sm:$0xff] %v5248
      %5281 = vst [vmem:[%s197 + $0x60] sm:$0xff] %v5249
      %5282 = vst [vmem:[%s197 + $0x68] sm:$0xff] %v5250
      %5283 = vst [vmem:[%s197 + $0x70] sm:$0xff] %v5251
      %5284 = vst [vmem:[%s197 + $0x78] sm:$0xff] %v5252
      %5285 = vst [vmem:[%s197 + $0x80] sm:$0xff] %v5253
      %5286 = vst [vmem:[%s197 + $0x88] sm:$0xff] %v5254
      %5287 = vst [vmem:[%s197 + $0x90] sm:$0xff] %v5255
      %5288 = vst [vmem:[%s197 + $0x98] sm:$0xff] %v5256
      %5289 = vst [vmem:[%s197 + $0xa0] sm:$0xff] %v5257
      %5290 = vst [vmem:[%s197 + $0xa8] sm:$0xff] %v5258
      %5291 = vst [vmem:[%s197 + $0xb0] sm:$0xff] %v5259
      %5292 = vst [vmem:[%s197 + $0xb8] sm:$0xff] %v5260
      %5293 = vst [vmem:[%s197 + $0xc0] sm:$0xff] %v5261
      %5294 = vst [vmem:[%s197 + $0xc8] sm:$0xff] %v5262
      %5295 = vst [vmem:[%s197 + $0xd0] sm:$0xff] %v5263
      %5296 = vst [vmem:[%s197 + $0xd8] sm:$0xff] %v5264
      %5297 = vst [vmem:[%s197 + $0xe0] sm:$0xff] %v5265
      %5298 = vst [vmem:[%s197 + $0xe8] sm:$0xff] %v5266
      %5299 = vst [vmem:[%s197 + $0xf0] sm:$0xff] %v5267
      %5300 = vst [vmem:[%s197 + $0xf8] sm:$0xff] %v5268
      %p5301 = scmp.lt.s32.totalorder %s15, 1
      %s5302 = scalar_select %p5301, %s15, 1
      %s5303 = smul.addr %s5302, 32
      %s5304 = smul.addr %s5303, 8
      %s5305 = scalar_lea.vmem %s4, %s5304
      // Predicated region
      $region44: #{block_forward.1} parent=35 // pred_check
        %p5306 = pneg %p122
      $region45: #{block_forward.1} parent=35 // pred_check_branch
        %5308 = sbr.rel (%p5306) target = $region47
      $region46: #{block_forward.1} parent=35 // pred_region
        _
      $region47: #{block_forward.1} parent=35 // pred_fallthru
        _
    $region36: #{block_forward.1} parent=5 // pred_fallthru
      _
    %p5309 = scmp.le.s32.totalorder 2, %s10
    // Predicated region
    $region48: #{block_forward.1} parent=5 // pred_check
      %p5310 = pneg %p5309
    $region49: #{block_forward.1} parent=5 // pred_check_branch
      %5312 = sbr.rel (%p5310) target = $region51
    $region50: #{block_forward.1} parent=5 // pred_region
      %s5313 = ssub.s32 %s10, 2
      // Predicated region
      $region52: #{block_forward.1} parent=50 // pred_check
        %p5314 = pneg %p128
      $region53: #{block_forward.1} parent=50 // pred_check_branch
        %5316 = sbr.rel (%p5314) target = $region55
      $region54: #{block_forward.1} parent=50 // pred_region
        %p5317 = scmp.lt.s32.totalorder %s16, 1
        %s5318 = scalar_select %p5317, %s16, 1
        %s5319 = smul.addr %s5318, 32
        %s5320 = smul.addr %s5319, 8
        %s5321 = scalar_lea.vmem %s4, %s5320
      $region55: #{block_forward.1} parent=50 // pred_fallthru
        _
    $region51: #{block_forward.1} parent=5 // pred_fallthru
      _
  $region6: #{block_forward.1} parent=0 // loop_footer
    %s14 = sadd.s32 1, %s10
  $region7: #{block_forward.1} parent=0 // loop_footer_branch
    %9 = sbr.rel target = $region3
  $region8: #{block_forward.1} parent=0 // loop_exit
    _

</llo_original>
